<compile_context>
chip_gen: v7x
topology: tpu7x:2x2x1
jax: 0.10.0
libtpu: 0.0.40
codegen_flags: <defaults>
</compile_context>

<pallas_src>
import functools

import numpy as np
import jax
import jax.numpy as jnp
from jax.experimental import pallas as pl
from jax.experimental.pallas import tpu as pltpu

LANE = 128  # TPU lane width; channel dims are padded to this.


def _round_up(n, m):
    return ((n + m - 1) // m) * m


# ----------------------------------------------------------------------------
# Fused whole-layer kernel: for every block,
#   conv1(+BN1)+ReLU  ->  conv2(+BN2)  ->  (+ fused downsample / identity) -> ReLU
# with all intermediates resident in VMEM.
# ----------------------------------------------------------------------------
def _layer_kernel(*refs, cfg, Ho, Wo):
    nb = len(cfg)
    x_ref = refs[0]
    o_ref = refs[1 + 4 * nb]
    slab_ref, buf_a, buf_b = refs[2 + 4 * nb:5 + 4 * nb]

    M = Ho * Wo
    f32 = jnp.float32
    bf16 = jnp.bfloat16

    def _zero_halo(buf):
        # Re-zero only the 1-px halo every step (interior is fully overwritten
        # each step; per-step because scratch is per-core under megacore).
        hb, wb, cb = buf.shape
        zr = jnp.zeros((1, wb, cb), f32)
        zc = jnp.zeros((hb, 1, cb), f32)
        buf[0:1, :, :] = zr
        buf[hb - 1:hb, :, :] = zr
        buf[:, 0:1, :] = zc
        buf[:, wb - 1:wb, :] = zc

    _zero_halo(buf_a)
    if nb > 1:
        _zero_halo(buf_b)

    def _fill_slab_3x3(buf, c):
        # 3x3 taps; the conv input (interior) lives at buf[1:Ho+1, 1:Wo+1, :].
        # bf16 cast is fused into the slab store (the only cast point).
        for kh in range(3):
            for kw in range(3):
                t = kh * 3 + kw
                win = buf[kh:kh + Ho, kw:kw + Wo, :]
                slab_ref[:, t * c:(t + 1) * c] = (
                    win.reshape(M, c).astype(bf16))

    for i, c in enumerate(cfg):
        wcat_ref, bcat_ref, w2_ref, b2_ref = refs[1 + 4 * i:5 + 4 * i]
        K1, cin_p, cp, has_ds = c["K1"], c["cin_p"], c["cp"], c["has_ds"]

        # ---- conv1 (+ folded BN1) and, for a downsample block, the fused
        #      option-'A' conv1x1+BN shortcut as extra MXU output columns:
        #      one (M, K1*K1*cin_p) x (K, cp or 2*cp) bf16 dot, f32 accum. ----
        if i == 0:
            for kh in range(K1):
                for kw in range(K1):
                    t = kh * K1 + kw
                    win = x_ref[0, kh:kh + Ho, kw:kw + Wo, :]
                    slab_ref[:, t * cin_p:(t + 1) * cin_p] = (
                        win.reshape(M, cin_p).astype(bf16))
        else:
            _fill_slab_3x3(buf_b, cp)

        kc = K1 * K1 * cin_p
        pre = jnp.dot(slab_ref[:, :kc], wcat_ref[...],
                      preferred_element_type=f32) + bcat_ref[...]
        act1 = jnp.maximum(pre[:, :cp], 0.0)

        if has_ds:
            ident = pre[:, cp:]                       # conv1x1+BN shortcut, f32
        elif i == 0:
            # stride-1 first block without downsample: identity = input window
            ident = x_ref[0, 1:1 + Ho, 1:1 + Wo, :].reshape(M, cp)
        else:
            ident = buf_b[1:Ho + 1, 1:Wo + 1, :].reshape(M, cp)

        # conv1 output -> padded VMEM buffer (never HBM).
        buf_a[1:Ho + 1, 1:Wo + 1, :] = act1.reshape(Ho, Wo, cp)

        # ---- conv2 (+ folded BN2): one (M, 9*cp) x (9*cp, cp) dot ----
        _fill_slab_3x3(buf_a, cp)
        acc2 = jnp.dot(slab_ref[:, :9 * cp], w2_ref[...],
                       preferred_element_type=f32) + b2_ref[...]

        res = jnp.maximum(acc2 + ident, 0.0)

        if i == nb - 1:
            o_ref[0] = res.reshape(Ho, Wo, cp)
        else:
            buf_b[1:Ho + 1, 1:Wo + 1, :] = res.reshape(Ho, Wo, cp)


def _layer_call(x_in, prepped):
    """x_in: (N, Hp, Wp, cin_p) f32 (padded / s2d'd block-0 input)."""
    N, Hp, Wp, cin_p0 = x_in.shape
    K1_0 = prepped[0]["K1"]
    Ho, Wo = Hp - K1_0 + 1, Wp - K1_0 + 1
    cp = prepped[-1]["cp"]
    M = Ho * Wo

    assert all(bp["cp"] == cp for bp in prepped)
    assert all(bp["cin_p"] == cp for bp in prepped[1:])

    cfg = tuple({"K1": bp["K1"], "cin_p": bp["cin_p"], "cp": bp["cp"],
                 "has_ds": bp["has_ds"]} for bp in prepped)

    in_specs = [pl.BlockSpec((1, Hp, Wp, cin_p0), lambda n: (n, 0, 0, 0))]
    args = [x_in]
    for bp in prepped:
        for key in ("wcat", "bcat", "w2", "b2"):
            arr = bp[key]
            # Constant block index -> fetched once (Pallas skips repeat DMAs).
            in_specs.append(
                pl.BlockSpec(arr.shape, lambda n, nd=arr.ndim: (0,) * nd))
            args.append(arr)

    k_max = max(max(c["K1"] ** 2 * c["cin_p"] for c in cfg), 9 * cp)
    buf_shape = (Ho + 2, Wo + 2, cp)

    kernel = functools.partial(_layer_kernel, cfg=cfg, Ho=Ho, Wo=Wo)
    return pl.pallas_call(
        kernel,
        out_shape=jax.ShapeDtypeStruct((N, Ho, Wo, cp), jnp.float32),
        grid=(N,),
        in_specs=in_specs,
        out_specs=pl.BlockSpec((1, Ho, Wo, cp), lambda n: (n, 0, 0, 0)),
        scratch_shapes=[
            pltpu.VMEM((M, k_max), jnp.bfloat16),   # shared im2col slab
            pltpu.VMEM(buf_shape, jnp.float32),     # conv1-output buffer
            pltpu.VMEM(buf_shape, jnp.float32),     # block-input / residual buffer
        ],
        compiler_params=pltpu.CompilerParams(
            dimension_semantics=("parallel",)),
    )(*args)


# ----------------------------------------------------------------------------
# Offline parameter preparation: fold BN, pad channels, bf16 weights,
# stride-2 -> space-to-depth rewrite, downsample fused as extra MXU columns.
# ----------------------------------------------------------------------------
def prepare_block_params(raw):
    stride = raw["stride"]
    _, _, cin, cout = raw["w1"].shape
    cin_eff = 4 * cin if stride == 2 else cin
    cin_p = _round_up(max(cin_eff, LANE), LANE)
    cp = _round_up(max(cout, LANE), LANE)
    has_ds = raw["downsample"] is not None
    ncat = 2 * cp if has_ds else cp

    w1f = raw["w1"] * raw["s1"][None, None, None, :]
    if stride == 1:
        K1 = 3
        w1 = jnp.zeros((9, cin_p, cp), jnp.float32)
        w1 = w1.at[:, :cin, :cout].set(w1f.reshape(9, cin, cout))
        id_tap, id_base = 4, 0          # center tap
    else:  # stride == 2: stride-1 2x2 conv over a space-to-depth input
        K1 = 2
        w1 = jnp.zeros((4, cin_p, cp), jnp.float32)
        for dp in range(2):
            for dq in range(2):
                for a in range(2):
                    for b in range(2):
                        kh, kw = 2 * dp + a, 2 * dq + b
                        if kh < 3 and kw < 3:
                            base = (a * 2 + b) * cin
                            w1 = w1.at[dp * 2 + dq, base:base + cin,
                                       :cout].set(w1f[kh, kw])
        id_tap, id_base = 0, 3 * cin    # phase (1,1) of the s2d channels

    wcat = jnp.zeros((K1 * K1, cin_p, ncat), jnp.float32)
    wcat = wcat.at[:, :, :cp].set(w1)
    bcat = jnp.zeros((1, ncat), jnp.float32).at[0, :cout].set(raw["b1"])
    if has_ds:
        d = raw["downsample"]
        wdf = d["w"] * d["s"][None, :]
        wcat = wcat.at[id_tap, id_base:id_base + cin, cp:cp + cout].set(wdf)
        bcat = bcat.at[0, cp:cp + cout].set(d["b"])
    wcat = wcat.reshape(K1 * K1 * cin_p, ncat).astype(jnp.bfloat16)

    w2f = raw["w2"] * raw["s2"][None, None, None, :]
    w2 = jnp.zeros((9, cp, cp), jnp.float32)
    w2 = w2.at[:, :cout, :cout].set(w2f.reshape(9, cout, cout))
    w2 = w2.reshape(9 * cp, cp).astype(jnp.bfloat16)
    b2 = jnp.zeros((1, cp), jnp.float32).at[0, :cout].set(raw["b2"])

    return {"stride": stride, "K1": K1, "cin_p": cin_p, "cp": cp,
            "has_ds": has_ds, "wcat": wcat, "bcat": bcat, "w2": w2, "b2": b2}


def _prep_first_input(x_nhwc, bp0):
    """Pad spatially (+ space-to-depth for stride 2), pad channels, keep f32."""
    N, H, W, C = x_nhwc.shape
    xp = jnp.pad(x_nhwc, ((0, 0), (1, 1), (1, 1), (0, 0)))
    if bp0["stride"] == 2:
        assert H % 2 == 0 and W % 2 == 0, "stride-2 s2d path assumes even H, W"
        Hb, Wb = (H + 2) // 2, (W + 2) // 2
        xp = xp.reshape(N, Hb, 2, Wb, 2, C).transpose(0, 1, 3, 2, 4, 5)
        xp = xp.reshape(N, Hb, Wb, 4 * C)
    cin_p = bp0["cin_p"]
    xp = jnp.pad(xp, ((0, 0), (0, 0), (0, 0), (0, cin_p - xp.shape[-1])))
    return xp.astype(jnp.float32)


def make_layer_nchw(x_nchw, blocks_prepped, planes):
    x_nhwc = jnp.transpose(x_nchw, (0, 2, 3, 1))
    x_in = _prep_first_input(x_nhwc, blocks_prepped[0])
    y = _layer_call(x_in, blocks_prepped)          # (N, Ho, Wo, cp) f32
    return jnp.transpose(y[..., :planes], (0, 3, 1, 2))


# ----------------------------------------------------------------------------
# Deterministic raw parameter init (BasicBlock, expansion = 1, option 'A')
# ----------------------------------------------------------------------------
def _fold_bn(gamma, beta, mean, var, eps=1e-5):
    scale = gamma / jnp.sqrt(var + eps)
    bias = beta - mean * scale
    return scale, bias


def _rand_bn(keys, c):
    gamma = 1.0 + 0.1 * jax.random.normal(keys[0], (c,), jnp.float32)
    beta = 0.1 * jax.random.normal(keys[1], (c,), jnp.float32)
    mean = 0.1 * jax.random.normal(keys[2], (c,), jnp.float32)
    var = 1.0 + 0.1 * jnp.abs(jax.random.normal(keys[3], (c,), jnp.float32))
    return _fold_bn(gamma, beta, mean, var)


def init_make_layer_params(key, inplanes, planes, blocks, stride=1, option="A"):
    expansion = 1  # BasicBlock
    params = []
    in_ch = inplanes
    for b in range(blocks):
        s = stride if b == 0 else 1
        key, *ks = jax.random.split(key, 17)
        w1 = 0.1 * jax.random.normal(ks[0], (3, 3, in_ch, planes), jnp.float32)
        s1, b1 = _rand_bn(ks[1:5], planes)
        w2 = 0.1 * jax.random.normal(ks[5], (3, 3, planes, planes), jnp.float32)
        s2, b2 = _rand_bn(ks[6:10], planes)
        downsample = None
        if b == 0 and option == "A" and (s != 1 or in_ch != planes * expansion):
            wd = 0.1 * jax.random.normal(ks[10], (in_ch, planes * expansion),
                                         jnp.float32)
            sd, bd = _rand_bn(ks[11:15], planes * expansion)
            downsample = {"w": wd, "s": sd, "b": bd}
        params.append({"w1": w1, "s1": s1, "b1": b1,
                       "w2": w2, "s2": s2, "b2": b2,
                       "stride": s, "downsample": downsample})
        in_ch = planes * expansion
    return params


# ----------------------------------------------------------------------------
# Pure-JAX reference (lax.conv).  Mirrors the kernel numerics: conv inputs and
# weights rounded to bf16 at each conv, f32 accumulation, f32 everywhere else.
# ----------------------------------------------------------------------------
def ref_forward_nchw(x_nchw, raw_params):
    dn = ("NHWC", "HWIO", "NHWC")
    prec = jax.lax.Precision.HIGHEST
    q = lambda a: a.astype(jnp.bfloat16).astype(jnp.float32)

    def conv(inp, w, stride, pad):
        return jax.lax.conv_general_dilated(inp, w, (stride, stride), pad,
                                            dimension_numbers=dn,
                                            precision=prec)

    x = jnp.transpose(x_nchw, (0, 2, 3, 1))
    for p in raw_params:
        s = p["stride"]
        w1 = q(p["w1"] * p["s1"][None, None, None, :])
        out = conv(q(x), w1, s, [(1, 1), (1, 1)]) + p["b1"][None, None, None, :]
        out = jnp.maximum(out, 0.0)
        w2 = q(p["w2"] * p["s2"][None, None, None, :])
        out = conv(q(out), w2, 1, [(1, 1), (1, 1)]) + p["b2"][None, None, None, :]
        if p["downsample"] is not None:
            d = p["downsample"]
            wd = q(d["w"] * d["s"][None, :])[None, None, :, :]
            ident = conv(q(x), wd, s, [(0, 0), (0, 0)]) + d["b"][None, None, None, :]
        else:
            ident = x
        x = jnp.maximum(out + ident, 0.0)
    return jnp.transpose(x, (0, 3, 1, 2))


# ----------------------------------------------------------------------------
if __name__ == "__main__":
    key = jax.random.PRNGKey(0)
    key, xk = jax.random.split(key)

    # _make_layer(BasicBlock, inplanes=4, planes=8, blocks=2, stride=2, option='A')
    N, C, H, W = 2, 4, 16, 16
    PLANES, BLOCKS, STRIDE = 8, 2, 2
    x_nchw = jax.random.normal(xk, (N, C, H, W), jnp.float32)  # PyTorch layout

    raw = init_make_layer_params(key, inplanes=C, planes=PLANES,
                                 blocks=BLOCKS, stride=STRIDE, option="A")
    # Offline prep: fold BN, pad channels to 128 lanes, bf16 weights,
    # stride-2 -> space-to-depth rewrite, downsample fused as extra columns.
    prepped = [prepare_block_params(p) for p in raw]

    fwd = jax.jit(lambda xin: make_layer_nchw(xin, prepped, PLANES))
    out_nchw = fwd(x_nchw)
    jax.block_until_ready(out_nchw)

    ref_nchw = ref_forward_nchw(x_nchw, raw)
    np.testing.assert_allclose(np.asarray(out_nchw), np.asarray(ref_nchw),
                               rtol=1e-2, atol=1e-2)

    print("KERNEL_OK")
</pallas_src>

<mosaic_0001>
module attributes {stable_mosaic.version = 11 : i64} {
  func.func @_layer_kernel(%arg0: i32, %arg1: memref<1x9x9x128xf32, #tpu.memory_space<vmem>>, %arg2: memref<512x256xbf16, #tpu.memory_space<vmem>>, %arg3: memref<1x256xf32, #tpu.memory_space<vmem>>, %arg4: memref<1152x128xbf16, #tpu.memory_space<vmem>>, %arg5: memref<1x128xf32, #tpu.memory_space<vmem>>, %arg6: memref<1152x128xbf16, #tpu.memory_space<vmem>>, %arg7: memref<1x128xf32, #tpu.memory_space<vmem>>, %arg8: memref<1152x128xbf16, #tpu.memory_space<vmem>>, %arg9: memref<1x128xf32, #tpu.memory_space<vmem>>, %arg10: memref<1x8x8x128xf32, #tpu.memory_space<vmem>>, %arg11: memref<64x1152xbf16, #tpu.memory_space<vmem>>, %arg12: memref<10x10x128xf32, #tpu.memory_space<vmem>>, %arg13: memref<10x10x128xf32, #tpu.memory_space<vmem>>) attributes {dimension_semantics = [#tpu.dimension_semantics<parallel>], iteration_bounds = array<i64: 2>, scalar_prefetch = 0 : i64, scratch_operands = 3 : i64, tpu.core_type = #tpu.core_type<tc>, window_params = [{transform_indices = @transform_0, window_bounds = array<i64: 1, 9, 9, 128>}, {pipeline_mode = #tpu.pipeline_mode<synchronous>, transform_indices = @transform_1, window_bounds = array<i64: 512, 256>}, {pipeline_mode = #tpu.pipeline_mode<synchronous>, transform_indices = @transform_2, window_bounds = array<i64: 1, 256>}, {pipeline_mode = #tpu.pipeline_mode<synchronous>, transform_indices = @transform_3, window_bounds = array<i64: 1152, 128>}, {pipeline_mode = #tpu.pipeline_mode<synchronous>, transform_indices = @transform_4, window_bounds = array<i64: 1, 128>}, {pipeline_mode = #tpu.pipeline_mode<synchronous>, transform_indices = @transform_5, window_bounds = array<i64: 1152, 128>}, {pipeline_mode = #tpu.pipeline_mode<synchronous>, transform_indices = @transform_6, window_bounds = array<i64: 1, 128>}, {pipeline_mode = #tpu.pipeline_mode<synchronous>, transform_indices = @transform_7, window_bounds = array<i64: 1152, 128>}, {pipeline_mode = #tpu.pipeline_mode<synchronous>, transform_indices = @transform_8, window_bounds = array<i64: 1, 128>}, {transform_indices = @transform_9, window_bounds = array<i64: 1, 8, 8, 128>}]} {
    %cst = arith.constant 0.000000e+00 : f32
    %0 = vector.broadcast %cst : f32 to vector<1x10x128xf32>
    %cst_0 = arith.constant 0.000000e+00 : f32
    %1 = vector.broadcast %cst_0 : f32 to vector<10x1x128xf32>
    %c0 = arith.constant 0 : index
    %c0_1 = arith.constant 0 : index
    %c0_2 = arith.constant 0 : index
    %2 = vector.load %arg12[%c0, %c0_1, %c0_2] : memref<10x10x128xf32, #tpu.memory_space<vmem>>, vector<1x10x128xf32>
    tpu.vector_store %arg12[%c0, %c0_1, %c0_2], %0 {strides = array<i32>} : memref<10x10x128xf32, #tpu.memory_space<vmem>>, vector<1x10x128xf32>,
    %c9 = arith.constant 9 : index
    %c0_3 = arith.constant 0 : index
    %c0_4 = arith.constant 0 : index
    %3 = vector.load %arg12[%c9, %c0_3, %c0_4] : memref<10x10x128xf32, #tpu.memory_space<vmem>>, vector<1x10x128xf32>
    tpu.vector_store %arg12[%c9, %c0_3, %c0_4], %0 {strides = array<i32>} : memref<10x10x128xf32, #tpu.memory_space<vmem>>, vector<1x10x128xf32>,
    %c0_5 = arith.constant 0 : index
    %c0_6 = arith.constant 0 : index
    %c0_7 = arith.constant 0 : index
    %4 = vector.load %arg12[%c0_5, %c0_6, %c0_7] : memref<10x10x128xf32, #tpu.memory_space<vmem>>, vector<10x1x128xf32>
    tpu.vector_store %arg12[%c0_5, %c0_6, %c0_7], %1 {strides = array<i32>} : memref<10x10x128xf32, #tpu.memory_space<vmem>>, vector<10x1x128xf32>,
    %c0_8 = arith.constant 0 : index
    %c9_9 = arith.constant 9 : index
    %c0_10 = arith.constant 0 : index
    %5 = vector.load %arg12[%c0_8, %c9_9, %c0_10] : memref<10x10x128xf32, #tpu.memory_space<vmem>>, vector<10x1x128xf32>
    tpu.vector_store %arg12[%c0_8, %c9_9, %c0_10], %1 {strides = array<i32>} : memref<10x10x128xf32, #tpu.memory_space<vmem>>, vector<10x1x128xf32>,
    %cst_11 = arith.constant 0.000000e+00 : f32
    %6 = vector.broadcast %cst_11 : f32 to vector<1x10x128xf32>
    %cst_12 = arith.constant 0.000000e+00 : f32
    %7 = vector.broadcast %cst_12 : f32 to vector<10x1x128xf32>
    %c0_13 = arith.constant 0 : index
    %c0_14 = arith.constant 0 : index
    %c0_15 = arith.constant 0 : index
    %8 = vector.load %arg13[%c0_13, %c0_14, %c0_15] : memref<10x10x128xf32, #tpu.memory_space<vmem>>, vector<1x10x128xf32>
    tpu.vector_store %arg13[%c0_13, %c0_14, %c0_15], %6 {strides = array<i32>} : memref<10x10x128xf32, #tpu.memory_space<vmem>>, vector<1x10x128xf32>,
    %c9_16 = arith.constant 9 : index
    %c0_17 = arith.constant 0 : index
    %c0_18 = arith.constant 0 : index
    %9 = vector.load %arg13[%c9_16, %c0_17, %c0_18] : memref<10x10x128xf32, #tpu.memory_space<vmem>>, vector<1x10x128xf32>
    tpu.vector_store %arg13[%c9_16, %c0_17, %c0_18], %6 {strides = array<i32>} : memref<10x10x128xf32, #tpu.memory_space<vmem>>, vector<1x10x128xf32>,
    %c0_19 = arith.constant 0 : index
    %c0_20 = arith.constant 0 : index
    %c0_21 = arith.constant 0 : index
    %10 = vector.load %arg13[%c0_19, %c0_20, %c0_21] : memref<10x10x128xf32, #tpu.memory_space<vmem>>, vector<10x1x128xf32>
    tpu.vector_store %arg13[%c0_19, %c0_20, %c0_21], %7 {strides = array<i32>} : memref<10x10x128xf32, #tpu.memory_space<vmem>>, vector<10x1x128xf32>,
    %c0_22 = arith.constant 0 : index
    %c9_23 = arith.constant 9 : index
    %c0_24 = arith.constant 0 : index
    %11 = vector.load %arg13[%c0_22, %c9_23, %c0_24] : memref<10x10x128xf32, #tpu.memory_space<vmem>>, vector<10x1x128xf32>
    tpu.vector_store %arg13[%c0_22, %c9_23, %c0_24], %7 {strides = array<i32>} : memref<10x10x128xf32, #tpu.memory_space<vmem>>, vector<10x1x128xf32>,
    %c0_25 = arith.constant 0 : index
    %c0_26 = arith.constant 0 : index
    %c0_27 = arith.constant 0 : index
    %c0_28 = arith.constant 0 : index
    %12 = vector.load %arg1[%c0_25, %c0_26, %c0_27, %c0_28] : memref<1x9x9x128xf32, #tpu.memory_space<vmem>>, vector<1x8x8x128xf32>
    %13 = vector.shape_cast %12 : vector<1x8x8x128xf32> to vector<8x8x128xf32>
    %14 = vector.shape_cast %13 : vector<8x8x128xf32> to vector<64x128xf32>
    %15 = arith.truncf %14 : vector<64x128xf32> to vector<64x128xbf16>
    %c0_29 = arith.constant 0 : index
    %c0_30 = arith.constant 0 : index
    %16 = vector.load %arg11[%c0_29, %c0_30] : memref<64x1152xbf16, #tpu.memory_space<vmem>>, vector<64x128xbf16>
    tpu.vector_store %arg11[%c0_29, %c0_30], %15 {strides = array<i32>} : memref<64x1152xbf16, #tpu.memory_space<vmem>>, vector<64x128xbf16>,
    %c0_31 = arith.constant 0 : index
    %c0_32 = arith.constant 0 : index
    %c1 = arith.constant 1 : index
    %c0_33 = arith.constant 0 : index
    %17 = vector.load %arg1[%c0_31, %c0_32, %c1, %c0_33] : memref<1x9x9x128xf32, #tpu.memory_space<vmem>>, vector<1x8x8x128xf32>
    %18 = vector.shape_cast %17 : vector<1x8x8x128xf32> to vector<8x8x128xf32>
    %19 = vector.shape_cast %18 : vector<8x8x128xf32> to vector<64x128xf32>
    %20 = arith.truncf %19 : vector<64x128xf32> to vector<64x128xbf16>
    %c0_34 = arith.constant 0 : index
    %c128 = arith.constant 128 : index
    %21 = vector.load %arg11[%c0_34, %c128] : memref<64x1152xbf16, #tpu.memory_space<vmem>>, vector<64x128xbf16>
    tpu.vector_store %arg11[%c0_34, %c128], %20 {strides = array<i32>} : memref<64x1152xbf16, #tpu.memory_space<vmem>>, vector<64x128xbf16>,
    %c0_35 = arith.constant 0 : index
    %c1_36 = arith.constant 1 : index
    %c0_37 = arith.constant 0 : index
    %c0_38 = arith.constant 0 : index
    %22 = vector.load %arg1[%c0_35, %c1_36, %c0_37, %c0_38] : memref<1x9x9x128xf32, #tpu.memory_space<vmem>>, vector<1x8x8x128xf32>
    %23 = vector.shape_cast %22 : vector<1x8x8x128xf32> to vector<8x8x128xf32>
    %24 = vector.shape_cast %23 : vector<8x8x128xf32> to vector<64x128xf32>
    %25 = arith.truncf %24 : vector<64x128xf32> to vector<64x128xbf16>
    %c0_39 = arith.constant 0 : index
    %c256 = arith.constant 256 : index
    %26 = vector.load %arg11[%c0_39, %c256] : memref<64x1152xbf16, #tpu.memory_space<vmem>>, vector<64x128xbf16>
    tpu.vector_store %arg11[%c0_39, %c256], %25 {strides = array<i32>} : memref<64x1152xbf16, #tpu.memory_space<vmem>>, vector<64x128xbf16>,
    %c0_40 = arith.constant 0 : index
    %c1_41 = arith.constant 1 : index
    %c1_42 = arith.constant 1 : index
    %c0_43 = arith.constant 0 : index
    %27 = vector.load %arg1[%c0_40, %c1_41, %c1_42, %c0_43] : memref<1x9x9x128xf32, #tpu.memory_space<vmem>>, vector<1x8x8x128xf32>
    %28 = vector.shape_cast %27 : vector<1x8x8x128xf32> to vector<8x8x128xf32>
    %29 = vector.shape_cast %28 : vector<8x8x128xf32> to vector<64x128xf32>
    %30 = arith.truncf %29 : vector<64x128xf32> to vector<64x128xbf16>
    %c0_44 = arith.constant 0 : index
    %c384 = arith.constant 384 : index
    %31 = vector.load %arg11[%c0_44, %c384] : memref<64x1152xbf16, #tpu.memory_space<vmem>>, vector<64x128xbf16>
    tpu.vector_store %arg11[%c0_44, %c384], %30 {strides = array<i32>} : memref<64x1152xbf16, #tpu.memory_space<vmem>>, vector<64x128xbf16>,
    %c0_45 = arith.constant 0 : index
    %c0_46 = arith.constant 0 : index
    %32 = vector.load %arg11[%c0_45, %c0_46] : memref<64x1152xbf16, #tpu.memory_space<vmem>>, vector<64x512xbf16>
    %c0_47 = arith.constant 0 : index
    %c0_48 = arith.constant 0 : index
    %33 = vector.load %arg2[%c0_47, %c0_48] : memref<512x256xbf16, #tpu.memory_space<vmem>>, vector<512x256xbf16>
    %cst_49 = arith.constant dense<0.000000e+00> : vector<64x256xf32>
    %34 = tpu.matmul %32, %33, %cst_49 {dimension_numbers = #tpu.dot_dimension_numbers<[1], [0], [0], [1], [0, 0, 1, 1], [], []>} : vector<64x512xbf16>, vector<512x256xbf16>, vector<64x256xf32> -> vector<64x256xf32>
    %c0_50 = arith.constant 0 : index
    %c0_51 = arith.constant 0 : index
    %35 = vector.load %arg3[%c0_50, %c0_51] : memref<1x256xf32, #tpu.memory_space<vmem>>, vector<1x256xf32>
    %36 = vector.broadcast %35 : vector<1x256xf32> to vector<64x256xf32>
    %37 = arith.addf %34, %36 : vector<64x256xf32>
    %38 = vector.extract_strided_slice %37 {offsets = [0, 0], sizes = [64, 128], strides = [1, 1]} : vector<64x256xf32> to vector<64x128xf32>
    %cst_52 = arith.constant 0.000000e+00 : f32
    %39 = vector.broadcast %cst_52 : f32 to vector<64x128xf32>
    %40 = arith.maximumf %38, %39 : vector<64x128xf32>
    %41 = vector.extract_strided_slice %37 {offsets = [0, 128], sizes = [64, 128], strides = [1, 1]} : vector<64x256xf32> to vector<64x128xf32>
    %42 = vector.shape_cast %40 : vector<64x128xf32> to vector<8x8x128xf32>
    %c1_53 = arith.constant 1 : index
    %c1_54 = arith.constant 1 : index
    %c0_55 = arith.constant 0 : index
    %43 = vector.load %arg12[%c1_53, %c1_54, %c0_55] : memref<10x10x128xf32, #tpu.memory_space<vmem>>, vector<8x8x128xf32>
    tpu.vector_store %arg12[%c1_53, %c1_54, %c0_55], %42 {strides = array<i32>} : memref<10x10x128xf32, #tpu.memory_space<vmem>>, vector<8x8x128xf32>,
    %c0_56 = arith.constant 0 : index
    %c0_57 = arith.constant 0 : index
    %c0_58 = arith.constant 0 : index
    %44 = vector.load %arg12[%c0_56, %c0_57, %c0_58] : memref<10x10x128xf32, #tpu.memory_space<vmem>>, vector<8x8x128xf32>
    %45 = vector.shape_cast %44 : vector<8x8x128xf32> to vector<64x128xf32>
    %46 = arith.truncf %45 : vector<64x128xf32> to vector<64x128xbf16>
    %c0_59 = arith.constant 0 : index
    %c0_60 = arith.constant 0 : index
    %47 = vector.load %arg11[%c0_59, %c0_60] : memref<64x1152xbf16, #tpu.memory_space<vmem>>, vector<64x128xbf16>
    tpu.vector_store %arg11[%c0_59, %c0_60], %46 {strides = array<i32>} : memref<64x1152xbf16, #tpu.memory_space<vmem>>, vector<64x128xbf16>,
    %c0_61 = arith.constant 0 : index
    %c1_62 = arith.constant 1 : index
    %c0_63 = arith.constant 0 : index
    %48 = vector.load %arg12[%c0_61, %c1_62, %c0_63] : memref<10x10x128xf32, #tpu.memory_space<vmem>>, vector<8x8x128xf32>
    %49 = vector.shape_cast %48 : vector<8x8x128xf32> to vector<64x128xf32>
    %50 = arith.truncf %49 : vector<64x128xf32> to vector<64x128xbf16>
    %c0_64 = arith.constant 0 : index
    %c128_65 = arith.constant 128 : index
    %51 = vector.load %arg11[%c0_64, %c128_65] : memref<64x1152xbf16, #tpu.memory_space<vmem>>, vector<64x128xbf16>
    tpu.vector_store %arg11[%c0_64, %c128_65], %50 {strides = array<i32>} : memref<64x1152xbf16, #tpu.memory_space<vmem>>, vector<64x128xbf16>,
    %c0_66 = arith.constant 0 : index
    %c2 = arith.constant 2 : index
    %c0_67 = arith.constant 0 : index
    %52 = vector.load %arg12[%c0_66, %c2, %c0_67] : memref<10x10x128xf32, #tpu.memory_space<vmem>>, vector<8x8x128xf32>
    %53 = vector.shape_cast %52 : vector<8x8x128xf32> to vector<64x128xf32>
    %54 = arith.truncf %53 : vector<64x128xf32> to vector<64x128xbf16>
    %c0_68 = arith.constant 0 : index
    %c256_69 = arith.constant 256 : index
    %55 = vector.load %arg11[%c0_68, %c256_69] : memref<64x1152xbf16, #tpu.memory_space<vmem>>, vector<64x128xbf16>
    tpu.vector_store %arg11[%c0_68, %c256_69], %54 {strides = array<i32>} : memref<64x1152xbf16, #tpu.memory_space<vmem>>, vector<64x128xbf16>,
    %c1_70 = arith.constant 1 : index
    %c0_71 = arith.constant 0 : index
    %c0_72 = arith.constant 0 : index
    %56 = vector.load %arg12[%c1_70, %c0_71, %c0_72] : memref<10x10x128xf32, #tpu.memory_space<vmem>>, vector<8x8x128xf32>
    %57 = vector.shape_cast %56 : vector<8x8x128xf32> to vector<64x128xf32>
    %58 = arith.truncf %57 : vector<64x128xf32> to vector<64x128xbf16>
    %c0_73 = arith.constant 0 : index
    %c384_74 = arith.constant 384 : index
    %59 = vector.load %arg11[%c0_73, %c384_74] : memref<64x1152xbf16, #tpu.memory_space<vmem>>, vector<64x128xbf16>
    tpu.vector_store %arg11[%c0_73, %c384_74], %58 {strides = array<i32>} : memref<64x1152xbf16, #tpu.memory_space<vmem>>, vector<64x128xbf16>,
    %c1_75 = arith.constant 1 : index
    %c1_76 = arith.constant 1 : index
    %c0_77 = arith.constant 0 : index
    %60 = vector.load %arg12[%c1_75, %c1_76, %c0_77] : memref<10x10x128xf32, #tpu.memory_space<vmem>>, vector<8x8x128xf32>
    %61 = vector.shape_cast %60 : vector<8x8x128xf32> to vector<64x128xf32>
    %62 = arith.truncf %61 : vector<64x128xf32> to vector<64x128xbf16>
    %c0_78 = arith.constant 0 : index
    %c512 = arith.constant 512 : index
    %63 = vector.load %arg11[%c0_78, %c512] : memref<64x1152xbf16, #tpu.memory_space<vmem>>, vector<64x128xbf16>
    tpu.vector_store %arg11[%c0_78, %c512], %62 {strides = array<i32>} : memref<64x1152xbf16, #tpu.memory_space<vmem>>, vector<64x128xbf16>,
    %c1_79 = arith.constant 1 : index
    %c2_80 = arith.constant 2 : index
    %c0_81 = arith.constant 0 : index
    %64 = vector.load %arg12[%c1_79, %c2_80, %c0_81] : memref<10x10x128xf32, #tpu.memory_space<vmem>>, vector<8x8x128xf32>
    %65 = vector.shape_cast %64 : vector<8x8x128xf32> to vector<64x128xf32>
    %66 = arith.truncf %65 : vector<64x128xf32> to vector<64x128xbf16>
    %c0_82 = arith.constant 0 : index
    %c640 = arith.constant 640 : index
    %67 = vector.load %arg11[%c0_82, %c640] : memref<64x1152xbf16, #tpu.memory_space<vmem>>, vector<64x128xbf16>
    tpu.vector_store %arg11[%c0_82, %c640], %66 {strides = array<i32>} : memref<64x1152xbf16, #tpu.memory_space<vmem>>, vector<64x128xbf16>,
    %c2_83 = arith.constant 2 : index
    %c0_84 = arith.constant 0 : index
    %c0_85 = arith.constant 0 : index
    %68 = vector.load %arg12[%c2_83, %c0_84, %c0_85] : memref<10x10x128xf32, #tpu.memory_space<vmem>>, vector<8x8x128xf32>
    %69 = vector.shape_cast %68 : vector<8x8x128xf32> to vector<64x128xf32>
    %70 = arith.truncf %69 : vector<64x128xf32> to vector<64x128xbf16>
    %c0_86 = arith.constant 0 : index
    %c768 = arith.constant 768 : index
    %71 = vector.load %arg11[%c0_86, %c768] : memref<64x1152xbf16, #tpu.memory_space<vmem>>, vector<64x128xbf16>
    tpu.vector_store %arg11[%c0_86, %c768], %70 {strides = array<i32>} : memref<64x1152xbf16, #tpu.memory_space<vmem>>, vector<64x128xbf16>,
    %c2_87 = arith.constant 2 : index
    %c1_88 = arith.constant 1 : index
    %c0_89 = arith.constant 0 : index
    %72 = vector.load %arg12[%c2_87, %c1_88, %c0_89] : memref<10x10x128xf32, #tpu.memory_space<vmem>>, vector<8x8x128xf32>
    %73 = vector.shape_cast %72 : vector<8x8x128xf32> to vector<64x128xf32>
    %74 = arith.truncf %73 : vector<64x128xf32> to vector<64x128xbf16>
    %c0_90 = arith.constant 0 : index
    %c896 = arith.constant 896 : index
    %75 = vector.load %arg11[%c0_90, %c896] : memref<64x1152xbf16, #tpu.memory_space<vmem>>, vector<64x128xbf16>
    tpu.vector_store %arg11[%c0_90, %c896], %74 {strides = array<i32>} : memref<64x1152xbf16, #tpu.memory_space<vmem>>, vector<64x128xbf16>,
    %c2_91 = arith.constant 2 : index
    %c2_92 = arith.constant 2 : index
    %c0_93 = arith.constant 0 : index
    %76 = vector.load %arg12[%c2_91, %c2_92, %c0_93] : memref<10x10x128xf32, #tpu.memory_space<vmem>>, vector<8x8x128xf32>
    %77 = vector.shape_cast %76 : vector<8x8x128xf32> to vector<64x128xf32>
    %78 = arith.truncf %77 : vector<64x128xf32> to vector<64x128xbf16>
    %c0_94 = arith.constant 0 : index
    %c1024 = arith.constant 1024 : index
    %79 = vector.load %arg11[%c0_94, %c1024] : memref<64x1152xbf16, #tpu.memory_space<vmem>>, vector<64x128xbf16>
    tpu.vector_store %arg11[%c0_94, %c1024], %78 {strides = array<i32>} : memref<64x1152xbf16, #tpu.memory_space<vmem>>, vector<64x128xbf16>,
    %c0_95 = arith.constant 0 : index
    %c0_96 = arith.constant 0 : index
    %80 = vector.load %arg11[%c0_95, %c0_96] : memref<64x1152xbf16, #tpu.memory_space<vmem>>, vector<64x1152xbf16>
    %c0_97 = arith.constant 0 : index
    %c0_98 = arith.constant 0 : index
    %81 = vector.load %arg4[%c0_97, %c0_98] : memref<1152x128xbf16, #tpu.memory_space<vmem>>, vector<1152x128xbf16>
    %cst_99 = arith.constant dense<0.000000e+00> : vector<64x128xf32>
    %82 = tpu.matmul %80, %81, %cst_99 {dimension_numbers = #tpu.dot_dimension_numbers<[1], [0], [0], [1], [0, 0, 1, 1], [], []>} : vector<64x1152xbf16>, vector<1152x128xbf16>, vector<64x128xf32> -> vector<64x128xf32>
    %c0_100 = arith.constant 0 : index
    %c0_101 = arith.constant 0 : index
    %83 = vector.load %arg5[%c0_100, %c0_101] : memref<1x128xf32, #tpu.memory_space<vmem>>, vector<1x128xf32>
    %84 = vector.broadcast %83 : vector<1x128xf32> to vector<64x128xf32>
    %85 = arith.addf %82, %84 : vector<64x128xf32>
    %86 = arith.addf %85, %41 : vector<64x128xf32>
    %cst_102 = arith.constant 0.000000e+00 : f32
    %87 = vector.broadcast %cst_102 : f32 to vector<64x128xf32>
    %88 = arith.maximumf %86, %87 : vector<64x128xf32>
    %89 = vector.shape_cast %88 : vector<64x128xf32> to vector<8x8x128xf32>
    %c1_103 = arith.constant 1 : index
    %c1_104 = arith.constant 1 : index
    %c0_105 = arith.constant 0 : index
    %90 = vector.load %arg13[%c1_103, %c1_104, %c0_105] : memref<10x10x128xf32, #tpu.memory_space<vmem>>, vector<8x8x128xf32>
    tpu.vector_store %arg13[%c1_103, %c1_104, %c0_105], %89 {strides = array<i32>} : memref<10x10x128xf32, #tpu.memory_space<vmem>>, vector<8x8x128xf32>,
    %c0_106 = arith.constant 0 : index
    %c0_107 = arith.constant 0 : index
    %c0_108 = arith.constant 0 : index
    %91 = vector.load %arg13[%c0_106, %c0_107, %c0_108] : memref<10x10x128xf32, #tpu.memory_space<vmem>>, vector<8x8x128xf32>
    %92 = vector.shape_cast %91 : vector<8x8x128xf32> to vector<64x128xf32>
    %93 = arith.truncf %92 : vector<64x128xf32> to vector<64x128xbf16>
    %c0_109 = arith.constant 0 : index
    %c0_110 = arith.constant 0 : index
    %94 = vector.load %arg11[%c0_109, %c0_110] : memref<64x1152xbf16, #tpu.memory_space<vmem>>, vector<64x128xbf16>
    tpu.vector_store %arg11[%c0_109, %c0_110], %93 {strides = array<i32>} : memref<64x1152xbf16, #tpu.memory_space<vmem>>, vector<64x128xbf16>,
    %c0_111 = arith.constant 0 : index
    %c1_112 = arith.constant 1 : index
    %c0_113 = arith.constant 0 : index
    %95 = vector.load %arg13[%c0_111, %c1_112, %c0_113] : memref<10x10x128xf32, #tpu.memory_space<vmem>>, vector<8x8x128xf32>
    %96 = vector.shape_cast %95 : vector<8x8x128xf32> to vector<64x128xf32>
    %97 = arith.truncf %96 : vector<64x128xf32> to vector<64x128xbf16>
    %c0_114 = arith.constant 0 : index
    %c128_115 = arith.constant 128 : index
    %98 = vector.load %arg11[%c0_114, %c128_115] : memref<64x1152xbf16, #tpu.memory_space<vmem>>, vector<64x128xbf16>
    tpu.vector_store %arg11[%c0_114, %c128_115], %97 {strides = array<i32>} : memref<64x1152xbf16, #tpu.memory_space<vmem>>, vector<64x128xbf16>,
    %c0_116 = arith.constant 0 : index
    %c2_117 = arith.constant 2 : index
    %c0_118 = arith.constant 0 : index
    %99 = vector.load %arg13[%c0_116, %c2_117, %c0_118] : memref<10x10x128xf32, #tpu.memory_space<vmem>>, vector<8x8x128xf32>
    %100 = vector.shape_cast %99 : vector<8x8x128xf32> to vector<64x128xf32>
    %101 = arith.truncf %100 : vector<64x128xf32> to vector<64x128xbf16>
    %c0_119 = arith.constant 0 : index
    %c256_120 = arith.constant 256 : index
    %102 = vector.load %arg11[%c0_119, %c256_120] : memref<64x1152xbf16, #tpu.memory_space<vmem>>, vector<64x128xbf16>
    tpu.vector_store %arg11[%c0_119, %c256_120], %101 {strides = array<i32>} : memref<64x1152xbf16, #tpu.memory_space<vmem>>, vector<64x128xbf16>,
    %c1_121 = arith.constant 1 : index
    %c0_122 = arith.constant 0 : index
    %c0_123 = arith.constant 0 : index
    %103 = vector.load %arg13[%c1_121, %c0_122, %c0_123] : memref<10x10x128xf32, #tpu.memory_space<vmem>>, vector<8x8x128xf32>
    %104 = vector.shape_cast %103 : vector<8x8x128xf32> to vector<64x128xf32>
    %105 = arith.truncf %104 : vector<64x128xf32> to vector<64x128xbf16>
    %c0_124 = arith.constant 0 : index
    %c384_125 = arith.constant 384 : index
    %106 = vector.load %arg11[%c0_124, %c384_125] : memref<64x1152xbf16, #tpu.memory_space<vmem>>, vector<64x128xbf16>
    tpu.vector_store %arg11[%c0_124, %c384_125], %105 {strides = array<i32>} : memref<64x1152xbf16, #tpu.memory_space<vmem>>, vector<64x128xbf16>,
    %c1_126 = arith.constant 1 : index
    %c1_127 = arith.constant 1 : index
    %c0_128 = arith.constant 0 : index
    %107 = vector.load %arg13[%c1_126, %c1_127, %c0_128] : memref<10x10x128xf32, #tpu.memory_space<vmem>>, vector<8x8x128xf32>
    %108 = vector.shape_cast %107 : vector<8x8x128xf32> to vector<64x128xf32>
    %109 = arith.truncf %108 : vector<64x128xf32> to vector<64x128xbf16>
    %c0_129 = arith.constant 0 : index
    %c512_130 = arith.constant 512 : index
    %110 = vector.load %arg11[%c0_129, %c512_130] : memref<64x1152xbf16, #tpu.memory_space<vmem>>, vector<64x128xbf16>
    tpu.vector_store %arg11[%c0_129, %c512_130], %109 {strides = array<i32>} : memref<64x1152xbf16, #tpu.memory_space<vmem>>, vector<64x128xbf16>,
    %c1_131 = arith.constant 1 : index
    %c2_132 = arith.constant 2 : index
    %c0_133 = arith.constant 0 : index
    %111 = vector.load %arg13[%c1_131, %c2_132, %c0_133] : memref<10x10x128xf32, #tpu.memory_space<vmem>>, vector<8x8x128xf32>
    %112 = vector.shape_cast %111 : vector<8x8x128xf32> to vector<64x128xf32>
    %113 = arith.truncf %112 : vector<64x128xf32> to vector<64x128xbf16>
    %c0_134 = arith.constant 0 : index
    %c640_135 = arith.constant 640 : index
    %114 = vector.load %arg11[%c0_134, %c640_135] : memref<64x1152xbf16, #tpu.memory_space<vmem>>, vector<64x128xbf16>
    tpu.vector_store %arg11[%c0_134, %c640_135], %113 {strides = array<i32>} : memref<64x1152xbf16, #tpu.memory_space<vmem>>, vector<64x128xbf16>,
    %c2_136 = arith.constant 2 : index
    %c0_137 = arith.constant 0 : index
    %c0_138 = arith.constant 0 : index
    %115 = vector.load %arg13[%c2_136, %c0_137, %c0_138] : memref<10x10x128xf32, #tpu.memory_space<vmem>>, vector<8x8x128xf32>
    %116 = vector.shape_cast %115 : vector<8x8x128xf32> to vector<64x128xf32>
    %117 = arith.truncf %116 : vector<64x128xf32> to vector<64x128xbf16>
    %c0_139 = arith.constant 0 : index
    %c768_140 = arith.constant 768 : index
    %118 = vector.load %arg11[%c0_139, %c768_140] : memref<64x1152xbf16, #tpu.memory_space<vmem>>, vector<64x128xbf16>
    tpu.vector_store %arg11[%c0_139, %c768_140], %117 {strides = array<i32>} : memref<64x1152xbf16, #tpu.memory_space<vmem>>, vector<64x128xbf16>,
    %c2_141 = arith.constant 2 : index
    %c1_142 = arith.constant 1 : index
    %c0_143 = arith.constant 0 : index
    %119 = vector.load %arg13[%c2_141, %c1_142, %c0_143] : memref<10x10x128xf32, #tpu.memory_space<vmem>>, vector<8x8x128xf32>
    %120 = vector.shape_cast %119 : vector<8x8x128xf32> to vector<64x128xf32>
    %121 = arith.truncf %120 : vector<64x128xf32> to vector<64x128xbf16>
    %c0_144 = arith.constant 0 : index
    %c896_145 = arith.constant 896 : index
    %122 = vector.load %arg11[%c0_144, %c896_145] : memref<64x1152xbf16, #tpu.memory_space<vmem>>, vector<64x128xbf16>
    tpu.vector_store %arg11[%c0_144, %c896_145], %121 {strides = array<i32>} : memref<64x1152xbf16, #tpu.memory_space<vmem>>, vector<64x128xbf16>,
    %c2_146 = arith.constant 2 : index
    %c2_147 = arith.constant 2 : index
    %c0_148 = arith.constant 0 : index
    %123 = vector.load %arg13[%c2_146, %c2_147, %c0_148] : memref<10x10x128xf32, #tpu.memory_space<vmem>>, vector<8x8x128xf32>
    %124 = vector.shape_cast %123 : vector<8x8x128xf32> to vector<64x128xf32>
    %125 = arith.truncf %124 : vector<64x128xf32> to vector<64x128xbf16>
    %c0_149 = arith.constant 0 : index
    %c1024_150 = arith.constant 1024 : index
    %126 = vector.load %arg11[%c0_149, %c1024_150] : memref<64x1152xbf16, #tpu.memory_space<vmem>>, vector<64x128xbf16>
    tpu.vector_store %arg11[%c0_149, %c1024_150], %125 {strides = array<i32>} : memref<64x1152xbf16, #tpu.memory_space<vmem>>, vector<64x128xbf16>,
    %c0_151 = arith.constant 0 : index
    %c0_152 = arith.constant 0 : index
    %127 = vector.load %arg11[%c0_151, %c0_152] : memref<64x1152xbf16, #tpu.memory_space<vmem>>, vector<64x1152xbf16>
    %c0_153 = arith.constant 0 : index
    %c0_154 = arith.constant 0 : index
    %128 = vector.load %arg6[%c0_153, %c0_154] : memref<1152x128xbf16, #tpu.memory_space<vmem>>, vector<1152x128xbf16>
    %cst_155 = arith.constant dense<0.000000e+00> : vector<64x128xf32>
    %129 = tpu.matmul %127, %128, %cst_155 {dimension_numbers = #tpu.dot_dimension_numbers<[1], [0], [0], [1], [0, 0, 1, 1], [], []>} : vector<64x1152xbf16>, vector<1152x128xbf16>, vector<64x128xf32> -> vector<64x128xf32>
    %c0_156 = arith.constant 0 : index
    %c0_157 = arith.constant 0 : index
    %130 = vector.load %arg7[%c0_156, %c0_157] : memref<1x128xf32, #tpu.memory_space<vmem>>, vector<1x128xf32>
    %131 = vector.broadcast %130 : vector<1x128xf32> to vector<64x128xf32>
    %132 = arith.addf %129, %131 : vector<64x128xf32>
    %cst_158 = arith.constant 0.000000e+00 : f32
    %133 = vector.broadcast %cst_158 : f32 to vector<64x128xf32>
    %134 = arith.maximumf %132, %133 : vector<64x128xf32>
    %c1_159 = arith.constant 1 : index
    %c1_160 = arith.constant 1 : index
    %c0_161 = arith.constant 0 : index
    %135 = vector.load %arg13[%c1_159, %c1_160, %c0_161] : memref<10x10x128xf32, #tpu.memory_space<vmem>>, vector<8x8x128xf32>
    %136 = vector.shape_cast %135 : vector<8x8x128xf32> to vector<64x128xf32>
    %137 = vector.shape_cast %134 : vector<64x128xf32> to vector<8x8x128xf32>
    %c1_162 = arith.constant 1 : index
    %c1_163 = arith.constant 1 : index
    %c0_164 = arith.constant 0 : index
    %138 = vector.load %arg12[%c1_162, %c1_163, %c0_164] : memref<10x10x128xf32, #tpu.memory_space<vmem>>, vector<8x8x128xf32>
    tpu.vector_store %arg12[%c1_162, %c1_163, %c0_164], %137 {strides = array<i32>} : memref<10x10x128xf32, #tpu.memory_space<vmem>>, vector<8x8x128xf32>,
    %c0_165 = arith.constant 0 : index
    %c0_166 = arith.constant 0 : index
    %c0_167 = arith.constant 0 : index
    %139 = vector.load %arg12[%c0_165, %c0_166, %c0_167] : memref<10x10x128xf32, #tpu.memory_space<vmem>>, vector<8x8x128xf32>
    %140 = vector.shape_cast %139 : vector<8x8x128xf32> to vector<64x128xf32>
    %141 = arith.truncf %140 : vector<64x128xf32> to vector<64x128xbf16>
    %c0_168 = arith.constant 0 : index
    %c0_169 = arith.constant 0 : index
    %142 = vector.load %arg11[%c0_168, %c0_169] : memref<64x1152xbf16, #tpu.memory_space<vmem>>, vector<64x128xbf16>
    tpu.vector_store %arg11[%c0_168, %c0_169], %141 {strides = array<i32>} : memref<64x1152xbf16, #tpu.memory_space<vmem>>, vector<64x128xbf16>,
    %c0_170 = arith.constant 0 : index
    %c1_171 = arith.constant 1 : index
    %c0_172 = arith.constant 0 : index
    %143 = vector.load %arg12[%c0_170, %c1_171, %c0_172] : memref<10x10x128xf32, #tpu.memory_space<vmem>>, vector<8x8x128xf32>
    %144 = vector.shape_cast %143 : vector<8x8x128xf32> to vector<64x128xf32>
    %145 = arith.truncf %144 : vector<64x128xf32> to vector<64x128xbf16>
    %c0_173 = arith.constant 0 : index
    %c128_174 = arith.constant 128 : index
    %146 = vector.load %arg11[%c0_173, %c128_174] : memref<64x1152xbf16, #tpu.memory_space<vmem>>, vector<64x128xbf16>
    tpu.vector_store %arg11[%c0_173, %c128_174], %145 {strides = array<i32>} : memref<64x1152xbf16, #tpu.memory_space<vmem>>, vector<64x128xbf16>,
    %c0_175 = arith.constant 0 : index
    %c2_176 = arith.constant 2 : index
    %c0_177 = arith.constant 0 : index
    %147 = vector.load %arg12[%c0_175, %c2_176, %c0_177] : memref<10x10x128xf32, #tpu.memory_space<vmem>>, vector<8x8x128xf32>
    %148 = vector.shape_cast %147 : vector<8x8x128xf32> to vector<64x128xf32>
    %149 = arith.truncf %148 : vector<64x128xf32> to vector<64x128xbf16>
    %c0_178 = arith.constant 0 : index
    %c256_179 = arith.constant 256 : index
    %150 = vector.load %arg11[%c0_178, %c256_179] : memref<64x1152xbf16, #tpu.memory_space<vmem>>, vector<64x128xbf16>
    tpu.vector_store %arg11[%c0_178, %c256_179], %149 {strides = array<i32>} : memref<64x1152xbf16, #tpu.memory_space<vmem>>, vector<64x128xbf16>,
    %c1_180 = arith.constant 1 : index
    %c0_181 = arith.constant 0 : index
    %c0_182 = arith.constant 0 : index
    %151 = vector.load %arg12[%c1_180, %c0_181, %c0_182] : memref<10x10x128xf32, #tpu.memory_space<vmem>>, vector<8x8x128xf32>
    %152 = vector.shape_cast %151 : vector<8x8x128xf32> to vector<64x128xf32>
    %153 = arith.truncf %152 : vector<64x128xf32> to vector<64x128xbf16>
    %c0_183 = arith.constant 0 : index
    %c384_184 = arith.constant 384 : index
    %154 = vector.load %arg11[%c0_183, %c384_184] : memref<64x1152xbf16, #tpu.memory_space<vmem>>, vector<64x128xbf16>
    tpu.vector_store %arg11[%c0_183, %c384_184], %153 {strides = array<i32>} : memref<64x1152xbf16, #tpu.memory_space<vmem>>, vector<64x128xbf16>,
    %c1_185 = arith.constant 1 : index
    %c1_186 = arith.constant 1 : index
    %c0_187 = arith.constant 0 : index
    %155 = vector.load %arg12[%c1_185, %c1_186, %c0_187] : memref<10x10x128xf32, #tpu.memory_space<vmem>>, vector<8x8x128xf32>
    %156 = vector.shape_cast %155 : vector<8x8x128xf32> to vector<64x128xf32>
    %157 = arith.truncf %156 : vector<64x128xf32> to vector<64x128xbf16>
    %c0_188 = arith.constant 0 : index
    %c512_189 = arith.constant 512 : index
    %158 = vector.load %arg11[%c0_188, %c512_189] : memref<64x1152xbf16, #tpu.memory_space<vmem>>, vector<64x128xbf16>
    tpu.vector_store %arg11[%c0_188, %c512_189], %157 {strides = array<i32>} : memref<64x1152xbf16, #tpu.memory_space<vmem>>, vector<64x128xbf16>,
    %c1_190 = arith.constant 1 : index
    %c2_191 = arith.constant 2 : index
    %c0_192 = arith.constant 0 : index
    %159 = vector.load %arg12[%c1_190, %c2_191, %c0_192] : memref<10x10x128xf32, #tpu.memory_space<vmem>>, vector<8x8x128xf32>
    %160 = vector.shape_cast %159 : vector<8x8x128xf32> to vector<64x128xf32>
    %161 = arith.truncf %160 : vector<64x128xf32> to vector<64x128xbf16>
    %c0_193 = arith.constant 0 : index
    %c640_194 = arith.constant 640 : index
    %162 = vector.load %arg11[%c0_193, %c640_194] : memref<64x1152xbf16, #tpu.memory_space<vmem>>, vector<64x128xbf16>
    tpu.vector_store %arg11[%c0_193, %c640_194], %161 {strides = array<i32>} : memref<64x1152xbf16, #tpu.memory_space<vmem>>, vector<64x128xbf16>,
    %c2_195 = arith.constant 2 : index
    %c0_196 = arith.constant 0 : index
    %c0_197 = arith.constant 0 : index
    %163 = vector.load %arg12[%c2_195, %c0_196, %c0_197] : memref<10x10x128xf32, #tpu.memory_space<vmem>>, vector<8x8x128xf32>
    %164 = vector.shape_cast %163 : vector<8x8x128xf32> to vector<64x128xf32>
    %165 = arith.truncf %164 : vector<64x128xf32> to vector<64x128xbf16>
    %c0_198 = arith.constant 0 : index
    %c768_199 = arith.constant 768 : index
    %166 = vector.load %arg11[%c0_198, %c768_199] : memref<64x1152xbf16, #tpu.memory_space<vmem>>, vector<64x128xbf16>
    tpu.vector_store %arg11[%c0_198, %c768_199], %165 {strides = array<i32>} : memref<64x1152xbf16, #tpu.memory_space<vmem>>, vector<64x128xbf16>,
    %c2_200 = arith.constant 2 : index
    %c1_201 = arith.constant 1 : index
    %c0_202 = arith.constant 0 : index
    %167 = vector.load %arg12[%c2_200, %c1_201, %c0_202] : memref<10x10x128xf32, #tpu.memory_space<vmem>>, vector<8x8x128xf32>
    %168 = vector.shape_cast %167 : vector<8x8x128xf32> to vector<64x128xf32>
    %169 = arith.truncf %168 : vector<64x128xf32> to vector<64x128xbf16>
    %c0_203 = arith.constant 0 : index
    %c896_204 = arith.constant 896 : index
    %170 = vector.load %arg11[%c0_203, %c896_204] : memref<64x1152xbf16, #tpu.memory_space<vmem>>, vector<64x128xbf16>
    tpu.vector_store %arg11[%c0_203, %c896_204], %169 {strides = array<i32>} : memref<64x1152xbf16, #tpu.memory_space<vmem>>, vector<64x128xbf16>,
    %c2_205 = arith.constant 2 : index
    %c2_206 = arith.constant 2 : index
    %c0_207 = arith.constant 0 : index
    %171 = vector.load %arg12[%c2_205, %c2_206, %c0_207] : memref<10x10x128xf32, #tpu.memory_space<vmem>>, vector<8x8x128xf32>
    %172 = vector.shape_cast %171 : vector<8x8x128xf32> to vector<64x128xf32>
    %173 = arith.truncf %172 : vector<64x128xf32> to vector<64x128xbf16>
    %c0_208 = arith.constant 0 : index
    %c1024_209 = arith.constant 1024 : index
    %174 = vector.load %arg11[%c0_208, %c1024_209] : memref<64x1152xbf16, #tpu.memory_space<vmem>>, vector<64x128xbf16>
    tpu.vector_store %arg11[%c0_208, %c1024_209], %173 {strides = array<i32>} : memref<64x1152xbf16, #tpu.memory_space<vmem>>, vector<64x128xbf16>,
    %c0_210 = arith.constant 0 : index
    %c0_211 = arith.constant 0 : index
    %175 = vector.load %arg11[%c0_210, %c0_211] : memref<64x1152xbf16, #tpu.memory_space<vmem>>, vector<64x1152xbf16>
    %c0_212 = arith.constant 0 : index
    %c0_213 = arith.constant 0 : index
    %176 = vector.load %arg8[%c0_212, %c0_213] : memref<1152x128xbf16, #tpu.memory_space<vmem>>, vector<1152x128xbf16>
    %cst_214 = arith.constant dense<0.000000e+00> : vector<64x128xf32>
    %177 = tpu.matmul %175, %176, %cst_214 {dimension_numbers = #tpu.dot_dimension_numbers<[1], [0], [0], [1], [0, 0, 1, 1], [], []>} : vector<64x1152xbf16>, vector<1152x128xbf16>, vector<64x128xf32> -> vector<64x128xf32>
    %c0_215 = arith.constant 0 : index
    %c0_216 = arith.constant 0 : index
    %178 = vector.load %arg9[%c0_215, %c0_216] : memref<1x128xf32, #tpu.memory_space<vmem>>, vector<1x128xf32>
    %179 = vector.broadcast %178 : vector<1x128xf32> to vector<64x128xf32>
    %180 = arith.addf %177, %179 : vector<64x128xf32>
    %181 = arith.addf %180, %136 : vector<64x128xf32>
    %cst_217 = arith.constant 0.000000e+00 : f32
    %182 = vector.broadcast %cst_217 : f32 to vector<64x128xf32>
    %183 = arith.maximumf %181, %182 : vector<64x128xf32>
    %184 = vector.shape_cast %183 : vector<64x128xf32> to vector<8x8x128xf32>
    %c0_218 = arith.constant 0 : index
    %c0_219 = arith.constant 0 : index
    %c0_220 = arith.constant 0 : index
    %c0_221 = arith.constant 0 : index
    %185 = vector.load %arg10[%c0_218, %c0_219, %c0_220, %c0_221] : memref<1x8x8x128xf32, #tpu.memory_space<vmem>>, vector<1x8x8x128xf32>
    %186 = vector.shape_cast %185 : vector<1x8x8x128xf32> to vector<8x8x128xf32>
    %187 = vector.shape_cast %184 : vector<8x8x128xf32> to vector<1x8x8x128xf32>
    tpu.vector_store %arg10[%c0_218, %c0_219, %c0_220, %c0_221], %187 {strides = array<i32>} : memref<1x8x8x128xf32, #tpu.memory_space<vmem>>, vector<1x8x8x128xf32>,
    return
  }
  func.func @transform_0(%arg0: i32) -> (i32, i32, i32, i32) {
    %c0_i32 = arith.constant 0 : i32
    %c0_i32_0 = arith.constant 0 : i32
    %c0_i32_1 = arith.constant 0 : i32
    %c0_i32_2 = arith.constant 0 : i32
    return %arg0, %c0_i32, %c0_i32_0, %c0_i32_1 : i32, i32, i32, i32
  }
  func.func @transform_1(%arg0: i32) -> (i32, i32) {
    %c0_i32 = arith.constant 0 : i32
    %c0_i32_0 = arith.constant 0 : i32
    %c0_i32_1 = arith.constant 0 : i32
    return %c0_i32, %c0_i32_0 : i32, i32
  }
  func.func @transform_2(%arg0: i32) -> (i32, i32) {
    %c0_i32 = arith.constant 0 : i32
    %c0_i32_0 = arith.constant 0 : i32
    %c0_i32_1 = arith.constant 0 : i32
    return %c0_i32, %c0_i32_0 : i32, i32
  }
  func.func @transform_3(%arg0: i32) -> (i32, i32) {
    %c0_i32 = arith.constant 0 : i32
    %c0_i32_0 = arith.constant 0 : i32
    %c0_i32_1 = arith.constant 0 : i32
    return %c0_i32, %c0_i32_0 : i32, i32
  }
  func.func @transform_4(%arg0: i32) -> (i32, i32) {
    %c0_i32 = arith.constant 0 : i32
    %c0_i32_0 = arith.constant 0 : i32
    %c0_i32_1 = arith.constant 0 : i32
    return %c0_i32, %c0_i32_0 : i32, i32
  }
  func.func @transform_5(%arg0: i32) -> (i32, i32) {
    %c0_i32 = arith.constant 0 : i32
    %c0_i32_0 = arith.constant 0 : i32
    %c0_i32_1 = arith.constant 0 : i32
    return %c0_i32, %c0_i32_0 : i32, i32
  }
  func.func @transform_6(%arg0: i32) -> (i32, i32) {
    %c0_i32 = arith.constant 0 : i32
    %c0_i32_0 = arith.constant 0 : i32
    %c0_i32_1 = arith.constant 0 : i32
    return %c0_i32, %c0_i32_0 : i32, i32
  }
  func.func @transform_7(%arg0: i32) -> (i32, i32) {
    %c0_i32 = arith.constant 0 : i32
    %c0_i32_0 = arith.constant 0 : i32
    %c0_i32_1 = arith.constant 0 : i32
    return %c0_i32, %c0_i32_0 : i32, i32
  }
  func.func @transform_8(%arg0: i32) -> (i32, i32) {
    %c0_i32 = arith.constant 0 : i32
    %c0_i32_0 = arith.constant 0 : i32
    %c0_i32_1 = arith.constant 0 : i32
    return %c0_i32, %c0_i32_0 : i32, i32
  }
  func.func @transform_9(%arg0: i32) -> (i32, i32, i32, i32) {
    %c0_i32 = arith.constant 0 : i32
    %c0_i32_0 = arith.constant 0 : i32
    %c0_i32_1 = arith.constant 0 : i32
    %c0_i32_2 = arith.constant 0 : i32
    return %arg0, %c0_i32, %c0_i32_0, %c0_i32_1 : i32, i32, i32, i32
  }
}

</mosaic_0001>

<llo_original>
// kernel: _lambda_.1
$region0: #{_lambda_.1}
  #allocation0 [shape = 'u32[]', space=smem, size = 0x4, offset = 0x4, fixed_abs, tag = 'smem constant byte address 0x4 - core index']
  #allocation1 [shape = 'u32[144,128]{1,0:T(1,128)}', space=vmem, size = 0x12000, scoped, tag = 'internal scratch']
  #allocation2 [shape = 'bf16[64,1152]{1,0:T(16,128)(2,1)}', space=vmem, size = 0x24000, scoped, tag = 'scratch operand']
  #allocation3 [shape = 'f32[10,10,128]{2,1,0:T(8,128)}', space=vmem, size = 0x14000, scoped, tag = 'scratch operand']
  #allocation4 [shape = 'f32[10,10,128]{2,1,0:T(8,128)}', space=vmem, size = 0x14000, scoped, tag = 'scratch operand']
  %s0 = inlined_call_operand.vmem [shape: f32[2,9,9,128], index: 0, kind: input, shape index: {}]
  %s1 = inlined_call_operand.vmem [shape: bf16[512,256], index: 1, kind: input, shape index: {}]
  %s2 = inlined_call_operand.vmem [shape: f32[1,256], index: 2, kind: input, shape index: {}]
  %s3 = inlined_call_operand.vmem [shape: bf16[1152,128], index: 3, kind: input, shape index: {}]
  %s4 = inlined_call_operand.vmem [shape: f32[1,128], index: 4, kind: input, shape index: {}]
  %s5 = inlined_call_operand.vmem [shape: bf16[1152,128], index: 5, kind: input, shape index: {}]
  %s6 = inlined_call_operand.vmem [shape: f32[1,128], index: 6, kind: input, shape index: {}]
  %s7 = inlined_call_operand.vmem [shape: bf16[1152,128], index: 7, kind: input, shape index: {}]
  %s8 = inlined_call_operand.vmem [shape: f32[1,128], index: 8, kind: input, shape index: {}]
  %s9 = inlined_call_operand.vmem [shape: f32[2,8,8,128], index: 9, kind: output, shape index: {}]
  %s10 = sld [smem:[#allocation0]]
  $region69: #{_lambda_.1} parent=0
    _
  %s12 = ssub.s32 1, %s10
  %s13 = scalar_select 0, %s12, %s10
  loop: start=0, step=1, limit=4
  $region2: #{_lambda_.1} parent=0 // loop_pre_header
    _
  $region3: #{_lambda_.1} parent=0 // loop_header
    %s15 = sphi 0, %s19
    %p16 = scmp.ge.s32.totalorder %s15, 4
    %s25 = sphi 0, %s27
    %s28 = sphi 0, %s25
    %s29 = sphi 0, %s28
    %s45 = sphi 0, %s29
    %s49 = sphi 0, %s49
    %s51 = sphi 0, %s49
    %s52 = sphi 0, %s51
    %s66 = sphi 0, %s52
    %s70 = sphi 0, %s70
    %s72 = sphi 0, %s70
    %s73 = sphi 0, %s72
    %s87 = sphi 0, %s73
    %s91 = sphi 0, %s91
    %s93 = sphi 0, %s91
    %s94 = sphi 0, %s93
    %s108 = sphi 0, %s94
    %s112 = sphi 0, %s112
    %s114 = sphi 0, %s112
    %s115 = sphi 0, %s114
    %s129 = sphi 0, %s115
    %s133 = sphi 0, %s133
    %s135 = sphi 0, %s133
    %s136 = sphi 0, %s135
    %s150 = sphi 0, %s136
    %s154 = sphi 0, %s154
    %s156 = sphi 0, %s154
    %s157 = sphi 0, %s156
    %s171 = sphi 0, %s157
    %s175 = sphi 0, %s175
    %s177 = sphi 0, %s175
    %s178 = sphi 0, %s177
    %s192 = sphi 0, %s178
    %s196 = sphi 0, %s196
    %s198 = sphi 0, %s196
    %s199 = sphi 0, %s198
    %s213 = sphi 0, %s199
    %s219 = sphi 0, %s221
    %s222 = sphi 0, %s219
    %s223 = sphi 0, %s222
    %s239 = sphi 0, %s223
  $region4: #{_lambda_.1} parent=0 // loop_header_branch
    %18 = sbr.rel (%p16) target = $region8
  $region5: #{_lambda_.1} parent=0 // loop_body
    %s20 = ssub.s32 %s15, 1
    %s21 = ssub.s32 %s15, 2
    %s22 = sadd.s32 %s15, 1
    %s23 = ssub.s32 %s15, %s22
    %p24 = scmp.eq.s32.totalorder %s23, 0
    %s26 = sadd.s32 %s25, 1
    %s27 = scalar_select %p24, %s25, %s26
    %p30 = pneg %p24
    %p31 = scmp.eq.s32.totalorder %s15, 1
    %p32 = por %p30, %p31
    %p33 = scmp.ne.s32.totalorder %s25, %s28
    %p34 = scmp.eq.s32.totalorder %s15, 0
    %p35 = por %p33, %p34
    %p36 = scmp.ne.s32.totalorder %s25, %s28
    %p37 = scmp.eq.s32.totalorder %s20, 1
    %p38 = por %p36, %p37
    %p39 = scmp.ne.s32.totalorder %s28, %s29
    %p40 = scmp.eq.s32.totalorder %s20, 0
    %p41 = por %p39, %p40
    %p42 = scmp.ne.s32.totalorder %s28, %s29
    %p43 = scmp.eq.s32.totalorder %s21, 1
    %p44 = por %p42, %p43
    %p46 = scmp.ne.s32.totalorder %s29, %s45
    %p47 = scmp.eq.s32.totalorder %s21, 0
    %p48 = por %p46, %p47
    %s50 = sadd.s32 %s49, 1
    %p53 = scmp.eq.s32.totalorder %s15, 1
    %p54 = scmp.ne.s32.totalorder %s49, %s51
    %p55 = scmp.eq.s32.totalorder %s15, 0
    %p56 = por %p54, %p55
    %p57 = scmp.ne.s32.totalorder %s49, %s51
    %p58 = scmp.eq.s32.totalorder %s20, 1
    %p59 = por %p57, %p58
    %p60 = scmp.ne.s32.totalorder %s51, %s52
    %p61 = scmp.eq.s32.totalorder %s20, 0
    %p62 = por %p60, %p61
    %p63 = scmp.ne.s32.totalorder %s51, %s52
    %p64 = scmp.eq.s32.totalorder %s21, 1
    %p65 = por %p63, %p64
    %p67 = scmp.ne.s32.totalorder %s52, %s66
    %p68 = scmp.eq.s32.totalorder %s21, 0
    %p69 = por %p67, %p68
    %s71 = sadd.s32 %s70, 1
    %p74 = scmp.eq.s32.totalorder %s15, 1
    %p75 = scmp.ne.s32.totalorder %s70, %s72
    %p76 = scmp.eq.s32.totalorder %s15, 0
    %p77 = por %p75, %p76
    %p78 = scmp.ne.s32.totalorder %s70, %s72
    %p79 = scmp.eq.s32.totalorder %s20, 1
    %p80 = por %p78, %p79
    %p81 = scmp.ne.s32.totalorder %s72, %s73
    %p82 = scmp.eq.s32.totalorder %s20, 0
    %p83 = por %p81, %p82
    %p84 = scmp.ne.s32.totalorder %s72, %s73
    %p85 = scmp.eq.s32.totalorder %s21, 1
    %p86 = por %p84, %p85
    %p88 = scmp.ne.s32.totalorder %s73, %s87
    %p89 = scmp.eq.s32.totalorder %s21, 0
    %p90 = por %p88, %p89
    %s92 = sadd.s32 %s91, 1
    %p95 = scmp.eq.s32.totalorder %s15, 1
    %p96 = scmp.ne.s32.totalorder %s91, %s93
    %p97 = scmp.eq.s32.totalorder %s15, 0
    %p98 = por %p96, %p97
    %p99 = scmp.ne.s32.totalorder %s91, %s93
    %p100 = scmp.eq.s32.totalorder %s20, 1
    %p101 = por %p99, %p100
    %p102 = scmp.ne.s32.totalorder %s93, %s94
    %p103 = scmp.eq.s32.totalorder %s20, 0
    %p104 = por %p102, %p103
    %p105 = scmp.ne.s32.totalorder %s93, %s94
    %p106 = scmp.eq.s32.totalorder %s21, 1
    %p107 = por %p105, %p106
    %p109 = scmp.ne.s32.totalorder %s94, %s108
    %p110 = scmp.eq.s32.totalorder %s21, 0
    %p111 = por %p109, %p110
    %s113 = sadd.s32 %s112, 1
    %p116 = scmp.eq.s32.totalorder %s15, 1
    %p117 = scmp.ne.s32.totalorder %s112, %s114
    %p118 = scmp.eq.s32.totalorder %s15, 0
    %p119 = por %p117, %p118
    %p120 = scmp.ne.s32.totalorder %s112, %s114
    %p121 = scmp.eq.s32.totalorder %s20, 1
    %p122 = por %p120, %p121
    %p123 = scmp.ne.s32.totalorder %s114, %s115
    %p124 = scmp.eq.s32.totalorder %s20, 0
    %p125 = por %p123, %p124
    %p126 = scmp.ne.s32.totalorder %s114, %s115
    %p127 = scmp.eq.s32.totalorder %s21, 1
    %p128 = por %p126, %p127
    %p130 = scmp.ne.s32.totalorder %s115, %s129
    %p131 = scmp.eq.s32.totalorder %s21, 0
    %p132 = por %p130, %p131
    %s134 = sadd.s32 %s133, 1
    %p137 = scmp.eq.s32.totalorder %s15, 1
    %p138 = scmp.ne.s32.totalorder %s133, %s135
    %p139 = scmp.eq.s32.totalorder %s15, 0
    %p140 = por %p138, %p139
    %p141 = scmp.ne.s32.totalorder %s133, %s135
    %p142 = scmp.eq.s32.totalorder %s20, 1
    %p143 = por %p141, %p142
    %p144 = scmp.ne.s32.totalorder %s135, %s136
    %p145 = scmp.eq.s32.totalorder %s20, 0
    %p146 = por %p144, %p145
    %p147 = scmp.ne.s32.totalorder %s135, %s136
    %p148 = scmp.eq.s32.totalorder %s21, 1
    %p149 = por %p147, %p148
    %p151 = scmp.ne.s32.totalorder %s136, %s150
    %p152 = scmp.eq.s32.totalorder %s21, 0
    %p153 = por %p151, %p152
    %s155 = sadd.s32 %s154, 1
    %p158 = scmp.eq.s32.totalorder %s15, 1
    %p159 = scmp.ne.s32.totalorder %s154, %s156
    %p160 = scmp.eq.s32.totalorder %s15, 0
    %p161 = por %p159, %p160
    %p162 = scmp.ne.s32.totalorder %s154, %s156
    %p163 = scmp.eq.s32.totalorder %s20, 1
    %p164 = por %p162, %p163
    %p165 = scmp.ne.s32.totalorder %s156, %s157
    %p166 = scmp.eq.s32.totalorder %s20, 0
    %p167 = por %p165, %p166
    %p168 = scmp.ne.s32.totalorder %s156, %s157
    %p169 = scmp.eq.s32.totalorder %s21, 1
    %p170 = por %p168, %p169
    %p172 = scmp.ne.s32.totalorder %s157, %s171
    %p173 = scmp.eq.s32.totalorder %s21, 0
    %p174 = por %p172, %p173
    %s176 = sadd.s32 %s175, 1
    %p179 = scmp.eq.s32.totalorder %s15, 1
    %p180 = scmp.ne.s32.totalorder %s175, %s177
    %p181 = scmp.eq.s32.totalorder %s15, 0
    %p182 = por %p180, %p181
    %p183 = scmp.ne.s32.totalorder %s175, %s177
    %p184 = scmp.eq.s32.totalorder %s20, 1
    %p185 = por %p183, %p184
    %p186 = scmp.ne.s32.totalorder %s177, %s178
    %p187 = scmp.eq.s32.totalorder %s20, 0
    %p188 = por %p186, %p187
    %p189 = scmp.ne.s32.totalorder %s177, %s178
    %p190 = scmp.eq.s32.totalorder %s21, 1
    %p191 = por %p189, %p190
    %p193 = scmp.ne.s32.totalorder %s178, %s192
    %p194 = scmp.eq.s32.totalorder %s21, 0
    %p195 = por %p193, %p194
    %s197 = sadd.s32 %s196, 1
    %p200 = scmp.eq.s32.totalorder %s15, 1
    %p201 = scmp.ne.s32.totalorder %s196, %s198
    %p202 = scmp.eq.s32.totalorder %s15, 0
    %p203 = por %p201, %p202
    %p204 = scmp.ne.s32.totalorder %s196, %s198
    %p205 = scmp.eq.s32.totalorder %s20, 1
    %p206 = por %p204, %p205
    %p207 = scmp.ne.s32.totalorder %s198, %s199
    %p208 = scmp.eq.s32.totalorder %s20, 0
    %p209 = por %p207, %p208
    %p210 = scmp.ne.s32.totalorder %s198, %s199
    %p211 = scmp.eq.s32.totalorder %s21, 1
    %p212 = por %p210, %p211
    %p214 = scmp.ne.s32.totalorder %s199, %s213
    %p215 = scmp.eq.s32.totalorder %s21, 0
    %p216 = por %p214, %p215
    %s217 = ssub.s32 %s15, %s22
    %p218 = scmp.eq.s32.totalorder %s217, 0
    %s220 = sadd.s32 %s219, 1
    %s221 = scalar_select %p218, %s219, %s220
    %p224 = pneg %p218
    %p225 = scmp.eq.s32.totalorder %s15, 1
    %p226 = por %p224, %p225
    %p227 = scmp.ne.s32.totalorder %s219, %s222
    %p228 = scmp.eq.s32.totalorder %s15, 0
    %p229 = por %p227, %p228
    %p230 = scmp.ne.s32.totalorder %s219, %s222
    %p231 = scmp.eq.s32.totalorder %s20, 1
    %p232 = por %p230, %p231
    %p233 = scmp.ne.s32.totalorder %s222, %s223
    %p234 = scmp.eq.s32.totalorder %s20, 0
    %p235 = por %p233, %p234
    %p236 = scmp.ne.s32.totalorder %s222, %s223
    %p237 = scmp.eq.s32.totalorder %s21, 1
    %p238 = por %p236, %p237
    %p240 = scmp.ne.s32.totalorder %s223, %s239
    %p241 = scmp.eq.s32.totalorder %s21, 0
    %p242 = por %p240, %p241
    %p243 = scmp.le.s32.totalorder 1, %s15
    %p244 = scmp.lt.s32.totalorder %s15, 3
    %p245 = pnand %p243, %p244
    %p246 = pneg %p245
    // Predicated region
    $region9: #{_lambda_.1} parent=5 // pred_check
      _
    $region10: #{_lambda_.1} parent=5 // pred_check_branch
      %248 = sbr.rel (%p245) target = $region12
    $region11: #{_lambda_.1} parent=5 // pred_region
      %s249 = ssub.s32 %s15, 1
      // Predicated region
      $region13: #{_lambda_.1} parent=11 // pred_check
        %p250 = pneg %p62
      $region14: #{_lambda_.1} parent=11 // pred_check_branch
        %252 = sbr.rel (%p250) target = $region16
      $region15: #{_lambda_.1} parent=11 // pred_region
        _
      $region16: #{_lambda_.1} parent=11 // pred_fallthru
        _
      // Predicated region
      $region17: #{_lambda_.1} parent=11 // pred_check
        %p253 = pneg %p83
      $region18: #{_lambda_.1} parent=11 // pred_check_branch
        %255 = sbr.rel (%p253) target = $region20
      $region19: #{_lambda_.1} parent=11 // pred_region
        _
      $region20: #{_lambda_.1} parent=11 // pred_fallthru
        _
      // Predicated region
      $region21: #{_lambda_.1} parent=11 // pred_check
        %p256 = pneg %p104
      $region22: #{_lambda_.1} parent=11 // pred_check_branch
        %258 = sbr.rel (%p256) target = $region24
      $region23: #{_lambda_.1} parent=11 // pred_region
        _
      $region24: #{_lambda_.1} parent=11 // pred_fallthru
        _
      // Predicated region
      $region25: #{_lambda_.1} parent=11 // pred_check
        %p259 = pneg %p125
      $region26: #{_lambda_.1} parent=11 // pred_check_branch
        %261 = sbr.rel (%p259) target = $region28
      $region27: #{_lambda_.1} parent=11 // pred_region
        _
      $region28: #{_lambda_.1} parent=11 // pred_fallthru
        _
      // Predicated region
      $region29: #{_lambda_.1} parent=11 // pred_check
        %p262 = pneg %p146
      $region30: #{_lambda_.1} parent=11 // pred_check_branch
        %264 = sbr.rel (%p262) target = $region32
      $region31: #{_lambda_.1} parent=11 // pred_region
        _
      $region32: #{_lambda_.1} parent=11 // pred_fallthru
        _
      // Predicated region
      $region33: #{_lambda_.1} parent=11 // pred_check
        %p265 = pneg %p167
      $region34: #{_lambda_.1} parent=11 // pred_check_branch
        %267 = sbr.rel (%p265) target = $region36
      $region35: #{_lambda_.1} parent=11 // pred_region
        _
      $region36: #{_lambda_.1} parent=11 // pred_fallthru
        _
      // Predicated region
      $region37: #{_lambda_.1} parent=11 // pred_check
        %p268 = pneg %p188
      $region38: #{_lambda_.1} parent=11 // pred_check_branch
        %270 = sbr.rel (%p268) target = $region40
      $region39: #{_lambda_.1} parent=11 // pred_region
        _
      $region40: #{_lambda_.1} parent=11 // pred_fallthru
        _
      // Predicated region
      $region41: #{_lambda_.1} parent=11 // pred_check
        %p271 = pneg %p209
      $region42: #{_lambda_.1} parent=11 // pred_check_branch
        %273 = sbr.rel (%p271) target = $region44
      $region43: #{_lambda_.1} parent=11 // pred_region
        _
      $region44: #{_lambda_.1} parent=11 // pred_fallthru
        _
    $region12: #{_lambda_.1} parent=5 // pred_fallthru
      _
    %p274 = scmp.lt.s32.totalorder %s15, 2
    // Predicated region
    $region45: #{_lambda_.1} parent=5 // pred_check
      %p275 = pneg %p274
    $region46: #{_lambda_.1} parent=5 // pred_check_branch
      %277 = sbr.rel (%p275) target = $region48
    $region47: #{_lambda_.1} parent=5 // pred_region
      // Predicated region
      $region49: #{_lambda_.1} parent=47 // pred_check
        %p278 = pneg %p35
      $region50: #{_lambda_.1} parent=47 // pred_check_branch
        %280 = sbr.rel (%p278) target = $region52
      $region51: #{_lambda_.1} parent=47 // pred_region
        %p281 = scmp.lt.s32.totalorder %s15, 1
        %s282 = scalar_select %p281, %s15, 1
        %s283 = smul.addr %s282, 18
        %s284 = smul.addr %s283, 8
        %s285 = scalar_lea.vmem %s0, %s284
      $region52: #{_lambda_.1} parent=47 // pred_fallthru
        _
    $region48: #{_lambda_.1} parent=5 // pred_fallthru
      _
    %p286 = scmp.le.s32.totalorder 1, %s15
    %p287 = scmp.lt.s32.totalorder %s15, 3
    %p288 = pnand %p286, %p287
    %p289 = pneg %p288
    // Predicated region
    $region53: #{_lambda_.1} parent=5 // pred_check
      _
    $region54: #{_lambda_.1} parent=5 // pred_check_branch
      %291 = sbr.rel (%p288) target = $region56
    $region55: #{_lambda_.1} parent=5 // pred_region
      %s292 = ssub.s32 %s15, 1
      %p293 = scmp.lt.s32.totalorder %s20, 1
      %s294 = scalar_select %p293, %s20, 1
      %s295 = smul.addr %s294, 18
      %s296 = smul.addr %s295, 8
      %s297 = scalar_lea.vmem %s0, %s296
      %p298 = pneg %p41
      %p299 = pneg %p38
      %p300 = pneg %p62
      %p301 = pneg %p59
      %p302 = pneg %p83
      %p303 = pneg %p80
      %p304 = pneg %p104
      %p305 = pneg %p101
      %p306 = pneg %p125
      %p307 = pneg %p122
      %p308 = pneg %p146
      %p309 = pneg %p143
      %p310 = pneg %p167
      %p311 = pneg %p164
      %p312 = pneg %p188
      %p313 = pneg %p185
      %p314 = pneg %p209
      %p315 = pneg %p206
      %p316 = pneg %p235
      %p317 = pneg %p232
      %p318 = scmp.lt.s32.totalorder %s20, 1
      %s319 = scalar_select %p318, %s20, 1
      %s320 = smul.addr %s319, 8
      %s321 = smul.addr %s320, 8
      %s322 = scalar_lea.vmem %s9, %s321
      %p323 = scmp.lt.s32.totalorder %s20, 1
      %s324 = scalar_select %p323, %s20, 1
      %s325 = smul.addr %s324, 18
      %s326 = smul.addr %s325, 8
      %s327 = scalar_lea.vmem %s0, %s326
      %p328 = scmp.lt.s32.totalorder %s20, 1
      %s329 = scalar_select %p328, %s20, 1
      %s330 = smul.addr %s329, 8
      %s331 = smul.addr %s330, 8
      %s332 = scalar_lea.vmem %s9, %s331
      %334 = vst [vmem:[#allocation3] sm:$0xff] 0.0
      %335 = vst [vmem:[#allocation3 + $0x8] sm:$0x3] 0.0
      %s336 = scalar_lea.vmem [#allocation3], 144
      %337 = vst [vmem:[%s336] sm:$0xff] 0.0
      %338 = vst [vmem:[%s336 + $0x8] sm:$0x3] 0.0
      %339 = vst [vmem:[#allocation3] sm:$0x1] 0.0
      %340 = vst [vmem:[#allocation3 + $0x10] sm:$0x1] 0.0
      %341 = vst [vmem:[#allocation3 + $0x20] sm:$0x1] 0.0
      %342 = vst [vmem:[#allocation3 + $0x30] sm:$0x1] 0.0
      %343 = vst [vmem:[#allocation3 + $0x40] sm:$0x1] 0.0
      %344 = vst [vmem:[#allocation3 + $0x50] sm:$0x1] 0.0
      %345 = vst [vmem:[#allocation3 + $0x60] sm:$0x1] 0.0
      %346 = vst [vmem:[#allocation3 + $0x70] sm:$0x1] 0.0
      %347 = vst [vmem:[#allocation3 + $0x80] sm:$0x1] 0.0
      %348 = vst [vmem:[#allocation3 + $0x90] sm:$0x1] 0.0
      %349 = vst [vmem:[#allocation3 + $0x9] sm:$0x1] 0.0
      %350 = vst [vmem:[#allocation3 + $0x19] sm:$0x1] 0.0
      %351 = vst [vmem:[#allocation3 + $0x29] sm:$0x1] 0.0
      %352 = vst [vmem:[#allocation3 + $0x39] sm:$0x1] 0.0
      %353 = vst [vmem:[#allocation3 + $0x49] sm:$0x1] 0.0
      %354 = vst [vmem:[#allocation3 + $0x59] sm:$0x1] 0.0
      %355 = vst [vmem:[#allocation3 + $0x69] sm:$0x1] 0.0
      %356 = vst [vmem:[#allocation3 + $0x79] sm:$0x1] 0.0
      %357 = vst [vmem:[#allocation3 + $0x89] sm:$0x1] 0.0
      %358 = vst [vmem:[#allocation3 + $0x99] sm:$0x1] 0.0
      %359 = vst [vmem:[#allocation4] sm:$0xff] 0.0
      %360 = vst [vmem:[#allocation4 + $0x8] sm:$0x3] 0.0
      %s361 = scalar_lea.vmem [#allocation4], 144
      %362 = vst [vmem:[%s361] sm:$0xff] 0.0
      %363 = vst [vmem:[%s361 + $0x8] sm:$0x3] 0.0
      %364 = vst [vmem:[#allocation4] sm:$0x1] 0.0
      %365 = vst [vmem:[#allocation4 + $0x10] sm:$0x1] 0.0
      %366 = vst [vmem:[#allocation4 + $0x20] sm:$0x1] 0.0
      %367 = vst [vmem:[#allocation4 + $0x30] sm:$0x1] 0.0
      %368 = vst [vmem:[#allocation4 + $0x40] sm:$0x1] 0.0
      %369 = vst [vmem:[#allocation4 + $0x50] sm:$0x1] 0.0
      %370 = vst [vmem:[#allocation4 + $0x60] sm:$0x1] 0.0
      %371 = vst [vmem:[#allocation4 + $0x70] sm:$0x1] 0.0
      %372 = vst [vmem:[#allocation4 + $0x80] sm:$0x1] 0.0
      %373 = vst [vmem:[#allocation4 + $0x90] sm:$0x1] 0.0
      %374 = vst [vmem:[#allocation4 + $0x9] sm:$0x1] 0.0
      %375 = vst [vmem:[#allocation4 + $0x19] sm:$0x1] 0.0
      %376 = vst [vmem:[#allocation4 + $0x29] sm:$0x1] 0.0
      %377 = vst [vmem:[#allocation4 + $0x39] sm:$0x1] 0.0
      %378 = vst [vmem:[#allocation4 + $0x49] sm:$0x1] 0.0
      %379 = vst [vmem:[#allocation4 + $0x59] sm:$0x1] 0.0
      %380 = vst [vmem:[#allocation4 + $0x69] sm:$0x1] 0.0
      %381 = vst [vmem:[#allocation4 + $0x79] sm:$0x1] 0.0
      %382 = vst [vmem:[#allocation4 + $0x89] sm:$0x1] 0.0
      %383 = vst [vmem:[#allocation4 + $0x99] sm:$0x1] 0.0
      %v384 = vld [vmem:[%s327] sm:$0xff]
      %v385 = vld [vmem:[%s327 + $0x10] sm:$0xff]
      %v386 = vld [vmem:[%s327 + $0x20] sm:$0xff]
      %v387 = vld [vmem:[%s327 + $0x30] sm:$0xff]
      %v388 = vld [vmem:[%s327 + $0x40] sm:$0xff]
      %v389 = vld [vmem:[%s327 + $0x50] sm:$0xff]
      %v390 = vld [vmem:[%s327 + $0x60] sm:$0xff]
      %v391 = vld [vmem:[%s327 + $0x70] sm:$0xff]
      %v392 = vpack.c.bf16 %v385, %v384
      %v393 = vpack.c.bf16 %v387, %v386
      %v394 = vpack.c.bf16 %v389, %v388
      %v395 = vpack.c.bf16 %v391, %v390
      %396 = vst [vmem:[#allocation2] sm:$0xff] %v392
      %397 = vst [vmem:[#allocation2 + $0x48] sm:$0xff] %v393
      %398 = vst [vmem:[#allocation2 + $0x90] sm:$0xff] %v394
      %399 = vst [vmem:[#allocation2 + $0xd8] sm:$0xff] %v395
      %v400 = vld [vmem:[%s327 + $0x1] sm:$0xff]
      %v401 = vld [vmem:[%s327 + $0x11] sm:$0xff]
      %v402 = vld [vmem:[%s327 + $0x21] sm:$0xff]
      %v403 = vld [vmem:[%s327 + $0x31] sm:$0xff]
      %v404 = vld [vmem:[%s327 + $0x41] sm:$0xff]
      %v405 = vld [vmem:[%s327 + $0x51] sm:$0xff]
      %v406 = vld [vmem:[%s327 + $0x61] sm:$0xff]
      %v407 = vld [vmem:[%s327 + $0x71] sm:$0xff]
      %v408 = vpack.c.bf16 %v401, %v400
      %v409 = vpack.c.bf16 %v403, %v402
      %v410 = vpack.c.bf16 %v405, %v404
      %v411 = vpack.c.bf16 %v407, %v406
      %412 = vst [vmem:[#allocation2 + $0x8] sm:$0xff] %v408
      %413 = vst [vmem:[#allocation2 + $0x50] sm:$0xff] %v409
      %414 = vst [vmem:[#allocation2 + $0x98] sm:$0xff] %v410
      %415 = vst [vmem:[#allocation2 + $0xe0] sm:$0xff] %v411
      %s416 = scalar_lea.vmem %s327, 16
      %v417 = vld [vmem:[%s416] sm:$0xff]
      %v418 = vld [vmem:[%s416 + $0x10] sm:$0xff]
      %v419 = vld [vmem:[%s416 + $0x20] sm:$0xff]
      %v420 = vld [vmem:[%s416 + $0x30] sm:$0xff]
      %v421 = vld [vmem:[%s416 + $0x40] sm:$0xff]
      %v422 = vld [vmem:[%s416 + $0x50] sm:$0xff]
      %v423 = vld [vmem:[%s416 + $0x60] sm:$0xff]
      %v424 = vld [vmem:[%s416 + $0x70] sm:$0xff]
      %v425 = vpack.c.bf16 %v418, %v417
      %v426 = vpack.c.bf16 %v420, %v419
      %v427 = vpack.c.bf16 %v422, %v421
      %v428 = vpack.c.bf16 %v424, %v423
      %429 = vst [vmem:[#allocation2 + $0x10] sm:$0xff] %v425
      %430 = vst [vmem:[#allocation2 + $0x58] sm:$0xff] %v426
      %431 = vst [vmem:[#allocation2 + $0xa0] sm:$0xff] %v427
      %432 = vst [vmem:[#allocation2 + $0xe8] sm:$0xff] %v428
      %v433 = vld [vmem:[%s416 + $0x1] sm:$0xff]
      %v434 = vld [vmem:[%s416 + $0x11] sm:$0xff]
      %v435 = vld [vmem:[%s416 + $0x21] sm:$0xff]
      %v436 = vld [vmem:[%s416 + $0x31] sm:$0xff]
      %v437 = vld [vmem:[%s416 + $0x41] sm:$0xff]
      %v438 = vld [vmem:[%s416 + $0x51] sm:$0xff]
      %v439 = vld [vmem:[%s416 + $0x61] sm:$0xff]
      %v440 = vld [vmem:[%s416 + $0x71] sm:$0xff]
      %v441 = vpack.c.bf16 %v434, %v433
      %v442 = vpack.c.bf16 %v436, %v435
      %v443 = vpack.c.bf16 %v438, %v437
      %v444 = vpack.c.bf16 %v440, %v439
      %445 = vst [vmem:[#allocation2 + $0x18] sm:$0xff] %v441
      %446 = vst [vmem:[#allocation2 + $0x60] sm:$0xff] %v442
      %447 = vst [vmem:[#allocation2 + $0xa8] sm:$0xff] %v443
      %448 = vst [vmem:[#allocation2 + $0xf0] sm:$0xff] %v444
      %v449 = vld [vmem:[#allocation2] sm:$0xff]
      %v450 = vld [vmem:[#allocation2 + $0x8] sm:$0xff]
      %v451 = vld [vmem:[#allocation2 + $0x10] sm:$0xff]
      %v452 = vld [vmem:[#allocation2 + $0x18] sm:$0xff]
      %v453 = vld [vmem:[#allocation2 + $0x48] sm:$0xff]
      %v454 = vld [vmem:[#allocation2 + $0x50] sm:$0xff]
      %v455 = vld [vmem:[#allocation2 + $0x58] sm:$0xff]
      %v456 = vld [vmem:[#allocation2 + $0x60] sm:$0xff]
      %v457 = vld [vmem:[#allocation2 + $0x90] sm:$0xff]
      %v458 = vld [vmem:[#allocation2 + $0x98] sm:$0xff]
      %v459 = vld [vmem:[#allocation2 + $0xa0] sm:$0xff]
      %v460 = vld [vmem:[#allocation2 + $0xa8] sm:$0xff]
      %v461 = vld [vmem:[#allocation2 + $0xd8] sm:$0xff]
      %v462 = vld [vmem:[#allocation2 + $0xe0] sm:$0xff]
      %v463 = vld [vmem:[#allocation2 + $0xe8] sm:$0xff]
      %v464 = vld [vmem:[#allocation2 + $0xf0] sm:$0xff]
      %v465 = vld [vmem:[%s1] sm:$0xff]
      %v466 = vld [vmem:[%s1 + $0x8] sm:$0xff]
      %v467 = vld [vmem:[%s1 + $0x10] sm:$0xff]
      %v468 = vld [vmem:[%s1 + $0x18] sm:$0xff]
      %v469 = vld [vmem:[%s1 + $0x20] sm:$0xff]
      %v470 = vld [vmem:[%s1 + $0x28] sm:$0xff]
      %v471 = vld [vmem:[%s1 + $0x30] sm:$0xff]
      %v472 = vld [vmem:[%s1 + $0x38] sm:$0xff]
      %v473 = vld [vmem:[%s1 + $0x40] sm:$0xff]
      %v474 = vld [vmem:[%s1 + $0x48] sm:$0xff]
      %v475 = vld [vmem:[%s1 + $0x50] sm:$0xff]
      %v476 = vld [vmem:[%s1 + $0x58] sm:$0xff]
      %v477 = vld [vmem:[%s1 + $0x60] sm:$0xff]
      %v478 = vld [vmem:[%s1 + $0x68] sm:$0xff]
      %v479 = vld [vmem:[%s1 + $0x70] sm:$0xff]
      %v480 = vld [vmem:[%s1 + $0x78] sm:$0xff]
      %v481 = vld [vmem:[%s1 + $0x80] sm:$0xff]
      %v482 = vld [vmem:[%s1 + $0x88] sm:$0xff]
      %v483 = vld [vmem:[%s1 + $0x90] sm:$0xff]
      %v484 = vld [vmem:[%s1 + $0x98] sm:$0xff]
      %v485 = vld [vmem:[%s1 + $0xa0] sm:$0xff]
      %v486 = vld [vmem:[%s1 + $0xa8] sm:$0xff]
      %v487 = vld [vmem:[%s1 + $0xb0] sm:$0xff]
      %v488 = vld [vmem:[%s1 + $0xb8] sm:$0xff]
      %v489 = vld [vmem:[%s1 + $0xc0] sm:$0xff]
      %v490 = vld [vmem:[%s1 + $0xc8] sm:$0xff]
      %v491 = vld [vmem:[%s1 + $0xd0] sm:$0xff]
      %v492 = vld [vmem:[%s1 + $0xd8] sm:$0xff]
      %v493 = vld [vmem:[%s1 + $0xe0] sm:$0xff]
      %v494 = vld [vmem:[%s1 + $0xe8] sm:$0xff]
      %v495 = vld [vmem:[%s1 + $0xf0] sm:$0xff]
      %v496 = vld [vmem:[%s1 + $0xf8] sm:$0xff]
      %v497 = vld [vmem:[%s1 + $0x100] sm:$0xff]
      %v498 = vld [vmem:[%s1 + $0x108] sm:$0xff]
      %v499 = vld [vmem:[%s1 + $0x110] sm:$0xff]
      %v500 = vld [vmem:[%s1 + $0x118] sm:$0xff]
      %v501 = vld [vmem:[%s1 + $0x120] sm:$0xff]
      %v502 = vld [vmem:[%s1 + $0x128] sm:$0xff]
      %v503 = vld [vmem:[%s1 + $0x130] sm:$0xff]
      %v504 = vld [vmem:[%s1 + $0x138] sm:$0xff]
      %v505 = vld [vmem:[%s1 + $0x140] sm:$0xff]
      %v506 = vld [vmem:[%s1 + $0x148] sm:$0xff]
      %v507 = vld [vmem:[%s1 + $0x150] sm:$0xff]
      %v508 = vld [vmem:[%s1 + $0x158] sm:$0xff]
      %v509 = vld [vmem:[%s1 + $0x160] sm:$0xff]
      %v510 = vld [vmem:[%s1 + $0x168] sm:$0xff]
      %v511 = vld [vmem:[%s1 + $0x170] sm:$0xff]
      %v512 = vld [vmem:[%s1 + $0x178] sm:$0xff]
      %v513 = vld [vmem:[%s1 + $0x180] sm:$0xff]
      %v514 = vld [vmem:[%s1 + $0x188] sm:$0xff]
      %v515 = vld [vmem:[%s1 + $0x190] sm:$0xff]
      %v516 = vld [vmem:[%s1 + $0x198] sm:$0xff]
      %v517 = vld [vmem:[%s1 + $0x1a0] sm:$0xff]
      %v518 = vld [vmem:[%s1 + $0x1a8] sm:$0xff]
      %v519 = vld [vmem:[%s1 + $0x1b0] sm:$0xff]
      %v520 = vld [vmem:[%s1 + $0x1b8] sm:$0xff]
      %v521 = vld [vmem:[%s1 + $0x1c0] sm:$0xff]
      %v522 = vld [vmem:[%s1 + $0x1c8] sm:$0xff]
      %v523 = vld [vmem:[%s1 + $0x1d0] sm:$0xff]
      %v524 = vld [vmem:[%s1 + $0x1d8] sm:$0xff]
      %v525 = vld [vmem:[%s1 + $0x1e0] sm:$0xff]
      %v526 = vld [vmem:[%s1 + $0x1e8] sm:$0xff]
      %v527 = vld [vmem:[%s1 + $0x1f0] sm:$0xff]
      %v528 = vld [vmem:[%s1 + $0x1f8] sm:$0xff]
      %v529 = vld [vmem:[%s2] sm:$0x3]
      %v531 = vlaneseq
      %v532 = vshrl.u32 %v531, 7
      %v533 = vsub.s32 0, %v532
      %v534 = vrot.slane %v529, %v533
      %v535 = vlaneseq
      %v536 = vshrl.u32 %v535, 7
      %v537 = vsub.s32 1, %v536
      %v538 = vrot.slane %v529, %v537
      %v605 = vunpack.c.l.b16 %v465
      %v606 = vunpack.c.h.b16 %v465
      %v607 = vunpack.c.l.b16 %v466
      %v608 = vunpack.c.h.b16 %v466
      %v609 = vunpack.c.l.b16 %v467
      %v610 = vunpack.c.h.b16 %v467
      %v611 = vunpack.c.l.b16 %v468
      %v612 = vunpack.c.h.b16 %v468
      %v613 = vunpack.c.l.b16 %v469
      %v614 = vunpack.c.h.b16 %v469
      %v615 = vunpack.c.l.b16 %v470
      %v616 = vunpack.c.h.b16 %v470
      %v617 = vunpack.c.l.b16 %v471
      %v618 = vunpack.c.h.b16 %v471
      %v619 = vunpack.c.l.b16 %v472
      %v620 = vunpack.c.h.b16 %v472
      %v621 = vunpack.c.l.b16 %v473
      %v622 = vunpack.c.h.b16 %v473
      %v623 = vunpack.c.l.b16 %v474
      %v624 = vunpack.c.h.b16 %v474
      %v625 = vunpack.c.l.b16 %v475
      %v626 = vunpack.c.h.b16 %v475
      %v627 = vunpack.c.l.b16 %v476
      %v628 = vunpack.c.h.b16 %v476
      %v629 = vunpack.c.l.b16 %v477
      %v630 = vunpack.c.h.b16 %v477
      %v631 = vunpack.c.l.b16 %v478
      %v632 = vunpack.c.h.b16 %v478
      %v633 = vunpack.c.l.b16 %v479
      %v634 = vunpack.c.h.b16 %v479
      %v635 = vunpack.c.l.b16 %v480
      %v636 = vunpack.c.h.b16 %v480
      %v637 = vunpack.c.l.b16 %v481
      %v638 = vunpack.c.h.b16 %v481
      %v639 = vunpack.c.l.b16 %v482
      %v640 = vunpack.c.h.b16 %v482
      %v641 = vunpack.c.l.b16 %v483
      %v642 = vunpack.c.h.b16 %v483
      %v643 = vunpack.c.l.b16 %v484
      %v644 = vunpack.c.h.b16 %v484
      %v645 = vunpack.c.l.b16 %v485
      %v646 = vunpack.c.h.b16 %v485
      %v647 = vunpack.c.l.b16 %v486
      %v648 = vunpack.c.h.b16 %v486
      %v649 = vunpack.c.l.b16 %v487
      %v650 = vunpack.c.h.b16 %v487
      %v651 = vunpack.c.l.b16 %v488
      %v652 = vunpack.c.h.b16 %v488
      %v653 = vunpack.c.l.b16 %v489
      %v654 = vunpack.c.h.b16 %v489
      %v655 = vunpack.c.l.b16 %v490
      %v656 = vunpack.c.h.b16 %v490
      %v657 = vunpack.c.l.b16 %v491
      %v658 = vunpack.c.h.b16 %v491
      %v659 = vunpack.c.l.b16 %v492
      %v660 = vunpack.c.h.b16 %v492
      %v661 = vunpack.c.l.b16 %v493
      %v662 = vunpack.c.h.b16 %v493
      %v663 = vunpack.c.l.b16 %v494
      %v664 = vunpack.c.h.b16 %v494
      %v665 = vunpack.c.l.b16 %v495
      %v666 = vunpack.c.h.b16 %v495
      %v667 = vunpack.c.l.b16 %v496
      %v668 = vunpack.c.h.b16 %v496
      %v669 = vunpack.c.l.b16 %v497
      %v670 = vunpack.c.h.b16 %v497
      %v671 = vunpack.c.l.b16 %v498
      %v672 = vunpack.c.h.b16 %v498
      %v673 = vunpack.c.l.b16 %v499
      %v674 = vunpack.c.h.b16 %v499
      %v675 = vunpack.c.l.b16 %v500
      %v676 = vunpack.c.h.b16 %v500
      %v677 = vunpack.c.l.b16 %v501
      %v678 = vunpack.c.h.b16 %v501
      %v679 = vunpack.c.l.b16 %v502
      %v680 = vunpack.c.h.b16 %v502
      %v681 = vunpack.c.l.b16 %v503
      %v682 = vunpack.c.h.b16 %v503
      %v683 = vunpack.c.l.b16 %v504
      %v684 = vunpack.c.h.b16 %v504
      %v685 = vunpack.c.l.b16 %v505
      %v686 = vunpack.c.h.b16 %v505
      %v687 = vunpack.c.l.b16 %v506
      %v688 = vunpack.c.h.b16 %v506
      %v689 = vunpack.c.l.b16 %v507
      %v690 = vunpack.c.h.b16 %v507
      %v691 = vunpack.c.l.b16 %v508
      %v692 = vunpack.c.h.b16 %v508
      %v693 = vunpack.c.l.b16 %v509
      %v694 = vunpack.c.h.b16 %v509
      %v695 = vunpack.c.l.b16 %v510
      %v696 = vunpack.c.h.b16 %v510
      %v697 = vunpack.c.l.b16 %v511
      %v698 = vunpack.c.h.b16 %v511
      %v699 = vunpack.c.l.b16 %v512
      %v700 = vunpack.c.h.b16 %v512
      %v701 = vunpack.c.l.b16 %v513
      %v702 = vunpack.c.h.b16 %v513
      %v703 = vunpack.c.l.b16 %v514
      %v704 = vunpack.c.h.b16 %v514
      %v705 = vunpack.c.l.b16 %v515
      %v706 = vunpack.c.h.b16 %v515
      %v707 = vunpack.c.l.b16 %v516
      %v708 = vunpack.c.h.b16 %v516
      %v709 = vunpack.c.l.b16 %v517
      %v710 = vunpack.c.h.b16 %v517
      %v711 = vunpack.c.l.b16 %v518
      %v712 = vunpack.c.h.b16 %v518
      %v713 = vunpack.c.l.b16 %v519
      %v714 = vunpack.c.h.b16 %v519
      %v715 = vunpack.c.l.b16 %v520
      %v716 = vunpack.c.h.b16 %v520
      %v717 = vunpack.c.l.b16 %v521
      %v718 = vunpack.c.h.b16 %v521
      %v719 = vunpack.c.l.b16 %v522
      %v720 = vunpack.c.h.b16 %v522
      %v721 = vunpack.c.l.b16 %v523
      %v722 = vunpack.c.h.b16 %v523
      %v723 = vunpack.c.l.b16 %v524
      %v724 = vunpack.c.h.b16 %v524
      %v725 = vunpack.c.l.b16 %v525
      %v726 = vunpack.c.h.b16 %v525
      %v727 = vunpack.c.l.b16 %v526
      %v728 = vunpack.c.h.b16 %v526
      %v729 = vunpack.c.l.b16 %v527
      %v730 = vunpack.c.h.b16 %v527
      %v731 = vunpack.c.l.b16 %v528
      %v732 = vunpack.c.h.b16 %v528
      %v733 = vpack.c.b16 %v607, %v605
      %v734 = vpack.c.b16 %v608, %v606
      %v735 = vpack.c.b16 %v611, %v609
      %v736 = vpack.c.b16 %v612, %v610
      %v737 = vpack.c.b16 %v615, %v613
      %v738 = vpack.c.b16 %v616, %v614
      %v739 = vpack.c.b16 %v619, %v617
      %v740 = vpack.c.b16 %v620, %v618
      %v741 = vpack.c.b16 %v623, %v621
      %v742 = vpack.c.b16 %v624, %v622
      %v743 = vpack.c.b16 %v627, %v625
      %v744 = vpack.c.b16 %v628, %v626
      %v745 = vpack.c.b16 %v631, %v629
      %v746 = vpack.c.b16 %v632, %v630
      %v747 = vpack.c.b16 %v635, %v633
      %v748 = vpack.c.b16 %v636, %v634
      %v749 = vpack.c.b16 %v639, %v637
      %v750 = vpack.c.b16 %v640, %v638
      %v751 = vpack.c.b16 %v643, %v641
      %v752 = vpack.c.b16 %v644, %v642
      %v753 = vpack.c.b16 %v647, %v645
      %v754 = vpack.c.b16 %v648, %v646
      %v755 = vpack.c.b16 %v651, %v649
      %v756 = vpack.c.b16 %v652, %v650
      %v757 = vpack.c.b16 %v655, %v653
      %v758 = vpack.c.b16 %v656, %v654
      %v759 = vpack.c.b16 %v659, %v657
      %v760 = vpack.c.b16 %v660, %v658
      %v761 = vpack.c.b16 %v663, %v661
      %v762 = vpack.c.b16 %v664, %v662
      %v763 = vpack.c.b16 %v667, %v665
      %v764 = vpack.c.b16 %v668, %v666
      %v765 = vpack.c.b16 %v671, %v669
      %v766 = vpack.c.b16 %v672, %v670
      %v767 = vpack.c.b16 %v675, %v673
      %v768 = vpack.c.b16 %v676, %v674
      %v769 = vpack.c.b16 %v679, %v677
      %v770 = vpack.c.b16 %v680, %v678
      %v771 = vpack.c.b16 %v683, %v681
      %v772 = vpack.c.b16 %v684, %v682
      %v773 = vpack.c.b16 %v687, %v685
      %v774 = vpack.c.b16 %v688, %v686
      %v775 = vpack.c.b16 %v691, %v689
      %v776 = vpack.c.b16 %v692, %v690
      %v777 = vpack.c.b16 %v695, %v693
      %v778 = vpack.c.b16 %v696, %v694
      %v779 = vpack.c.b16 %v699, %v697
      %v780 = vpack.c.b16 %v700, %v698
      %v781 = vpack.c.b16 %v703, %v701
      %v782 = vpack.c.b16 %v704, %v702
      %v783 = vpack.c.b16 %v707, %v705
      %v784 = vpack.c.b16 %v708, %v706
      %v785 = vpack.c.b16 %v711, %v709
      %v786 = vpack.c.b16 %v712, %v710
      %v787 = vpack.c.b16 %v715, %v713
      %v788 = vpack.c.b16 %v716, %v714
      %v789 = vpack.c.b16 %v719, %v717
      %v790 = vpack.c.b16 %v720, %v718
      %v791 = vpack.c.b16 %v723, %v721
      %v792 = vpack.c.b16 %v724, %v722
      %v793 = vpack.c.b16 %v727, %v725
      %v794 = vpack.c.b16 %v728, %v726
      %v795 = vpack.c.b16 %v731, %v729
      %v796 = vpack.c.b16 %v732, %v730
      %861 = vmatprep.subr.bf16.mxu0 %v734
      %862 = vmatpush1.bf16.msra.mxu0 %v733
      %863 = vmatprep.subr.bf16.mxu0 %v736
      %864 = vmatpush1.bf16.msra.mxu0 %v735
      %865 = vmatprep.subr.bf16.mxu0 %v738
      %866 = vmatpush1.bf16.msra.mxu0 %v737
      %867 = vmatprep.subr.bf16.mxu0 %v740
      %868 = vmatpush1.bf16.msra.mxu0 %v739
      %869 = vmatprep.subr.bf16.mxu0 %v742
      %870 = vmatpush1.bf16.msra.mxu0 %v741
      %871 = vmatprep.subr.bf16.mxu0 %v744
      %872 = vmatpush1.bf16.msra.mxu0 %v743
      %873 = vmatprep.subr.bf16.mxu0 %v746
      %874 = vmatpush1.bf16.msra.mxu0 %v745
      %875 = vmatprep.subr.bf16.mxu0 %v748
      %876 = vmatpush1.bf16.msra.mxu0 %v747
      %877 = vmatprep.subr.bf16.mxu0 %v750
      %878 = vmatpush1.bf16.msra.mxu0 %v749
      %879 = vmatprep.subr.bf16.mxu0 %v752
      %880 = vmatpush1.bf16.msra.mxu0 %v751
      %881 = vmatprep.subr.bf16.mxu0 %v754
      %882 = vmatpush1.bf16.msra.mxu0 %v753
      %883 = vmatprep.subr.bf16.mxu0 %v756
      %884 = vmatpush1.bf16.msra.mxu0 %v755
      %885 = vmatprep.subr.bf16.mxu0 %v758
      %886 = vmatpush1.bf16.msra.mxu0 %v757
      %887 = vmatprep.subr.bf16.mxu0 %v760
      %888 = vmatpush1.bf16.msra.mxu0 %v759
      %889 = vmatprep.subr.bf16.mxu0 %v762
      %890 = vmatpush1.bf16.msra.mxu0 %v761
      %891 = vmatprep.subr.bf16.mxu0 %v764
      %892 = vmatpush1.bf16.msra.mxu0 %v763
      %893 = vmatprep.mubr.bf16.mxu0 %v450
      %894 = vmatmul.mubr.bf16.gmra.mrb[0].mxu0 %v449
      %v895 = vpop.f32.mrb[0].mxu0
      %v896 = vadd.f32 %v534, %v895
      %v897 = vpop.f32.mrb[0].mxu0
      %v898 = vadd.f32 %v538, %v897
      %v899 = vpop.f32.mrb[0].mxu0
      %v900 = vadd.f32 %v534, %v899
      %v901 = vpop.f32.mrb[0].mxu0
      %v902 = vadd.f32 %v538, %v901
      %903 = vmatprep.mubr.bf16.mxu0 %v454
      %904 = vmatmul.mubr.bf16.gmra.mrb[0].mxu0 %v453
      %v905 = vpop.f32.mrb[0].mxu0
      %v906 = vadd.f32 %v534, %v905
      %v907 = vpop.f32.mrb[0].mxu0
      %v908 = vadd.f32 %v538, %v907
      %v909 = vpop.f32.mrb[0].mxu0
      %v910 = vadd.f32 %v534, %v909
      %v911 = vpop.f32.mrb[0].mxu0
      %v912 = vadd.f32 %v538, %v911
      %913 = vmatprep.mubr.bf16.mxu0 %v458
      %914 = vmatmul.mubr.bf16.gmra.mrb[0].mxu0 %v457
      %v915 = vpop.f32.mrb[0].mxu0
      %v916 = vadd.f32 %v534, %v915
      %v917 = vpop.f32.mrb[0].mxu0
      %v918 = vadd.f32 %v538, %v917
      %v919 = vpop.f32.mrb[0].mxu0
      %v920 = vadd.f32 %v534, %v919
      %v921 = vpop.f32.mrb[0].mxu0
      %v922 = vadd.f32 %v538, %v921
      %923 = vmatprep.mubr.bf16.mxu0 %v462
      %924 = vmatmul.mubr.bf16.gmra.mrb[0].mxu0 %v461
      %v925 = vpop.f32.mrb[0].mxu0
      %v926 = vadd.f32 %v534, %v925
      %v927 = vpop.f32.mrb[0].mxu0
      %v928 = vadd.f32 %v538, %v927
      %v929 = vpop.f32.mrb[0].mxu0
      %v930 = vadd.f32 %v534, %v929
      %v931 = vpop.f32.mrb[0].mxu0
      %v932 = vadd.f32 %v538, %v931
      %933 = vdwg.mxu0
      %934 = vmatprep.subr.bf16.mxu0 %v766
      %935 = vmatpush1.bf16.msra.mxu0 %v765
      %936 = vmatprep.subr.bf16.mxu0 %v768
      %937 = vmatpush1.bf16.msra.mxu0 %v767
      %938 = vmatprep.subr.bf16.mxu0 %v770
      %939 = vmatpush1.bf16.msra.mxu0 %v769
      %940 = vmatprep.subr.bf16.mxu0 %v772
      %941 = vmatpush1.bf16.msra.mxu0 %v771
      %942 = vmatprep.subr.bf16.mxu0 %v774
      %943 = vmatpush1.bf16.msra.mxu0 %v773
      %944 = vmatprep.subr.bf16.mxu0 %v776
      %945 = vmatpush1.bf16.msra.mxu0 %v775
      %946 = vmatprep.subr.bf16.mxu0 %v778
      %947 = vmatpush1.bf16.msra.mxu0 %v777
      %948 = vmatprep.subr.bf16.mxu0 %v780
      %949 = vmatpush1.bf16.msra.mxu0 %v779
      %950 = vmatprep.subr.bf16.mxu0 %v782
      %951 = vmatpush1.bf16.msra.mxu0 %v781
      %952 = vmatprep.subr.bf16.mxu0 %v784
      %953 = vmatpush1.bf16.msra.mxu0 %v783
      %954 = vmatprep.subr.bf16.mxu0 %v786
      %955 = vmatpush1.bf16.msra.mxu0 %v785
      %956 = vmatprep.subr.bf16.mxu0 %v788
      %957 = vmatpush1.bf16.msra.mxu0 %v787
      %958 = vmatprep.subr.bf16.mxu0 %v790
      %959 = vmatpush1.bf16.msra.mxu0 %v789
      %960 = vmatprep.subr.bf16.mxu0 %v792
      %961 = vmatpush1.bf16.msra.mxu0 %v791
      %962 = vmatprep.subr.bf16.mxu0 %v794
      %963 = vmatpush1.bf16.msra.mxu0 %v793
      %964 = vmatprep.subr.bf16.mxu0 %v796
      %965 = vmatpush1.bf16.msra.mxu0 %v795
      %966 = vmatprep.mubr.bf16.mxu0 %v452
      %967 = vmatmul.mubr.bf16.gmra.mrb[0].mxu0 %v451
      %v968 = vpop.f32.mrb[0].mxu0
      %v969 = vadd.f32 %v896, %v968
      %v970 = vpop.f32.mrb[0].mxu0
      %v971 = vadd.f32 %v898, %v970
      %v972 = vpop.f32.mrb[0].mxu0
      %v973 = vadd.f32 %v900, %v972
      %v974 = vpop.f32.mrb[0].mxu0
      %v975 = vadd.f32 %v902, %v974
      %976 = vmatprep.mubr.bf16.mxu0 %v456
      %977 = vmatmul.mubr.bf16.gmra.mrb[0].mxu0 %v455
      %v978 = vpop.f32.mrb[0].mxu0
      %v979 = vadd.f32 %v906, %v978
      %v980 = vpop.f32.mrb[0].mxu0
      %v981 = vadd.f32 %v908, %v980
      %v982 = vpop.f32.mrb[0].mxu0
      %v983 = vadd.f32 %v910, %v982
      %v984 = vpop.f32.mrb[0].mxu0
      %v985 = vadd.f32 %v912, %v984
      %986 = vmatprep.mubr.bf16.mxu0 %v460
      %987 = vmatmul.mubr.bf16.gmra.mrb[0].mxu0 %v459
      %v988 = vpop.f32.mrb[0].mxu0
      %v989 = vadd.f32 %v916, %v988
      %v990 = vpop.f32.mrb[0].mxu0
      %v991 = vadd.f32 %v918, %v990
      %v992 = vpop.f32.mrb[0].mxu0
      %v993 = vadd.f32 %v920, %v992
      %v994 = vpop.f32.mrb[0].mxu0
      %v995 = vadd.f32 %v922, %v994
      %996 = vmatprep.mubr.bf16.mxu0 %v464
      %997 = vmatmul.mubr.bf16.gmra.mrb[0].mxu0 %v463
      %v998 = vpop.f32.mrb[0].mxu0
      %v999 = vadd.f32 %v926, %v998
      %v1000 = vpop.f32.mrb[0].mxu0
      %v1001 = vadd.f32 %v928, %v1000
      %v1002 = vpop.f32.mrb[0].mxu0
      %v1003 = vadd.f32 %v930, %v1002
      %v1004 = vpop.f32.mrb[0].mxu0
      %v1005 = vadd.f32 %v932, %v1004
      %1006 = vdwg.mxu0
      %v1007 = vmax.f32 %v969, 0.0
      %v1008 = vmax.f32 %v973, 0.0
      %v1009 = vmax.f32 %v979, 0.0
      %v1010 = vmax.f32 %v983, 0.0
      %v1011 = vmax.f32 %v989, 0.0
      %v1012 = vmax.f32 %v993, 0.0
      %v1013 = vmax.f32 %v999, 0.0
      %v1014 = vmax.f32 %v1003, 0.0
      %s1015 = scalar_lea.vmem [#allocation3], 16
      %1016 = vst [vmem:[%s1015 + $0x1] sm:$0xff] %v1007
      %1017 = vst [vmem:[%s1015 + $0x11] sm:$0xff] %v1008
      %1018 = vst [vmem:[%s1015 + $0x21] sm:$0xff] %v1009
      %1019 = vst [vmem:[%s1015 + $0x31] sm:$0xff] %v1010
      %1020 = vst [vmem:[%s1015 + $0x41] sm:$0xff] %v1011
      %1021 = vst [vmem:[%s1015 + $0x51] sm:$0xff] %v1012
      %1022 = vst [vmem:[%s1015 + $0x61] sm:$0xff] %v1013
      %1023 = vst [vmem:[%s1015 + $0x71] sm:$0xff] %v1014
      %v1024 = vld [vmem:[#allocation3] sm:$0xff]
      %v1025 = vld [vmem:[#allocation3 + $0x10] sm:$0xff]
      %v1026 = vld [vmem:[#allocation3 + $0x20] sm:$0xff]
      %v1027 = vld [vmem:[#allocation3 + $0x30] sm:$0xff]
      %v1028 = vld [vmem:[#allocation3 + $0x40] sm:$0xff]
      %v1029 = vld [vmem:[#allocation3 + $0x50] sm:$0xff]
      %v1030 = vld [vmem:[#allocation3 + $0x60] sm:$0xff]
      %v1031 = vld [vmem:[#allocation3 + $0x70] sm:$0xff]
      %v1032 = vpack.c.bf16 %v1025, %v1024
      %v1033 = vpack.c.bf16 %v1027, %v1026
      %v1034 = vpack.c.bf16 %v1029, %v1028
      %v1035 = vpack.c.bf16 %v1031, %v1030
      %1036 = vst [vmem:[#allocation2] sm:$0xff] %v1032
      %1037 = vst [vmem:[#allocation2 + $0x48] sm:$0xff] %v1033
      %1038 = vst [vmem:[#allocation2 + $0x90] sm:$0xff] %v1034
      %1039 = vst [vmem:[#allocation2 + $0xd8] sm:$0xff] %v1035
      %v1040 = vld [vmem:[#allocation3 + $0x1] sm:$0xff]
      %v1041 = vld [vmem:[#allocation3 + $0x11] sm:$0xff]
      %v1042 = vld [vmem:[#allocation3 + $0x21] sm:$0xff]
      %v1043 = vld [vmem:[#allocation3 + $0x31] sm:$0xff]
      %v1044 = vld [vmem:[#allocation3 + $0x41] sm:$0xff]
      %v1045 = vld [vmem:[#allocation3 + $0x51] sm:$0xff]
      %v1046 = vld [vmem:[#allocation3 + $0x61] sm:$0xff]
      %v1047 = vld [vmem:[#allocation3 + $0x71] sm:$0xff]
      %v1048 = vpack.c.bf16 %v1041, %v1040
      %v1049 = vpack.c.bf16 %v1043, %v1042
      %v1050 = vpack.c.bf16 %v1045, %v1044
      %v1051 = vpack.c.bf16 %v1047, %v1046
      %1052 = vst [vmem:[#allocation2 + $0x8] sm:$0xff] %v1048
      %1053 = vst [vmem:[#allocation2 + $0x50] sm:$0xff] %v1049
      %1054 = vst [vmem:[#allocation2 + $0x98] sm:$0xff] %v1050
      %1055 = vst [vmem:[#allocation2 + $0xe0] sm:$0xff] %v1051
      %v1056 = vld [vmem:[#allocation3 + $0x2] sm:$0xff]
      %v1057 = vld [vmem:[#allocation3 + $0x12] sm:$0xff]
      %v1058 = vld [vmem:[#allocation3 + $0x22] sm:$0xff]
      %v1059 = vld [vmem:[#allocation3 + $0x32] sm:$0xff]
      %v1060 = vld [vmem:[#allocation3 + $0x42] sm:$0xff]
      %v1061 = vld [vmem:[#allocation3 + $0x52] sm:$0xff]
      %v1062 = vld [vmem:[#allocation3 + $0x62] sm:$0xff]
      %v1063 = vld [vmem:[#allocation3 + $0x72] sm:$0xff]
      %v1064 = vpack.c.bf16 %v1057, %v1056
      %v1065 = vpack.c.bf16 %v1059, %v1058
      %v1066 = vpack.c.bf16 %v1061, %v1060
      %v1067 = vpack.c.bf16 %v1063, %v1062
      %1068 = vst [vmem:[#allocation2 + $0x10] sm:$0xff] %v1064
      %1069 = vst [vmem:[#allocation2 + $0x58] sm:$0xff] %v1065
      %1070 = vst [vmem:[#allocation2 + $0xa0] sm:$0xff] %v1066
      %1071 = vst [vmem:[#allocation2 + $0xe8] sm:$0xff] %v1067
      %v1072 = vld [vmem:[%s1015] sm:$0xff]
      %v1073 = vld [vmem:[%s1015 + $0x10] sm:$0xff]
      %v1074 = vld [vmem:[%s1015 + $0x20] sm:$0xff]
      %v1075 = vld [vmem:[%s1015 + $0x30] sm:$0xff]
      %v1076 = vld [vmem:[%s1015 + $0x40] sm:$0xff]
      %v1077 = vld [vmem:[%s1015 + $0x50] sm:$0xff]
      %v1078 = vld [vmem:[%s1015 + $0x60] sm:$0xff]
      %v1079 = vld [vmem:[%s1015 + $0x70] sm:$0xff]
      %v1080 = vpack.c.bf16 %v1073, %v1072
      %v1081 = vpack.c.bf16 %v1075, %v1074
      %v1082 = vpack.c.bf16 %v1077, %v1076
      %v1083 = vpack.c.bf16 %v1079, %v1078
      %1084 = vst [vmem:[#allocation2 + $0x18] sm:$0xff] %v1080
      %1085 = vst [vmem:[#allocation2 + $0x60] sm:$0xff] %v1081
      %1086 = vst [vmem:[#allocation2 + $0xa8] sm:$0xff] %v1082
      %1087 = vst [vmem:[#allocation2 + $0xf0] sm:$0xff] %v1083
      %v1088 = vld [vmem:[%s1015 + $0x1] sm:$0xff]
      %v1089 = vld [vmem:[%s1015 + $0x11] sm:$0xff]
      %v1090 = vld [vmem:[%s1015 + $0x21] sm:$0xff]
      %v1091 = vld [vmem:[%s1015 + $0x31] sm:$0xff]
      %v1092 = vld [vmem:[%s1015 + $0x41] sm:$0xff]
      %v1093 = vld [vmem:[%s1015 + $0x51] sm:$0xff]
      %v1094 = vld [vmem:[%s1015 + $0x61] sm:$0xff]
      %v1095 = vld [vmem:[%s1015 + $0x71] sm:$0xff]
      %v1096 = vpack.c.bf16 %v1089, %v1088
      %v1097 = vpack.c.bf16 %v1091, %v1090
      %v1098 = vpack.c.bf16 %v1093, %v1092
      %v1099 = vpack.c.bf16 %v1095, %v1094
      %1100 = vst [vmem:[#allocation2 + $0x20] sm:$0xff] %v1096
      %1101 = vst [vmem:[#allocation2 + $0x68] sm:$0xff] %v1097
      %1102 = vst [vmem:[#allocation2 + $0xb0] sm:$0xff] %v1098
      %1103 = vst [vmem:[#allocation2 + $0xf8] sm:$0xff] %v1099
      %v1104 = vld [vmem:[%s1015 + $0x2] sm:$0xff]
      %v1105 = vld [vmem:[%s1015 + $0x12] sm:$0xff]
      %v1106 = vld [vmem:[%s1015 + $0x22] sm:$0xff]
      %v1107 = vld [vmem:[%s1015 + $0x32] sm:$0xff]
      %v1108 = vld [vmem:[%s1015 + $0x42] sm:$0xff]
      %v1109 = vld [vmem:[%s1015 + $0x52] sm:$0xff]
      %v1110 = vld [vmem:[%s1015 + $0x62] sm:$0xff]
      %v1111 = vld [vmem:[%s1015 + $0x72] sm:$0xff]
      %v1112 = vpack.c.bf16 %v1105, %v1104
      %v1113 = vpack.c.bf16 %v1107, %v1106
      %v1114 = vpack.c.bf16 %v1109, %v1108
      %v1115 = vpack.c.bf16 %v1111, %v1110
      %1116 = vst [vmem:[#allocation2 + $0x28] sm:$0xff] %v1112
      %1117 = vst [vmem:[#allocation2 + $0x70] sm:$0xff] %v1113
      %1118 = vst [vmem:[#allocation2 + $0xb8] sm:$0xff] %v1114
      %1119 = vst [vmem:[#allocation2 + $0x100] sm:$0xff] %v1115
      %s1120 = scalar_lea.vmem [#allocation3], 32
      %v1121 = vld [vmem:[%s1120] sm:$0xff]
      %v1122 = vld [vmem:[%s1120 + $0x10] sm:$0xff]
      %v1123 = vld [vmem:[%s1120 + $0x20] sm:$0xff]
      %v1124 = vld [vmem:[%s1120 + $0x30] sm:$0xff]
      %v1125 = vld [vmem:[%s1120 + $0x40] sm:$0xff]
      %v1126 = vld [vmem:[%s1120 + $0x50] sm:$0xff]
      %v1127 = vld [vmem:[%s1120 + $0x60] sm:$0xff]
      %v1128 = vld [vmem:[%s1120 + $0x70] sm:$0xff]
      %v1129 = vpack.c.bf16 %v1122, %v1121
      %v1130 = vpack.c.bf16 %v1124, %v1123
      %v1131 = vpack.c.bf16 %v1126, %v1125
      %v1132 = vpack.c.bf16 %v1128, %v1127
      %1133 = vst [vmem:[#allocation2 + $0x30] sm:$0xff] %v1129
      %1134 = vst [vmem:[#allocation2 + $0x78] sm:$0xff] %v1130
      %1135 = vst [vmem:[#allocation2 + $0xc0] sm:$0xff] %v1131
      %1136 = vst [vmem:[#allocation2 + $0x108] sm:$0xff] %v1132
      %v1137 = vld [vmem:[%s1120 + $0x1] sm:$0xff]
      %v1138 = vld [vmem:[%s1120 + $0x11] sm:$0xff]
      %v1139 = vld [vmem:[%s1120 + $0x21] sm:$0xff]
      %v1140 = vld [vmem:[%s1120 + $0x31] sm:$0xff]
      %v1141 = vld [vmem:[%s1120 + $0x41] sm:$0xff]
      %v1142 = vld [vmem:[%s1120 + $0x51] sm:$0xff]
      %v1143 = vld [vmem:[%s1120 + $0x61] sm:$0xff]
      %v1144 = vld [vmem:[%s1120 + $0x71] sm:$0xff]
      %v1145 = vpack.c.bf16 %v1138, %v1137
      %v1146 = vpack.c.bf16 %v1140, %v1139
      %v1147 = vpack.c.bf16 %v1142, %v1141
      %v1148 = vpack.c.bf16 %v1144, %v1143
      %1149 = vst [vmem:[#allocation2 + $0x38] sm:$0xff] %v1145
      %1150 = vst [vmem:[#allocation2 + $0x80] sm:$0xff] %v1146
      %1151 = vst [vmem:[#allocation2 + $0xc8] sm:$0xff] %v1147
      %1152 = vst [vmem:[#allocation2 + $0x110] sm:$0xff] %v1148
      %v1153 = vld [vmem:[%s1120 + $0x2] sm:$0xff]
      %v1154 = vld [vmem:[%s1120 + $0x12] sm:$0xff]
      %v1155 = vld [vmem:[%s1120 + $0x22] sm:$0xff]
      %v1156 = vld [vmem:[%s1120 + $0x32] sm:$0xff]
      %v1157 = vld [vmem:[%s1120 + $0x42] sm:$0xff]
      %v1158 = vld [vmem:[%s1120 + $0x52] sm:$0xff]
      %v1159 = vld [vmem:[%s1120 + $0x62] sm:$0xff]
      %v1160 = vld [vmem:[%s1120 + $0x72] sm:$0xff]
      %v1161 = vpack.c.bf16 %v1154, %v1153
      %v1162 = vpack.c.bf16 %v1156, %v1155
      %v1163 = vpack.c.bf16 %v1158, %v1157
      %v1164 = vpack.c.bf16 %v1160, %v1159
      %1165 = vst [vmem:[#allocation2 + $0x40] sm:$0xff] %v1161
      %1166 = vst [vmem:[#allocation2 + $0x88] sm:$0xff] %v1162
      %1167 = vst [vmem:[#allocation2 + $0xd0] sm:$0xff] %v1163
      %1168 = vst [vmem:[#allocation2 + $0x118] sm:$0xff] %v1164
      %v1169 = vld [vmem:[#allocation2] sm:$0xff]
      %v1170 = vld [vmem:[#allocation2 + $0x8] sm:$0xff]
      %v1171 = vld [vmem:[#allocation2 + $0x10] sm:$0xff]
      %v1172 = vld [vmem:[#allocation2 + $0x18] sm:$0xff]
      %v1173 = vld [vmem:[#allocation2 + $0x20] sm:$0xff]
      %v1174 = vld [vmem:[#allocation2 + $0x28] sm:$0xff]
      %v1175 = vld [vmem:[#allocation2 + $0x30] sm:$0xff]
      %v1176 = vld [vmem:[#allocation2 + $0x38] sm:$0xff]
      %v1177 = vld [vmem:[#allocation2 + $0x40] sm:$0xff]
      %v1178 = vld [vmem:[#allocation2 + $0x48] sm:$0xff]
      %v1179 = vld [vmem:[#allocation2 + $0x50] sm:$0xff]
      %v1180 = vld [vmem:[#allocation2 + $0x58] sm:$0xff]
      %v1181 = vld [vmem:[#allocation2 + $0x60] sm:$0xff]
      %v1182 = vld [vmem:[#allocation2 + $0x68] sm:$0xff]
      %v1183 = vld [vmem:[#allocation2 + $0x70] sm:$0xff]
      %v1184 = vld [vmem:[#allocation2 + $0x78] sm:$0xff]
      %v1185 = vld [vmem:[#allocation2 + $0x80] sm:$0xff]
      %v1186 = vld [vmem:[#allocation2 + $0x88] sm:$0xff]
      %v1187 = vld [vmem:[#allocation2 + $0x90] sm:$0xff]
      %v1188 = vld [vmem:[#allocation2 + $0x98] sm:$0xff]
      %v1189 = vld [vmem:[#allocation2 + $0xa0] sm:$0xff]
      %v1190 = vld [vmem:[#allocation2 + $0xa8] sm:$0xff]
      %v1191 = vld [vmem:[#allocation2 + $0xb0] sm:$0xff]
      %v1192 = vld [vmem:[#allocation2 + $0xb8] sm:$0xff]
      %v1193 = vld [vmem:[#allocation2 + $0xc0] sm:$0xff]
      %v1194 = vld [vmem:[#allocation2 + $0xc8] sm:$0xff]
      %v1195 = vld [vmem:[#allocation2 + $0xd0] sm:$0xff]
      %v1196 = vld [vmem:[#allocation2 + $0xd8] sm:$0xff]
      %v1197 = vld [vmem:[#allocation2 + $0xe0] sm:$0xff]
      %v1198 = vld [vmem:[#allocation2 + $0xe8] sm:$0xff]
      %v1199 = vld [vmem:[#allocation2 + $0xf0] sm:$0xff]
      %v1200 = vld [vmem:[#allocation2 + $0xf8] sm:$0xff]
      %v1201 = vld [vmem:[#allocation2 + $0x100] sm:$0xff]
      %v1202 = vld [vmem:[#allocation2 + $0x108] sm:$0xff]
      %v1203 = vld [vmem:[#allocation2 + $0x110] sm:$0xff]
      %v1204 = vld [vmem:[#allocation2 + $0x118] sm:$0xff]
      %v1205 = vld [vmem:[%s3] sm:$0xf]
      %v1206 = vld [vmem:[%s3 + $0x4] sm:$0xf]
      %v1207 = vld [vmem:[%s3 + $0x8] sm:$0xf]
      %v1208 = vld [vmem:[%s3 + $0xc] sm:$0xf]
      %v1209 = vld [vmem:[%s3 + $0x10] sm:$0xf]
      %v1210 = vld [vmem:[%s3 + $0x14] sm:$0xf]
      %v1211 = vld [vmem:[%s3 + $0x18] sm:$0xf]
      %v1212 = vld [vmem:[%s3 + $0x1c] sm:$0xf]
      %v1213 = vld [vmem:[%s3 + $0x20] sm:$0xf]
      %v1214 = vld [vmem:[%s3 + $0x24] sm:$0xf]
      %v1215 = vld [vmem:[%s3 + $0x28] sm:$0xf]
      %v1216 = vld [vmem:[%s3 + $0x2c] sm:$0xf]
      %v1217 = vld [vmem:[%s3 + $0x30] sm:$0xf]
      %v1218 = vld [vmem:[%s3 + $0x34] sm:$0xf]
      %v1219 = vld [vmem:[%s3 + $0x38] sm:$0xf]
      %v1220 = vld [vmem:[%s3 + $0x3c] sm:$0xf]
      %v1221 = vld [vmem:[%s3 + $0x40] sm:$0xf]
      %v1222 = vld [vmem:[%s3 + $0x44] sm:$0xf]
      %v1223 = vld [vmem:[%s3 + $0x48] sm:$0xf]
      %v1224 = vld [vmem:[%s3 + $0x4c] sm:$0xf]
      %v1225 = vld [vmem:[%s3 + $0x50] sm:$0xf]
      %v1226 = vld [vmem:[%s3 + $0x54] sm:$0xf]
      %v1227 = vld [vmem:[%s3 + $0x58] sm:$0xf]
      %v1228 = vld [vmem:[%s3 + $0x5c] sm:$0xf]
      %v1229 = vld [vmem:[%s3 + $0x60] sm:$0xf]
      %v1230 = vld [vmem:[%s3 + $0x64] sm:$0xf]
      %v1231 = vld [vmem:[%s3 + $0x68] sm:$0xf]
      %v1232 = vld [vmem:[%s3 + $0x6c] sm:$0xf]
      %v1233 = vld [vmem:[%s3 + $0x70] sm:$0xf]
      %v1234 = vld [vmem:[%s3 + $0x74] sm:$0xf]
      %v1235 = vld [vmem:[%s3 + $0x78] sm:$0xf]
      %v1236 = vld [vmem:[%s3 + $0x7c] sm:$0xf]
      %v1237 = vld [vmem:[%s3 + $0x80] sm:$0xf]
      %v1238 = vld [vmem:[%s3 + $0x84] sm:$0xf]
      %v1239 = vld [vmem:[%s3 + $0x88] sm:$0xf]
      %v1240 = vld [vmem:[%s3 + $0x8c] sm:$0xf]
      %v1241 = vld [vmem:[%s3 + $0x90] sm:$0xf]
      %v1242 = vld [vmem:[%s3 + $0x94] sm:$0xf]
      %v1243 = vld [vmem:[%s3 + $0x98] sm:$0xf]
      %v1244 = vld [vmem:[%s3 + $0x9c] sm:$0xf]
      %v1245 = vld [vmem:[%s3 + $0xa0] sm:$0xf]
      %v1246 = vld [vmem:[%s3 + $0xa4] sm:$0xf]
      %v1247 = vld [vmem:[%s3 + $0xa8] sm:$0xf]
      %v1248 = vld [vmem:[%s3 + $0xac] sm:$0xf]
      %v1249 = vld [vmem:[%s3 + $0xb0] sm:$0xf]
      %v1250 = vld [vmem:[%s3 + $0xb4] sm:$0xf]
      %v1251 = vld [vmem:[%s3 + $0xb8] sm:$0xf]
      %v1252 = vld [vmem:[%s3 + $0xbc] sm:$0xf]
      %v1253 = vld [vmem:[%s3 + $0xc0] sm:$0xf]
      %v1254 = vld [vmem:[%s3 + $0xc4] sm:$0xf]
      %v1255 = vld [vmem:[%s3 + $0xc8] sm:$0xf]
      %v1256 = vld [vmem:[%s3 + $0xcc] sm:$0xf]
      %v1257 = vld [vmem:[%s3 + $0xd0] sm:$0xf]
      %v1258 = vld [vmem:[%s3 + $0xd4] sm:$0xf]
      %v1259 = vld [vmem:[%s3 + $0xd8] sm:$0xf]
      %v1260 = vld [vmem:[%s3 + $0xdc] sm:$0xf]
      %v1261 = vld [vmem:[%s3 + $0xe0] sm:$0xf]
      %v1262 = vld [vmem:[%s3 + $0xe4] sm:$0xf]
      %v1263 = vld [vmem:[%s3 + $0xe8] sm:$0xf]
      %v1264 = vld [vmem:[%s3 + $0xec] sm:$0xf]
      %v1265 = vld [vmem:[%s3 + $0xf0] sm:$0xf]
      %v1266 = vld [vmem:[%s3 + $0xf4] sm:$0xf]
      %v1267 = vld [vmem:[%s3 + $0xf8] sm:$0xf]
      %v1268 = vld [vmem:[%s3 + $0xfc] sm:$0xf]
      %v1269 = vld [vmem:[%s3 + $0x100] sm:$0xf]
      %v1270 = vld [vmem:[%s3 + $0x104] sm:$0xf]
      %v1271 = vld [vmem:[%s3 + $0x108] sm:$0xf]
      %v1272 = vld [vmem:[%s3 + $0x10c] sm:$0xf]
      %v1273 = vld [vmem:[%s3 + $0x110] sm:$0xf]
      %v1274 = vld [vmem:[%s3 + $0x114] sm:$0xf]
      %v1275 = vld [vmem:[%s3 + $0x118] sm:$0xf]
      %v1276 = vld [vmem:[%s3 + $0x11c] sm:$0xf]
      %v1277 = vld [vmem:[%s3 + $0x120] sm:$0xf]
      %v1278 = vld [vmem:[%s3 + $0x124] sm:$0xf]
      %v1279 = vld [vmem:[%s3 + $0x128] sm:$0xf]
      %v1280 = vld [vmem:[%s3 + $0x12c] sm:$0xf]
      %v1281 = vld [vmem:[%s3 + $0x130] sm:$0xf]
      %v1282 = vld [vmem:[%s3 + $0x134] sm:$0xf]
      %v1283 = vld [vmem:[%s3 + $0x138] sm:$0xf]
      %v1284 = vld [vmem:[%s3 + $0x13c] sm:$0xf]
      %v1285 = vld [vmem:[%s3 + $0x140] sm:$0xf]
      %v1286 = vld [vmem:[%s3 + $0x144] sm:$0xf]
      %v1287 = vld [vmem:[%s3 + $0x148] sm:$0xf]
      %v1288 = vld [vmem:[%s3 + $0x14c] sm:$0xf]
      %v1289 = vld [vmem:[%s3 + $0x150] sm:$0xf]
      %v1290 = vld [vmem:[%s3 + $0x154] sm:$0xf]
      %v1291 = vld [vmem:[%s3 + $0x158] sm:$0xf]
      %v1292 = vld [vmem:[%s3 + $0x15c] sm:$0xf]
      %v1293 = vld [vmem:[%s3 + $0x160] sm:$0xf]
      %v1294 = vld [vmem:[%s3 + $0x164] sm:$0xf]
      %v1295 = vld [vmem:[%s3 + $0x168] sm:$0xf]
      %v1296 = vld [vmem:[%s3 + $0x16c] sm:$0xf]
      %v1297 = vld [vmem:[%s3 + $0x170] sm:$0xf]
      %v1298 = vld [vmem:[%s3 + $0x174] sm:$0xf]
      %v1299 = vld [vmem:[%s3 + $0x178] sm:$0xf]
      %v1300 = vld [vmem:[%s3 + $0x17c] sm:$0xf]
      %v1301 = vld [vmem:[%s3 + $0x180] sm:$0xf]
      %v1302 = vld [vmem:[%s3 + $0x184] sm:$0xf]
      %v1303 = vld [vmem:[%s3 + $0x188] sm:$0xf]
      %v1304 = vld [vmem:[%s3 + $0x18c] sm:$0xf]
      %v1305 = vld [vmem:[%s3 + $0x190] sm:$0xf]
      %v1306 = vld [vmem:[%s3 + $0x194] sm:$0xf]
      %v1307 = vld [vmem:[%s3 + $0x198] sm:$0xf]
      %v1308 = vld [vmem:[%s3 + $0x19c] sm:$0xf]
      %v1309 = vld [vmem:[%s3 + $0x1a0] sm:$0xf]
      %v1310 = vld [vmem:[%s3 + $0x1a4] sm:$0xf]
      %v1311 = vld [vmem:[%s3 + $0x1a8] sm:$0xf]
      %v1312 = vld [vmem:[%s3 + $0x1ac] sm:$0xf]
      %v1313 = vld [vmem:[%s3 + $0x1b0] sm:$0xf]
      %v1314 = vld [vmem:[%s3 + $0x1b4] sm:$0xf]
      %v1315 = vld [vmem:[%s3 + $0x1b8] sm:$0xf]
      %v1316 = vld [vmem:[%s3 + $0x1bc] sm:$0xf]
      %v1317 = vld [vmem:[%s3 + $0x1c0] sm:$0xf]
      %v1318 = vld [vmem:[%s3 + $0x1c4] sm:$0xf]
      %v1319 = vld [vmem:[%s3 + $0x1c8] sm:$0xf]
      %v1320 = vld [vmem:[%s3 + $0x1cc] sm:$0xf]
      %v1321 = vld [vmem:[%s3 + $0x1d0] sm:$0xf]
      %v1322 = vld [vmem:[%s3 + $0x1d4] sm:$0xf]
      %v1323 = vld [vmem:[%s3 + $0x1d8] sm:$0xf]
      %v1324 = vld [vmem:[%s3 + $0x1dc] sm:$0xf]
      %v1325 = vld [vmem:[%s3 + $0x1e0] sm:$0xf]
      %v1326 = vld [vmem:[%s3 + $0x1e4] sm:$0xf]
      %v1327 = vld [vmem:[%s3 + $0x1e8] sm:$0xf]
      %v1328 = vld [vmem:[%s3 + $0x1ec] sm:$0xf]
      %v1329 = vld [vmem:[%s3 + $0x1f0] sm:$0xf]
      %v1330 = vld [vmem:[%s3 + $0x1f4] sm:$0xf]
      %v1331 = vld [vmem:[%s3 + $0x1f8] sm:$0xf]
      %v1332 = vld [vmem:[%s3 + $0x1fc] sm:$0xf]
      %v1333 = vld [vmem:[%s3 + $0x200] sm:$0xf]
      %v1334 = vld [vmem:[%s3 + $0x204] sm:$0xf]
      %v1335 = vld [vmem:[%s3 + $0x208] sm:$0xf]
      %v1336 = vld [vmem:[%s3 + $0x20c] sm:$0xf]
      %v1337 = vld [vmem:[%s3 + $0x210] sm:$0xf]
      %v1338 = vld [vmem:[%s3 + $0x214] sm:$0xf]
      %v1339 = vld [vmem:[%s3 + $0x218] sm:$0xf]
      %v1340 = vld [vmem:[%s3 + $0x21c] sm:$0xf]
      %v1341 = vld [vmem:[%s3 + $0x220] sm:$0xf]
      %v1342 = vld [vmem:[%s3 + $0x224] sm:$0xf]
      %v1343 = vld [vmem:[%s3 + $0x228] sm:$0xf]
      %v1344 = vld [vmem:[%s3 + $0x22c] sm:$0xf]
      %v1345 = vld [vmem:[%s3 + $0x230] sm:$0xf]
      %v1346 = vld [vmem:[%s3 + $0x234] sm:$0xf]
      %v1347 = vld [vmem:[%s3 + $0x238] sm:$0xf]
      %v1348 = vld [vmem:[%s3 + $0x23c] sm:$0xf]
      %v1349 = vld [vmem:[%s4] sm:$0x1]
      %v1351 = vlaneseq
      %v1352 = vshrl.u32 %v1351, 7
      %v1353 = vsub.s32 0, %v1352
      %v1354 = vrot.slane %v1349, %v1353
      %v1500 = vunpack.c.l.b16 %v1205
      %v1501 = vunpack.c.l.b16 %v1206
      %v1502 = vunpack.c.l.b16 %v1207
      %v1503 = vunpack.c.l.b16 %v1208
      %v1504 = vunpack.c.l.b16 %v1209
      %v1505 = vunpack.c.l.b16 %v1210
      %v1506 = vunpack.c.l.b16 %v1211
      %v1507 = vunpack.c.l.b16 %v1212
      %v1508 = vunpack.c.l.b16 %v1213
      %v1509 = vunpack.c.l.b16 %v1214
      %v1510 = vunpack.c.l.b16 %v1215
      %v1511 = vunpack.c.l.b16 %v1216
      %v1512 = vunpack.c.l.b16 %v1217
      %v1513 = vunpack.c.l.b16 %v1218
      %v1514 = vunpack.c.l.b16 %v1219
      %v1515 = vunpack.c.l.b16 %v1220
      %v1516 = vunpack.c.l.b16 %v1221
      %v1517 = vunpack.c.l.b16 %v1222
      %v1518 = vunpack.c.l.b16 %v1223
      %v1519 = vunpack.c.l.b16 %v1224
      %v1520 = vunpack.c.l.b16 %v1225
      %v1521 = vunpack.c.l.b16 %v1226
      %v1522 = vunpack.c.l.b16 %v1227
      %v1523 = vunpack.c.l.b16 %v1228
      %v1524 = vunpack.c.l.b16 %v1229
      %v1525 = vunpack.c.l.b16 %v1230
      %v1526 = vunpack.c.l.b16 %v1231
      %v1527 = vunpack.c.l.b16 %v1232
      %v1528 = vunpack.c.l.b16 %v1233
      %v1529 = vunpack.c.l.b16 %v1234
      %v1530 = vunpack.c.l.b16 %v1235
      %v1531 = vunpack.c.l.b16 %v1236
      %v1532 = vunpack.c.l.b16 %v1237
      %v1533 = vunpack.c.l.b16 %v1238
      %v1534 = vunpack.c.l.b16 %v1239
      %v1535 = vunpack.c.l.b16 %v1240
      %v1536 = vunpack.c.l.b16 %v1241
      %v1537 = vunpack.c.l.b16 %v1242
      %v1538 = vunpack.c.l.b16 %v1243
      %v1539 = vunpack.c.l.b16 %v1244
      %v1540 = vunpack.c.l.b16 %v1245
      %v1541 = vunpack.c.l.b16 %v1246
      %v1542 = vunpack.c.l.b16 %v1247
      %v1543 = vunpack.c.l.b16 %v1248
      %v1544 = vunpack.c.l.b16 %v1249
      %v1545 = vunpack.c.l.b16 %v1250
      %v1546 = vunpack.c.l.b16 %v1251
      %v1547 = vunpack.c.l.b16 %v1252
      %v1548 = vunpack.c.l.b16 %v1253
      %v1549 = vunpack.c.l.b16 %v1254
      %v1550 = vunpack.c.l.b16 %v1255
      %v1551 = vunpack.c.l.b16 %v1256
      %v1552 = vunpack.c.l.b16 %v1257
      %v1553 = vunpack.c.l.b16 %v1258
      %v1554 = vunpack.c.l.b16 %v1259
      %v1555 = vunpack.c.l.b16 %v1260
      %v1556 = vunpack.c.l.b16 %v1261
      %v1557 = vunpack.c.l.b16 %v1262
      %v1558 = vunpack.c.l.b16 %v1263
      %v1559 = vunpack.c.l.b16 %v1264
      %v1560 = vunpack.c.l.b16 %v1265
      %v1561 = vunpack.c.l.b16 %v1266
      %v1562 = vunpack.c.l.b16 %v1267
      %v1563 = vunpack.c.l.b16 %v1268
      %v1564 = vunpack.c.l.b16 %v1269
      %v1565 = vunpack.c.l.b16 %v1270
      %v1566 = vunpack.c.l.b16 %v1271
      %v1567 = vunpack.c.l.b16 %v1272
      %v1568 = vunpack.c.l.b16 %v1273
      %v1569 = vunpack.c.l.b16 %v1274
      %v1570 = vunpack.c.l.b16 %v1275
      %v1571 = vunpack.c.l.b16 %v1276
      %v1572 = vunpack.c.l.b16 %v1277
      %v1573 = vunpack.c.l.b16 %v1278
      %v1574 = vunpack.c.l.b16 %v1279
      %v1575 = vunpack.c.l.b16 %v1280
      %v1576 = vunpack.c.l.b16 %v1281
      %v1577 = vunpack.c.l.b16 %v1282
      %v1578 = vunpack.c.l.b16 %v1283
      %v1579 = vunpack.c.l.b16 %v1284
      %v1580 = vunpack.c.l.b16 %v1285
      %v1581 = vunpack.c.l.b16 %v1286
      %v1582 = vunpack.c.l.b16 %v1287
      %v1583 = vunpack.c.l.b16 %v1288
      %v1584 = vunpack.c.l.b16 %v1289
      %v1585 = vunpack.c.l.b16 %v1290
      %v1586 = vunpack.c.l.b16 %v1291
      %v1587 = vunpack.c.l.b16 %v1292
      %v1588 = vunpack.c.l.b16 %v1293
      %v1589 = vunpack.c.l.b16 %v1294
      %v1590 = vunpack.c.l.b16 %v1295
      %v1591 = vunpack.c.l.b16 %v1296
      %v1592 = vunpack.c.l.b16 %v1297
      %v1593 = vunpack.c.l.b16 %v1298
      %v1594 = vunpack.c.l.b16 %v1299
      %v1595 = vunpack.c.l.b16 %v1300
      %v1596 = vunpack.c.l.b16 %v1301
      %v1597 = vunpack.c.l.b16 %v1302
      %v1598 = vunpack.c.l.b16 %v1303
      %v1599 = vunpack.c.l.b16 %v1304
      %v1600 = vunpack.c.l.b16 %v1305
      %v1601 = vunpack.c.l.b16 %v1306
      %v1602 = vunpack.c.l.b16 %v1307
      %v1603 = vunpack.c.l.b16 %v1308
      %v1604 = vunpack.c.l.b16 %v1309
      %v1605 = vunpack.c.l.b16 %v1310
      %v1606 = vunpack.c.l.b16 %v1311
      %v1607 = vunpack.c.l.b16 %v1312
      %v1608 = vunpack.c.l.b16 %v1313
      %v1609 = vunpack.c.l.b16 %v1314
      %v1610 = vunpack.c.l.b16 %v1315
      %v1611 = vunpack.c.l.b16 %v1316
      %v1612 = vunpack.c.l.b16 %v1317
      %v1613 = vunpack.c.l.b16 %v1318
      %v1614 = vunpack.c.l.b16 %v1319
      %v1615 = vunpack.c.l.b16 %v1320
      %v1616 = vunpack.c.l.b16 %v1321
      %v1617 = vunpack.c.l.b16 %v1322
      %v1618 = vunpack.c.l.b16 %v1323
      %v1619 = vunpack.c.l.b16 %v1324
      %v1620 = vunpack.c.l.b16 %v1325
      %v1621 = vunpack.c.l.b16 %v1326
      %v1622 = vunpack.c.l.b16 %v1327
      %v1623 = vunpack.c.l.b16 %v1328
      %v1624 = vunpack.c.l.b16 %v1329
      %v1625 = vunpack.c.l.b16 %v1330
      %v1626 = vunpack.c.l.b16 %v1331
      %v1627 = vunpack.c.l.b16 %v1332
      %v1628 = vunpack.c.l.b16 %v1333
      %v1629 = vunpack.c.l.b16 %v1334
      %v1630 = vunpack.c.l.b16 %v1335
      %v1631 = vunpack.c.l.b16 %v1336
      %v1632 = vunpack.c.l.b16 %v1337
      %v1633 = vunpack.c.l.b16 %v1338
      %v1634 = vunpack.c.l.b16 %v1339
      %v1635 = vunpack.c.l.b16 %v1340
      %v1636 = vunpack.c.l.b16 %v1341
      %v1637 = vunpack.c.l.b16 %v1342
      %v1638 = vunpack.c.l.b16 %v1343
      %v1639 = vunpack.c.l.b16 %v1344
      %v1640 = vunpack.c.l.b16 %v1345
      %v1641 = vunpack.c.l.b16 %v1346
      %v1642 = vunpack.c.l.b16 %v1347
      %v1643 = vunpack.c.l.b16 %v1348
      %v1644 = vpack.c.b16 %v1501, %v1500
      %v1645 = vpack.c.b16 %v1503, %v1502
      %v1646 = vpack.c.b16 %v1505, %v1504
      %v1647 = vpack.c.b16 %v1507, %v1506
      %v1648 = vpack.c.b16 %v1509, %v1508
      %v1649 = vpack.c.b16 %v1511, %v1510
      %v1650 = vpack.c.b16 %v1513, %v1512
      %v1651 = vpack.c.b16 %v1515, %v1514
      %v1652 = vpack.c.b16 %v1517, %v1516
      %v1653 = vpack.c.b16 %v1519, %v1518
      %v1654 = vpack.c.b16 %v1521, %v1520
      %v1655 = vpack.c.b16 %v1523, %v1522
      %v1656 = vpack.c.b16 %v1525, %v1524
      %v1657 = vpack.c.b16 %v1527, %v1526
      %v1658 = vpack.c.b16 %v1529, %v1528
      %v1659 = vpack.c.b16 %v1531, %v1530
      %v1660 = vpack.c.b16 %v1533, %v1532
      %v1661 = vpack.c.b16 %v1535, %v1534
      %v1662 = vpack.c.b16 %v1537, %v1536
      %v1663 = vpack.c.b16 %v1539, %v1538
      %v1664 = vpack.c.b16 %v1541, %v1540
      %v1665 = vpack.c.b16 %v1543, %v1542
      %v1666 = vpack.c.b16 %v1545, %v1544
      %v1667 = vpack.c.b16 %v1547, %v1546
      %v1668 = vpack.c.b16 %v1549, %v1548
      %v1669 = vpack.c.b16 %v1551, %v1550
      %v1670 = vpack.c.b16 %v1553, %v1552
      %v1671 = vpack.c.b16 %v1555, %v1554
      %v1672 = vpack.c.b16 %v1557, %v1556
      %v1673 = vpack.c.b16 %v1559, %v1558
      %v1674 = vpack.c.b16 %v1561, %v1560
      %v1675 = vpack.c.b16 %v1563, %v1562
      %v1676 = vpack.c.b16 %v1565, %v1564
      %v1677 = vpack.c.b16 %v1567, %v1566
      %v1678 = vpack.c.b16 %v1569, %v1568
      %v1679 = vpack.c.b16 %v1571, %v1570
      %v1680 = vpack.c.b16 %v1573, %v1572
      %v1681 = vpack.c.b16 %v1575, %v1574
      %v1682 = vpack.c.b16 %v1577, %v1576
      %v1683 = vpack.c.b16 %v1579, %v1578
      %v1684 = vpack.c.b16 %v1581, %v1580
      %v1685 = vpack.c.b16 %v1583, %v1582
      %v1686 = vpack.c.b16 %v1585, %v1584
      %v1687 = vpack.c.b16 %v1587, %v1586
      %v1688 = vpack.c.b16 %v1589, %v1588
      %v1689 = vpack.c.b16 %v1591, %v1590
      %v1690 = vpack.c.b16 %v1593, %v1592
      %v1691 = vpack.c.b16 %v1595, %v1594
      %v1692 = vpack.c.b16 %v1597, %v1596
      %v1693 = vpack.c.b16 %v1599, %v1598
      %v1694 = vpack.c.b16 %v1601, %v1600
      %v1695 = vpack.c.b16 %v1603, %v1602
      %v1696 = vpack.c.b16 %v1605, %v1604
      %v1697 = vpack.c.b16 %v1607, %v1606
      %v1698 = vpack.c.b16 %v1609, %v1608
      %v1699 = vpack.c.b16 %v1611, %v1610
      %v1700 = vpack.c.b16 %v1613, %v1612
      %v1701 = vpack.c.b16 %v1615, %v1614
      %v1702 = vpack.c.b16 %v1617, %v1616
      %v1703 = vpack.c.b16 %v1619, %v1618
      %v1704 = vpack.c.b16 %v1621, %v1620
      %v1705 = vpack.c.b16 %v1623, %v1622
      %v1706 = vpack.c.b16 %v1625, %v1624
      %v1707 = vpack.c.b16 %v1627, %v1626
      %v1708 = vpack.c.b16 %v1629, %v1628
      %v1709 = vpack.c.b16 %v1631, %v1630
      %v1710 = vpack.c.b16 %v1633, %v1632
      %v1711 = vpack.c.b16 %v1635, %v1634
      %v1712 = vpack.c.b16 %v1637, %v1636
      %v1713 = vpack.c.b16 %v1639, %v1638
      %v1714 = vpack.c.b16 %v1641, %v1640
      %v1715 = vpack.c.b16 %v1643, %v1642
      %1788 = vmatprep.subr.bf16.mxu0 0
      %1789 = vmatpush1.bf16.msra.mxu0 %v1644
      %1790 = vmatprep.subr.bf16.mxu0 0
      %1791 = vmatpush1.bf16.msra.mxu0 %v1645
      %1792 = vmatprep.subr.bf16.mxu0 0
      %1793 = vmatpush1.bf16.msra.mxu0 %v1646
      %1794 = vmatprep.subr.bf16.mxu0 0
      %1795 = vmatpush1.bf16.msra.mxu0 %v1647
      %1796 = vmatprep.subr.bf16.mxu0 0
      %1797 = vmatpush1.bf16.msra.mxu0 %v1648
      %1798 = vmatprep.subr.bf16.mxu0 0
      %1799 = vmatpush1.bf16.msra.mxu0 %v1649
      %1800 = vmatprep.subr.bf16.mxu0 0
      %1801 = vmatpush1.bf16.msra.mxu0 %v1650
      %1802 = vmatprep.subr.bf16.mxu0 0
      %1803 = vmatpush1.bf16.msra.mxu0 %v1651
      %1804 = vmatprep.subr.bf16.mxu0 0
      %1805 = vmatpush1.bf16.msra.mxu0 %v1652
      %1806 = vmatprep.subr.bf16.mxu0 0
      %1807 = vmatpush1.bf16.msra.mxu0 %v1653
      %1808 = vmatprep.subr.bf16.mxu0 0
      %1809 = vmatpush1.bf16.msra.mxu0 %v1654
      %1810 = vmatprep.subr.bf16.mxu0 0
      %1811 = vmatpush1.bf16.msra.mxu0 %v1655
      %1812 = vmatprep.subr.bf16.mxu0 0
      %1813 = vmatpush1.bf16.msra.mxu0 %v1656
      %1814 = vmatprep.subr.bf16.mxu0 0
      %1815 = vmatpush1.bf16.msra.mxu0 %v1657
      %1816 = vmatprep.subr.bf16.mxu0 0
      %1817 = vmatpush1.bf16.msra.mxu0 %v1658
      %1818 = vmatprep.subr.bf16.mxu0 0
      %1819 = vmatpush1.bf16.msra.mxu0 %v1659
      %1820 = vmatprep.mubr.bf16.mxu0 %v1170
      %1821 = vmatmul.mubr.bf16.gmra.mrb[0].mxu0 %v1169
      %v1822 = vpop.f32.mrb[0].mxu0
      %v1823 = vadd.f32 %v1354, %v1822
      %v1824 = vpop.f32.mrb[0].mxu0
      %v1825 = vpop.f32.mrb[0].mxu0
      %v1826 = vadd.f32 %v1354, %v1825
      %v1827 = vpop.f32.mrb[0].mxu0
      %1828 = vmatprep.mubr.bf16.mxu0 %v1179
      %1829 = vmatmul.mubr.bf16.gmra.mrb[0].mxu0 %v1178
      %v1830 = vpop.f32.mrb[0].mxu0
      %v1831 = vadd.f32 %v1354, %v1830
      %v1832 = vpop.f32.mrb[0].mxu0
      %v1833 = vpop.f32.mrb[0].mxu0
      %v1834 = vadd.f32 %v1354, %v1833
      %v1835 = vpop.f32.mrb[0].mxu0
      %1836 = vmatprep.mubr.bf16.mxu0 %v1188
      %1837 = vmatmul.mubr.bf16.gmra.mrb[0].mxu0 %v1187
      %v1838 = vpop.f32.mrb[0].mxu0
      %v1839 = vadd.f32 %v1354, %v1838
      %v1840 = vpop.f32.mrb[0].mxu0
      %v1841 = vpop.f32.mrb[0].mxu0
      %v1842 = vadd.f32 %v1354, %v1841
      %v1843 = vpop.f32.mrb[0].mxu0
      %1844 = vmatprep.mubr.bf16.mxu0 %v1197
      %1845 = vmatmul.mubr.bf16.gmra.mrb[0].mxu0 %v1196
      %v1846 = vpop.f32.mrb[0].mxu0
      %v1847 = vadd.f32 %v1354, %v1846
      %v1848 = vpop.f32.mrb[0].mxu0
      %v1849 = vpop.f32.mrb[0].mxu0
      %v1850 = vadd.f32 %v1354, %v1849
      %v1851 = vpop.f32.mrb[0].mxu0
      %1852 = vdwg.mxu0
      %1853 = vmatprep.subr.bf16.mxu0 0
      %1854 = vmatpush1.bf16.msra.mxu0 %v1660
      %1855 = vmatprep.subr.bf16.mxu0 0
      %1856 = vmatpush1.bf16.msra.mxu0 %v1661
      %1857 = vmatprep.subr.bf16.mxu0 0
      %1858 = vmatpush1.bf16.msra.mxu0 %v1662
      %1859 = vmatprep.subr.bf16.mxu0 0
      %1860 = vmatpush1.bf16.msra.mxu0 %v1663
      %1861 = vmatprep.subr.bf16.mxu0 0
      %1862 = vmatpush1.bf16.msra.mxu0 %v1664
      %1863 = vmatprep.subr.bf16.mxu0 0
      %1864 = vmatpush1.bf16.msra.mxu0 %v1665
      %1865 = vmatprep.subr.bf16.mxu0 0
      %1866 = vmatpush1.bf16.msra.mxu0 %v1666
      %1867 = vmatprep.subr.bf16.mxu0 0
      %1868 = vmatpush1.bf16.msra.mxu0 %v1667
      %1869 = vmatprep.subr.bf16.mxu0 0
      %1870 = vmatpush1.bf16.msra.mxu0 %v1668
      %1871 = vmatprep.subr.bf16.mxu0 0
      %1872 = vmatpush1.bf16.msra.mxu0 %v1669
      %1873 = vmatprep.subr.bf16.mxu0 0
      %1874 = vmatpush1.bf16.msra.mxu0 %v1670
      %1875 = vmatprep.subr.bf16.mxu0 0
      %1876 = vmatpush1.bf16.msra.mxu0 %v1671
      %1877 = vmatprep.subr.bf16.mxu0 0
      %1878 = vmatpush1.bf16.msra.mxu0 %v1672
      %1879 = vmatprep.subr.bf16.mxu0 0
      %1880 = vmatpush1.bf16.msra.mxu0 %v1673
      %1881 = vmatprep.subr.bf16.mxu0 0
      %1882 = vmatpush1.bf16.msra.mxu0 %v1674
      %1883 = vmatprep.subr.bf16.mxu0 0
      %1884 = vmatpush1.bf16.msra.mxu0 %v1675
      %1885 = vmatprep.mubr.bf16.mxu0 %v1172
      %1886 = vmatmul.mubr.bf16.gmra.mrb[0].mxu0 %v1171
      %v1887 = vpop.f32.mrb[0].mxu0
      %v1888 = vadd.f32 %v1823, %v1887
      %v1889 = vpop.f32.mrb[0].mxu0
      %v1890 = vpop.f32.mrb[0].mxu0
      %v1891 = vadd.f32 %v1826, %v1890
      %v1892 = vpop.f32.mrb[0].mxu0
      %1893 = vmatprep.mubr.bf16.mxu0 %v1181
      %1894 = vmatmul.mubr.bf16.gmra.mrb[0].mxu0 %v1180
      %v1895 = vpop.f32.mrb[0].mxu0
      %v1896 = vadd.f32 %v1831, %v1895
      %v1897 = vpop.f32.mrb[0].mxu0
      %v1898 = vpop.f32.mrb[0].mxu0
      %v1899 = vadd.f32 %v1834, %v1898
      %v1900 = vpop.f32.mrb[0].mxu0
      %1901 = vmatprep.mubr.bf16.mxu0 %v1190
      %1902 = vmatmul.mubr.bf16.gmra.mrb[0].mxu0 %v1189
      %v1903 = vpop.f32.mrb[0].mxu0
      %v1904 = vadd.f32 %v1839, %v1903
      %v1905 = vpop.f32.mrb[0].mxu0
      %v1906 = vpop.f32.mrb[0].mxu0
      %v1907 = vadd.f32 %v1842, %v1906
      %v1908 = vpop.f32.mrb[0].mxu0
      %1909 = vmatprep.mubr.bf16.mxu0 %v1199
      %1910 = vmatmul.mubr.bf16.gmra.mrb[0].mxu0 %v1198
      %v1911 = vpop.f32.mrb[0].mxu0
      %v1912 = vadd.f32 %v1847, %v1911
      %v1913 = vpop.f32.mrb[0].mxu0
      %v1914 = vpop.f32.mrb[0].mxu0
      %v1915 = vadd.f32 %v1850, %v1914
      %v1916 = vpop.f32.mrb[0].mxu0
      %1917 = vdwg.mxu0
      %1918 = vmatprep.subr.bf16.mxu0 0
      %1919 = vmatpush1.bf16.msra.mxu0 %v1676
      %1920 = vmatprep.subr.bf16.mxu0 0
      %1921 = vmatpush1.bf16.msra.mxu0 %v1677
      %1922 = vmatprep.subr.bf16.mxu0 0
      %1923 = vmatpush1.bf16.msra.mxu0 %v1678
      %1924 = vmatprep.subr.bf16.mxu0 0
      %1925 = vmatpush1.bf16.msra.mxu0 %v1679
      %1926 = vmatprep.subr.bf16.mxu0 0
      %1927 = vmatpush1.bf16.msra.mxu0 %v1680
      %1928 = vmatprep.subr.bf16.mxu0 0
      %1929 = vmatpush1.bf16.msra.mxu0 %v1681
      %1930 = vmatprep.subr.bf16.mxu0 0
      %1931 = vmatpush1.bf16.msra.mxu0 %v1682
      %1932 = vmatprep.subr.bf16.mxu0 0
      %1933 = vmatpush1.bf16.msra.mxu0 %v1683
      %1934 = vmatprep.subr.bf16.mxu0 0
      %1935 = vmatpush1.bf16.msra.mxu0 %v1684
      %1936 = vmatprep.subr.bf16.mxu0 0
      %1937 = vmatpush1.bf16.msra.mxu0 %v1685
      %1938 = vmatprep.subr.bf16.mxu0 0
      %1939 = vmatpush1.bf16.msra.mxu0 %v1686
      %1940 = vmatprep.subr.bf16.mxu0 0
      %1941 = vmatpush1.bf16.msra.mxu0 %v1687
      %1942 = vmatprep.subr.bf16.mxu0 0
      %1943 = vmatpush1.bf16.msra.mxu0 %v1688
      %1944 = vmatprep.subr.bf16.mxu0 0
      %1945 = vmatpush1.bf16.msra.mxu0 %v1689
      %1946 = vmatprep.subr.bf16.mxu0 0
      %1947 = vmatpush1.bf16.msra.mxu0 %v1690
      %1948 = vmatprep.subr.bf16.mxu0 0
      %1949 = vmatpush1.bf16.msra.mxu0 %v1691
      %1950 = vmatprep.mubr.bf16.mxu0 %v1174
      %1951 = vmatmul.mubr.bf16.gmra.mrb[0].mxu0 %v1173
      %v1952 = vpop.f32.mrb[0].mxu0
      %v1953 = vadd.f32 %v1888, %v1952
      %v1954 = vpop.f32.mrb[0].mxu0
      %v1955 = vpop.f32.mrb[0].mxu0
      %v1956 = vadd.f32 %v1891, %v1955
      %v1957 = vpop.f32.mrb[0].mxu0
      %1958 = vmatprep.mubr.bf16.mxu0 %v1183
      %1959 = vmatmul.mubr.bf16.gmra.mrb[0].mxu0 %v1182
      %v1960 = vpop.f32.mrb[0].mxu0
      %v1961 = vadd.f32 %v1896, %v1960
      %v1962 = vpop.f32.mrb[0].mxu0
      %v1963 = vpop.f32.mrb[0].mxu0
      %v1964 = vadd.f32 %v1899, %v1963
      %v1965 = vpop.f32.mrb[0].mxu0
      %1966 = vmatprep.mubr.bf16.mxu0 %v1192
      %1967 = vmatmul.mubr.bf16.gmra.mrb[0].mxu0 %v1191
      %v1968 = vpop.f32.mrb[0].mxu0
      %v1969 = vadd.f32 %v1904, %v1968
      %v1970 = vpop.f32.mrb[0].mxu0
      %v1971 = vpop.f32.mrb[0].mxu0
      %v1972 = vadd.f32 %v1907, %v1971
      %v1973 = vpop.f32.mrb[0].mxu0
      %1974 = vmatprep.mubr.bf16.mxu0 %v1201
      %1975 = vmatmul.mubr.bf16.gmra.mrb[0].mxu0 %v1200
      %v1976 = vpop.f32.mrb[0].mxu0
      %v1977 = vadd.f32 %v1912, %v1976
      %v1978 = vpop.f32.mrb[0].mxu0
      %v1979 = vpop.f32.mrb[0].mxu0
      %v1980 = vadd.f32 %v1915, %v1979
      %v1981 = vpop.f32.mrb[0].mxu0
      %1982 = vdwg.mxu0
      %1983 = vmatprep.subr.bf16.mxu0 0
      %1984 = vmatpush1.bf16.msra.mxu0 %v1692
      %1985 = vmatprep.subr.bf16.mxu0 0
      %1986 = vmatpush1.bf16.msra.mxu0 %v1693
      %1987 = vmatprep.subr.bf16.mxu0 0
      %1988 = vmatpush1.bf16.msra.mxu0 %v1694
      %1989 = vmatprep.subr.bf16.mxu0 0
      %1990 = vmatpush1.bf16.msra.mxu0 %v1695
      %1991 = vmatprep.subr.bf16.mxu0 0
      %1992 = vmatpush1.bf16.msra.mxu0 %v1696
      %1993 = vmatprep.subr.bf16.mxu0 0
      %1994 = vmatpush1.bf16.msra.mxu0 %v1697
      %1995 = vmatprep.subr.bf16.mxu0 0
      %1996 = vmatpush1.bf16.msra.mxu0 %v1698
      %1997 = vmatprep.subr.bf16.mxu0 0
      %1998 = vmatpush1.bf16.msra.mxu0 %v1699
      %1999 = vmatprep.subr.bf16.mxu0 0
      %2000 = vmatpush1.bf16.msra.mxu0 %v1700
      %2001 = vmatprep.subr.bf16.mxu0 0
      %2002 = vmatpush1.bf16.msra.mxu0 %v1701
      %2003 = vmatprep.subr.bf16.mxu0 0
      %2004 = vmatpush1.bf16.msra.mxu0 %v1702
      %2005 = vmatprep.subr.bf16.mxu0 0
      %2006 = vmatpush1.bf16.msra.mxu0 %v1703
      %2007 = vmatprep.subr.bf16.mxu0 0
      %2008 = vmatpush1.bf16.msra.mxu0 %v1704
      %2009 = vmatprep.subr.bf16.mxu0 0
      %2010 = vmatpush1.bf16.msra.mxu0 %v1705
      %2011 = vmatprep.subr.bf16.mxu0 0
      %2012 = vmatpush1.bf16.msra.mxu0 %v1706
      %2013 = vmatprep.subr.bf16.mxu0 0
      %2014 = vmatpush1.bf16.msra.mxu0 %v1707
      %2015 = vmatprep.mubr.bf16.mxu0 %v1176
      %2016 = vmatmul.mubr.bf16.gmra.mrb[0].mxu0 %v1175
      %v2017 = vpop.f32.mrb[0].mxu0
      %v2018 = vadd.f32 %v1953, %v2017
      %v2019 = vpop.f32.mrb[0].mxu0
      %v2020 = vpop.f32.mrb[0].mxu0
      %v2021 = vadd.f32 %v1956, %v2020
      %v2022 = vpop.f32.mrb[0].mxu0
      %2023 = vmatprep.mubr.bf16.mxu0 %v1185
      %2024 = vmatmul.mubr.bf16.gmra.mrb[0].mxu0 %v1184
      %v2025 = vpop.f32.mrb[0].mxu0
      %v2026 = vadd.f32 %v1961, %v2025
      %v2027 = vpop.f32.mrb[0].mxu0
      %v2028 = vpop.f32.mrb[0].mxu0
      %v2029 = vadd.f32 %v1964, %v2028
      %v2030 = vpop.f32.mrb[0].mxu0
      %2031 = vmatprep.mubr.bf16.mxu0 %v1194
      %2032 = vmatmul.mubr.bf16.gmra.mrb[0].mxu0 %v1193
      %v2033 = vpop.f32.mrb[0].mxu0
      %v2034 = vadd.f32 %v1969, %v2033
      %v2035 = vpop.f32.mrb[0].mxu0
      %v2036 = vpop.f32.mrb[0].mxu0
      %v2037 = vadd.f32 %v1972, %v2036
      %v2038 = vpop.f32.mrb[0].mxu0
      %2039 = vmatprep.mubr.bf16.mxu0 %v1203
      %2040 = vmatmul.mubr.bf16.gmra.mrb[0].mxu0 %v1202
      %v2041 = vpop.f32.mrb[0].mxu0
      %v2042 = vadd.f32 %v1977, %v2041
      %v2043 = vpop.f32.mrb[0].mxu0
      %v2044 = vpop.f32.mrb[0].mxu0
      %v2045 = vadd.f32 %v1980, %v2044
      %v2046 = vpop.f32.mrb[0].mxu0
      %2047 = vdwg.mxu0
      %2048 = vmatprep.subr.bf16.mxu0 0
      %2049 = vmatpush1.bf16.msra.mxu0 %v1708
      %2050 = vmatprep.subr.bf16.mxu0 0
      %2051 = vmatpush1.bf16.msra.mxu0 %v1709
      %2052 = vmatprep.subr.bf16.mxu0 0
      %2053 = vmatpush1.bf16.msra.mxu0 %v1710
      %2054 = vmatprep.subr.bf16.mxu0 0
      %2055 = vmatpush1.bf16.msra.mxu0 %v1711
      %2056 = vmatprep.subr.bf16.mxu0 0
      %2057 = vmatpush1.bf16.msra.mxu0 %v1712
      %2058 = vmatprep.subr.bf16.mxu0 0
      %2059 = vmatpush1.bf16.msra.mxu0 %v1713
      %2060 = vmatprep.subr.bf16.mxu0 0
      %2061 = vmatpush1.bf16.msra.mxu0 %v1714
      %2062 = vmatprep.subr.bf16.mxu0 0
      %2063 = vmatpush1.bf16.msra.mxu0 %v1715
      %2064 = vmatprep.subr.bf16.mxu0 0
      %2065 = vmatpush1.bf16.msra.mxu0 0
      %2066 = vmatprep.subr.bf16.mxu0 0
      %2067 = vmatpush1.bf16.msra.mxu0 0
      %2068 = vmatprep.subr.bf16.mxu0 0
      %2069 = vmatpush1.bf16.msra.mxu0 0
      %2070 = vmatprep.subr.bf16.mxu0 0
      %2071 = vmatpush1.bf16.msra.mxu0 0
      %2072 = vmatprep.subr.bf16.mxu0 0
      %2073 = vmatpush1.bf16.msra.mxu0 0
      %2074 = vmatprep.subr.bf16.mxu0 0
      %2075 = vmatpush1.bf16.msra.mxu0 0
      %2076 = vmatprep.subr.bf16.mxu0 0
      %2077 = vmatpush1.bf16.msra.mxu0 0
      %2078 = vmatprep.subr.bf16.mxu0 0
      %2079 = vmatpush1.bf16.msra.mxu0 0
      %2080 = vmatprep.mubr.bf16.mxu0 0
      %2081 = vmatmul.mubr.bf16.gmra.mrb[0].mxu0 %v1177
      %v2082 = vpop.f32.mrb[0].mxu0
      %v2083 = vadd.f32 %v2018, %v2082
      %v2084 = vpop.f32.mrb[0].mxu0
      %v2085 = vpop.f32.mrb[0].mxu0
      %v2086 = vadd.f32 %v2021, %v2085
      %v2087 = vpop.f32.mrb[0].mxu0
      %2088 = vmatprep.mubr.bf16.mxu0 0
      %2089 = vmatmul.mubr.bf16.gmra.mrb[0].mxu0 %v1186
      %v2090 = vpop.f32.mrb[0].mxu0
      %v2091 = vadd.f32 %v2026, %v2090
      %v2092 = vpop.f32.mrb[0].mxu0
      %v2093 = vpop.f32.mrb[0].mxu0
      %v2094 = vadd.f32 %v2029, %v2093
      %v2095 = vpop.f32.mrb[0].mxu0
      %2096 = vmatprep.mubr.bf16.mxu0 0
      %2097 = vmatmul.mubr.bf16.gmra.mrb[0].mxu0 %v1195
      %v2098 = vpop.f32.mrb[0].mxu0
      %v2099 = vadd.f32 %v2034, %v2098
      %v2100 = vpop.f32.mrb[0].mxu0
      %v2101 = vpop.f32.mrb[0].mxu0
      %v2102 = vadd.f32 %v2037, %v2101
      %v2103 = vpop.f32.mrb[0].mxu0
      %2104 = vmatprep.mubr.bf16.mxu0 0
      %2105 = vmatmul.mubr.bf16.gmra.mrb[0].mxu0 %v1204
      %v2106 = vpop.f32.mrb[0].mxu0
      %v2107 = vadd.f32 %v2042, %v2106
      %v2108 = vpop.f32.mrb[0].mxu0
      %v2109 = vpop.f32.mrb[0].mxu0
      %v2110 = vadd.f32 %v2045, %v2109
      %v2111 = vpop.f32.mrb[0].mxu0
      %2112 = vdwg.mxu0
      %v2113 = vadd.f32 %v2083, %v971
      %v2114 = vadd.f32 %v2086, %v975
      %v2115 = vadd.f32 %v2091, %v981
      %v2116 = vadd.f32 %v2094, %v985
      %v2117 = vadd.f32 %v2099, %v991
      %v2118 = vadd.f32 %v2102, %v995
      %v2119 = vadd.f32 %v2107, %v1001
      %v2120 = vadd.f32 %v2110, %v1005
      %v2121 = vmax.f32 %v2113, 0.0
      %v2122 = vmax.f32 %v2114, 0.0
      %v2123 = vmax.f32 %v2115, 0.0
      %v2124 = vmax.f32 %v2116, 0.0
      %v2125 = vmax.f32 %v2117, 0.0
      %v2126 = vmax.f32 %v2118, 0.0
      %v2127 = vmax.f32 %v2119, 0.0
      %v2128 = vmax.f32 %v2120, 0.0
      %s2129 = scalar_lea.vmem [#allocation4], 16
      %2130 = vst [vmem:[%s2129 + $0x1] sm:$0xff] %v2121
      %2131 = vst [vmem:[%s2129 + $0x11] sm:$0xff] %v2122
      %2132 = vst [vmem:[%s2129 + $0x21] sm:$0xff] %v2123
      %2133 = vst [vmem:[%s2129 + $0x31] sm:$0xff] %v2124
      %2134 = vst [vmem:[%s2129 + $0x41] sm:$0xff] %v2125
      %2135 = vst [vmem:[%s2129 + $0x51] sm:$0xff] %v2126
      %2136 = vst [vmem:[%s2129 + $0x61] sm:$0xff] %v2127
      %2137 = vst [vmem:[%s2129 + $0x71] sm:$0xff] %v2128
      %v2138 = vld [vmem:[#allocation4] sm:$0xff]
      %v2139 = vld [vmem:[#allocation4 + $0x10] sm:$0xff]
      %v2140 = vld [vmem:[#allocation4 + $0x20] sm:$0xff]
      %v2141 = vld [vmem:[#allocation4 + $0x30] sm:$0xff]
      %v2142 = vld [vmem:[#allocation4 + $0x40] sm:$0xff]
      %v2143 = vld [vmem:[#allocation4 + $0x50] sm:$0xff]
      %v2144 = vld [vmem:[#allocation4 + $0x60] sm:$0xff]
      %v2145 = vld [vmem:[#allocation4 + $0x70] sm:$0xff]
      %v2146 = vpack.c.bf16 %v2139, %v2138
      %v2147 = vpack.c.bf16 %v2141, %v2140
      %v2148 = vpack.c.bf16 %v2143, %v2142
      %v2149 = vpack.c.bf16 %v2145, %v2144
      %2150 = vst [vmem:[#allocation2] sm:$0xff] %v2146
      %2151 = vst [vmem:[#allocation2 + $0x48] sm:$0xff] %v2147
      %2152 = vst [vmem:[#allocation2 + $0x90] sm:$0xff] %v2148
      %2153 = vst [vmem:[#allocation2 + $0xd8] sm:$0xff] %v2149
      %v2154 = vld [vmem:[#allocation4 + $0x1] sm:$0xff]
      %v2155 = vld [vmem:[#allocation4 + $0x11] sm:$0xff]
      %v2156 = vld [vmem:[#allocation4 + $0x21] sm:$0xff]
      %v2157 = vld [vmem:[#allocation4 + $0x31] sm:$0xff]
      %v2158 = vld [vmem:[#allocation4 + $0x41] sm:$0xff]
      %v2159 = vld [vmem:[#allocation4 + $0x51] sm:$0xff]
      %v2160 = vld [vmem:[#allocation4 + $0x61] sm:$0xff]
      %v2161 = vld [vmem:[#allocation4 + $0x71] sm:$0xff]
      %v2162 = vpack.c.bf16 %v2155, %v2154
      %v2163 = vpack.c.bf16 %v2157, %v2156
      %v2164 = vpack.c.bf16 %v2159, %v2158
      %v2165 = vpack.c.bf16 %v2161, %v2160
      %2166 = vst [vmem:[#allocation2 + $0x8] sm:$0xff] %v2162
      %2167 = vst [vmem:[#allocation2 + $0x50] sm:$0xff] %v2163
      %2168 = vst [vmem:[#allocation2 + $0x98] sm:$0xff] %v2164
      %2169 = vst [vmem:[#allocation2 + $0xe0] sm:$0xff] %v2165
      %v2170 = vld [vmem:[#allocation4 + $0x2] sm:$0xff]
      %v2171 = vld [vmem:[#allocation4 + $0x12] sm:$0xff]
      %v2172 = vld [vmem:[#allocation4 + $0x22] sm:$0xff]
      %v2173 = vld [vmem:[#allocation4 + $0x32] sm:$0xff]
      %v2174 = vld [vmem:[#allocation4 + $0x42] sm:$0xff]
      %v2175 = vld [vmem:[#allocation4 + $0x52] sm:$0xff]
      %v2176 = vld [vmem:[#allocation4 + $0x62] sm:$0xff]
      %v2177 = vld [vmem:[#allocation4 + $0x72] sm:$0xff]
      %v2178 = vpack.c.bf16 %v2171, %v2170
      %v2179 = vpack.c.bf16 %v2173, %v2172
      %v2180 = vpack.c.bf16 %v2175, %v2174
      %v2181 = vpack.c.bf16 %v2177, %v2176
      %2182 = vst [vmem:[#allocation2 + $0x10] sm:$0xff] %v2178
      %2183 = vst [vmem:[#allocation2 + $0x58] sm:$0xff] %v2179
      %2184 = vst [vmem:[#allocation2 + $0xa0] sm:$0xff] %v2180
      %2185 = vst [vmem:[#allocation2 + $0xe8] sm:$0xff] %v2181
      %v2186 = vld [vmem:[%s2129] sm:$0xff]
      %v2187 = vld [vmem:[%s2129 + $0x10] sm:$0xff]
      %v2188 = vld [vmem:[%s2129 + $0x20] sm:$0xff]
      %v2189 = vld [vmem:[%s2129 + $0x30] sm:$0xff]
      %v2190 = vld [vmem:[%s2129 + $0x40] sm:$0xff]
      %v2191 = vld [vmem:[%s2129 + $0x50] sm:$0xff]
      %v2192 = vld [vmem:[%s2129 + $0x60] sm:$0xff]
      %v2193 = vld [vmem:[%s2129 + $0x70] sm:$0xff]
      %v2194 = vpack.c.bf16 %v2187, %v2186
      %v2195 = vpack.c.bf16 %v2189, %v2188
      %v2196 = vpack.c.bf16 %v2191, %v2190
      %v2197 = vpack.c.bf16 %v2193, %v2192
      %2198 = vst [vmem:[#allocation2 + $0x18] sm:$0xff] %v2194
      %2199 = vst [vmem:[#allocation2 + $0x60] sm:$0xff] %v2195
      %2200 = vst [vmem:[#allocation2 + $0xa8] sm:$0xff] %v2196
      %2201 = vst [vmem:[#allocation2 + $0xf0] sm:$0xff] %v2197
      %v2202 = vld [vmem:[%s2129 + $0x1] sm:$0xff]
      %v2203 = vld [vmem:[%s2129 + $0x11] sm:$0xff]
      %v2204 = vld [vmem:[%s2129 + $0x21] sm:$0xff]
      %v2205 = vld [vmem:[%s2129 + $0x31] sm:$0xff]
      %v2206 = vld [vmem:[%s2129 + $0x41] sm:$0xff]
      %v2207 = vld [vmem:[%s2129 + $0x51] sm:$0xff]
      %v2208 = vld [vmem:[%s2129 + $0x61] sm:$0xff]
      %v2209 = vld [vmem:[%s2129 + $0x71] sm:$0xff]
      %v2210 = vpack.c.bf16 %v2203, %v2202
      %v2211 = vpack.c.bf16 %v2205, %v2204
      %v2212 = vpack.c.bf16 %v2207, %v2206
      %v2213 = vpack.c.bf16 %v2209, %v2208
      %2214 = vst [vmem:[#allocation2 + $0x20] sm:$0xff] %v2210
      %2215 = vst [vmem:[#allocation2 + $0x68] sm:$0xff] %v2211
      %2216 = vst [vmem:[#allocation2 + $0xb0] sm:$0xff] %v2212
      %2217 = vst [vmem:[#allocation2 + $0xf8] sm:$0xff] %v2213
      %v2218 = vld [vmem:[%s2129 + $0x2] sm:$0xff]
      %v2219 = vld [vmem:[%s2129 + $0x12] sm:$0xff]
      %v2220 = vld [vmem:[%s2129 + $0x22] sm:$0xff]
      %v2221 = vld [vmem:[%s2129 + $0x32] sm:$0xff]
      %v2222 = vld [vmem:[%s2129 + $0x42] sm:$0xff]
      %v2223 = vld [vmem:[%s2129 + $0x52] sm:$0xff]
      %v2224 = vld [vmem:[%s2129 + $0x62] sm:$0xff]
      %v2225 = vld [vmem:[%s2129 + $0x72] sm:$0xff]
      %v2226 = vpack.c.bf16 %v2219, %v2218
      %v2227 = vpack.c.bf16 %v2221, %v2220
      %v2228 = vpack.c.bf16 %v2223, %v2222
      %v2229 = vpack.c.bf16 %v2225, %v2224
      %2230 = vst [vmem:[#allocation2 + $0x28] sm:$0xff] %v2226
      %2231 = vst [vmem:[#allocation2 + $0x70] sm:$0xff] %v2227
      %2232 = vst [vmem:[#allocation2 + $0xb8] sm:$0xff] %v2228
      %2233 = vst [vmem:[#allocation2 + $0x100] sm:$0xff] %v2229
      %s2234 = scalar_lea.vmem [#allocation4], 32
      %v2235 = vld [vmem:[%s2234] sm:$0xff]
      %v2236 = vld [vmem:[%s2234 + $0x10] sm:$0xff]
      %v2237 = vld [vmem:[%s2234 + $0x20] sm:$0xff]
      %v2238 = vld [vmem:[%s2234 + $0x30] sm:$0xff]
      %v2239 = vld [vmem:[%s2234 + $0x40] sm:$0xff]
      %v2240 = vld [vmem:[%s2234 + $0x50] sm:$0xff]
      %v2241 = vld [vmem:[%s2234 + $0x60] sm:$0xff]
      %v2242 = vld [vmem:[%s2234 + $0x70] sm:$0xff]
      %v2243 = vpack.c.bf16 %v2236, %v2235
      %v2244 = vpack.c.bf16 %v2238, %v2237
      %v2245 = vpack.c.bf16 %v2240, %v2239
      %v2246 = vpack.c.bf16 %v2242, %v2241
      %2247 = vst [vmem:[#allocation2 + $0x30] sm:$0xff] %v2243
      %2248 = vst [vmem:[#allocation2 + $0x78] sm:$0xff] %v2244
      %2249 = vst [vmem:[#allocation2 + $0xc0] sm:$0xff] %v2245
      %2250 = vst [vmem:[#allocation2 + $0x108] sm:$0xff] %v2246
      %v2251 = vld [vmem:[%s2234 + $0x1] sm:$0xff]
      %v2252 = vld [vmem:[%s2234 + $0x11] sm:$0xff]
      %v2253 = vld [vmem:[%s2234 + $0x21] sm:$0xff]
      %v2254 = vld [vmem:[%s2234 + $0x31] sm:$0xff]
      %v2255 = vld [vmem:[%s2234 + $0x41] sm:$0xff]
      %v2256 = vld [vmem:[%s2234 + $0x51] sm:$0xff]
      %v2257 = vld [vmem:[%s2234 + $0x61] sm:$0xff]
      %v2258 = vld [vmem:[%s2234 + $0x71] sm:$0xff]
      %v2259 = vpack.c.bf16 %v2252, %v2251
      %v2260 = vpack.c.bf16 %v2254, %v2253
      %v2261 = vpack.c.bf16 %v2256, %v2255
      %v2262 = vpack.c.bf16 %v2258, %v2257
      %2263 = vst [vmem:[#allocation2 + $0x38] sm:$0xff] %v2259
      %2264 = vst [vmem:[#allocation2 + $0x80] sm:$0xff] %v2260
      %2265 = vst [vmem:[#allocation2 + $0xc8] sm:$0xff] %v2261
      %2266 = vst [vmem:[#allocation2 + $0x110] sm:$0xff] %v2262
      %v2267 = vld [vmem:[%s2234 + $0x2] sm:$0xff]
      %v2268 = vld [vmem:[%s2234 + $0x12] sm:$0xff]
      %v2269 = vld [vmem:[%s2234 + $0x22] sm:$0xff]
      %v2270 = vld [vmem:[%s2234 + $0x32] sm:$0xff]
      %v2271 = vld [vmem:[%s2234 + $0x42] sm:$0xff]
      %v2272 = vld [vmem:[%s2234 + $0x52] sm:$0xff]
      %v2273 = vld [vmem:[%s2234 + $0x62] sm:$0xff]
      %v2274 = vld [vmem:[%s2234 + $0x72] sm:$0xff]
      %v2275 = vpack.c.bf16 %v2268, %v2267
      %v2276 = vpack.c.bf16 %v2270, %v2269
      %v2277 = vpack.c.bf16 %v2272, %v2271
      %v2278 = vpack.c.bf16 %v2274, %v2273
      %2279 = vst [vmem:[#allocation2 + $0x40] sm:$0xff] %v2275
      %2280 = vst [vmem:[#allocation2 + $0x88] sm:$0xff] %v2276
      %2281 = vst [vmem:[#allocation2 + $0xd0] sm:$0xff] %v2277
      %2282 = vst [vmem:[#allocation2 + $0x118] sm:$0xff] %v2278
      %v2283 = vld [vmem:[#allocation2] sm:$0xff]
      %v2284 = vld [vmem:[#allocation2 + $0x8] sm:$0xff]
      %v2285 = vld [vmem:[#allocation2 + $0x10] sm:$0xff]
      %v2286 = vld [vmem:[#allocation2 + $0x18] sm:$0xff]
      %v2287 = vld [vmem:[#allocation2 + $0x20] sm:$0xff]
      %v2288 = vld [vmem:[#allocation2 + $0x28] sm:$0xff]
      %v2289 = vld [vmem:[#allocation2 + $0x30] sm:$0xff]
      %v2290 = vld [vmem:[#allocation2 + $0x38] sm:$0xff]
      %v2291 = vld [vmem:[#allocation2 + $0x40] sm:$0xff]
      %v2292 = vld [vmem:[#allocation2 + $0x48] sm:$0xff]
      %v2293 = vld [vmem:[#allocation2 + $0x50] sm:$0xff]
      %v2294 = vld [vmem:[#allocation2 + $0x58] sm:$0xff]
      %v2295 = vld [vmem:[#allocation2 + $0x60] sm:$0xff]
      %v2296 = vld [vmem:[#allocation2 + $0x68] sm:$0xff]
      %v2297 = vld [vmem:[#allocation2 + $0x70] sm:$0xff]
      %v2298 = vld [vmem:[#allocation2 + $0x78] sm:$0xff]
      %v2299 = vld [vmem:[#allocation2 + $0x80] sm:$0xff]
      %v2300 = vld [vmem:[#allocation2 + $0x88] sm:$0xff]
      %v2301 = vld [vmem:[#allocation2 + $0x90] sm:$0xff]
      %v2302 = vld [vmem:[#allocation2 + $0x98] sm:$0xff]
      %v2303 = vld [vmem:[#allocation2 + $0xa0] sm:$0xff]
      %v2304 = vld [vmem:[#allocation2 + $0xa8] sm:$0xff]
      %v2305 = vld [vmem:[#allocation2 + $0xb0] sm:$0xff]
      %v2306 = vld [vmem:[#allocation2 + $0xb8] sm:$0xff]
      %v2307 = vld [vmem:[#allocation2 + $0xc0] sm:$0xff]
      %v2308 = vld [vmem:[#allocation2 + $0xc8] sm:$0xff]
      %v2309 = vld [vmem:[#allocation2 + $0xd0] sm:$0xff]
      %v2310 = vld [vmem:[#allocation2 + $0xd8] sm:$0xff]
      %v2311 = vld [vmem:[#allocation2 + $0xe0] sm:$0xff]
      %v2312 = vld [vmem:[#allocation2 + $0xe8] sm:$0xff]
      %v2313 = vld [vmem:[#allocation2 + $0xf0] sm:$0xff]
      %v2314 = vld [vmem:[#allocation2 + $0xf8] sm:$0xff]
      %v2315 = vld [vmem:[#allocation2 + $0x100] sm:$0xff]
      %v2316 = vld [vmem:[#allocation2 + $0x108] sm:$0xff]
      %v2317 = vld [vmem:[#allocation2 + $0x110] sm:$0xff]
      %v2318 = vld [vmem:[#allocation2 + $0x118] sm:$0xff]
      %v2319 = vld [vmem:[%s5] sm:$0xf]
      %v2320 = vld [vmem:[%s5 + $0x4] sm:$0xf]
      %v2321 = vld [vmem:[%s5 + $0x8] sm:$0xf]
      %v2322 = vld [vmem:[%s5 + $0xc] sm:$0xf]
      %v2323 = vld [vmem:[%s5 + $0x10] sm:$0xf]
      %v2324 = vld [vmem:[%s5 + $0x14] sm:$0xf]
      %v2325 = vld [vmem:[%s5 + $0x18] sm:$0xf]
      %v2326 = vld [vmem:[%s5 + $0x1c] sm:$0xf]
      %v2327 = vld [vmem:[%s5 + $0x20] sm:$0xf]
      %v2328 = vld [vmem:[%s5 + $0x24] sm:$0xf]
      %v2329 = vld [vmem:[%s5 + $0x28] sm:$0xf]
      %v2330 = vld [vmem:[%s5 + $0x2c] sm:$0xf]
      %v2331 = vld [vmem:[%s5 + $0x30] sm:$0xf]
      %v2332 = vld [vmem:[%s5 + $0x34] sm:$0xf]
      %v2333 = vld [vmem:[%s5 + $0x38] sm:$0xf]
      %v2334 = vld [vmem:[%s5 + $0x3c] sm:$0xf]
      %v2335 = vld [vmem:[%s5 + $0x40] sm:$0xf]
      %v2336 = vld [vmem:[%s5 + $0x44] sm:$0xf]
      %v2337 = vld [vmem:[%s5 + $0x48] sm:$0xf]
      %v2338 = vld [vmem:[%s5 + $0x4c] sm:$0xf]
      %v2339 = vld [vmem:[%s5 + $0x50] sm:$0xf]
      %v2340 = vld [vmem:[%s5 + $0x54] sm:$0xf]
      %v2341 = vld [vmem:[%s5 + $0x58] sm:$0xf]
      %v2342 = vld [vmem:[%s5 + $0x5c] sm:$0xf]
      %v2343 = vld [vmem:[%s5 + $0x60] sm:$0xf]
      %v2344 = vld [vmem:[%s5 + $0x64] sm:$0xf]
      %v2345 = vld [vmem:[%s5 + $0x68] sm:$0xf]
      %v2346 = vld [vmem:[%s5 + $0x6c] sm:$0xf]
      %v2347 = vld [vmem:[%s5 + $0x70] sm:$0xf]
      %v2348 = vld [vmem:[%s5 + $0x74] sm:$0xf]
      %v2349 = vld [vmem:[%s5 + $0x78] sm:$0xf]
      %v2350 = vld [vmem:[%s5 + $0x7c] sm:$0xf]
      %v2351 = vld [vmem:[%s5 + $0x80] sm:$0xf]
      %v2352 = vld [vmem:[%s5 + $0x84] sm:$0xf]
      %v2353 = vld [vmem:[%s5 + $0x88] sm:$0xf]
      %v2354 = vld [vmem:[%s5 + $0x8c] sm:$0xf]
      %v2355 = vld [vmem:[%s5 + $0x90] sm:$0xf]
      %v2356 = vld [vmem:[%s5 + $0x94] sm:$0xf]
      %v2357 = vld [vmem:[%s5 + $0x98] sm:$0xf]
      %v2358 = vld [vmem:[%s5 + $0x9c] sm:$0xf]
      %v2359 = vld [vmem:[%s5 + $0xa0] sm:$0xf]
      %v2360 = vld [vmem:[%s5 + $0xa4] sm:$0xf]
      %v2361 = vld [vmem:[%s5 + $0xa8] sm:$0xf]
      %v2362 = vld [vmem:[%s5 + $0xac] sm:$0xf]
      %v2363 = vld [vmem:[%s5 + $0xb0] sm:$0xf]
      %v2364 = vld [vmem:[%s5 + $0xb4] sm:$0xf]
      %v2365 = vld [vmem:[%s5 + $0xb8] sm:$0xf]
      %v2366 = vld [vmem:[%s5 + $0xbc] sm:$0xf]
      %v2367 = vld [vmem:[%s5 + $0xc0] sm:$0xf]
      %v2368 = vld [vmem:[%s5 + $0xc4] sm:$0xf]
      %v2369 = vld [vmem:[%s5 + $0xc8] sm:$0xf]
      %v2370 = vld [vmem:[%s5 + $0xcc] sm:$0xf]
      %v2371 = vld [vmem:[%s5 + $0xd0] sm:$0xf]
      %v2372 = vld [vmem:[%s5 + $0xd4] sm:$0xf]
      %v2373 = vld [vmem:[%s5 + $0xd8] sm:$0xf]
      %v2374 = vld [vmem:[%s5 + $0xdc] sm:$0xf]
      %v2375 = vld [vmem:[%s5 + $0xe0] sm:$0xf]
      %v2376 = vld [vmem:[%s5 + $0xe4] sm:$0xf]
      %v2377 = vld [vmem:[%s5 + $0xe8] sm:$0xf]
      %v2378 = vld [vmem:[%s5 + $0xec] sm:$0xf]
      %v2379 = vld [vmem:[%s5 + $0xf0] sm:$0xf]
      %v2380 = vld [vmem:[%s5 + $0xf4] sm:$0xf]
      %v2381 = vld [vmem:[%s5 + $0xf8] sm:$0xf]
      %v2382 = vld [vmem:[%s5 + $0xfc] sm:$0xf]
      %v2383 = vld [vmem:[%s5 + $0x100] sm:$0xf]
      %v2384 = vld [vmem:[%s5 + $0x104] sm:$0xf]
      %v2385 = vld [vmem:[%s5 + $0x108] sm:$0xf]
      %v2386 = vld [vmem:[%s5 + $0x10c] sm:$0xf]
      %v2387 = vld [vmem:[%s5 + $0x110] sm:$0xf]
      %v2388 = vld [vmem:[%s5 + $0x114] sm:$0xf]
      %v2389 = vld [vmem:[%s5 + $0x118] sm:$0xf]
      %v2390 = vld [vmem:[%s5 + $0x11c] sm:$0xf]
      %v2391 = vld [vmem:[%s5 + $0x120] sm:$0xf]
      %v2392 = vld [vmem:[%s5 + $0x124] sm:$0xf]
      %v2393 = vld [vmem:[%s5 + $0x128] sm:$0xf]
      %v2394 = vld [vmem:[%s5 + $0x12c] sm:$0xf]
      %v2395 = vld [vmem:[%s5 + $0x130] sm:$0xf]
      %v2396 = vld [vmem:[%s5 + $0x134] sm:$0xf]
      %v2397 = vld [vmem:[%s5 + $0x138] sm:$0xf]
      %v2398 = vld [vmem:[%s5 + $0x13c] sm:$0xf]
      %v2399 = vld [vmem:[%s5 + $0x140] sm:$0xf]
      %v2400 = vld [vmem:[%s5 + $0x144] sm:$0xf]
      %v2401 = vld [vmem:[%s5 + $0x148] sm:$0xf]
      %v2402 = vld [vmem:[%s5 + $0x14c] sm:$0xf]
      %v2403 = vld [vmem:[%s5 + $0x150] sm:$0xf]
      %v2404 = vld [vmem:[%s5 + $0x154] sm:$0xf]
      %v2405 = vld [vmem:[%s5 + $0x158] sm:$0xf]
      %v2406 = vld [vmem:[%s5 + $0x15c] sm:$0xf]
      %v2407 = vld [vmem:[%s5 + $0x160] sm:$0xf]
      %v2408 = vld [vmem:[%s5 + $0x164] sm:$0xf]
      %v2409 = vld [vmem:[%s5 + $0x168] sm:$0xf]
      %v2410 = vld [vmem:[%s5 + $0x16c] sm:$0xf]
      %v2411 = vld [vmem:[%s5 + $0x170] sm:$0xf]
      %v2412 = vld [vmem:[%s5 + $0x174] sm:$0xf]
      %v2413 = vld [vmem:[%s5 + $0x178] sm:$0xf]
      %v2414 = vld [vmem:[%s5 + $0x17c] sm:$0xf]
      %v2415 = vld [vmem:[%s5 + $0x180] sm:$0xf]
      %v2416 = vld [vmem:[%s5 + $0x184] sm:$0xf]
      %v2417 = vld [vmem:[%s5 + $0x188] sm:$0xf]
      %v2418 = vld [vmem:[%s5 + $0x18c] sm:$0xf]
      %v2419 = vld [vmem:[%s5 + $0x190] sm:$0xf]
      %v2420 = vld [vmem:[%s5 + $0x194] sm:$0xf]
      %v2421 = vld [vmem:[%s5 + $0x198] sm:$0xf]
      %v2422 = vld [vmem:[%s5 + $0x19c] sm:$0xf]
      %v2423 = vld [vmem:[%s5 + $0x1a0] sm:$0xf]
      %v2424 = vld [vmem:[%s5 + $0x1a4] sm:$0xf]
      %v2425 = vld [vmem:[%s5 + $0x1a8] sm:$0xf]
      %v2426 = vld [vmem:[%s5 + $0x1ac] sm:$0xf]
      %v2427 = vld [vmem:[%s5 + $0x1b0] sm:$0xf]
      %v2428 = vld [vmem:[%s5 + $0x1b4] sm:$0xf]
      %v2429 = vld [vmem:[%s5 + $0x1b8] sm:$0xf]
      %v2430 = vld [vmem:[%s5 + $0x1bc] sm:$0xf]
      %v2431 = vld [vmem:[%s5 + $0x1c0] sm:$0xf]
      %v2432 = vld [vmem:[%s5 + $0x1c4] sm:$0xf]
      %v2433 = vld [vmem:[%s5 + $0x1c8] sm:$0xf]
      %v2434 = vld [vmem:[%s5 + $0x1cc] sm:$0xf]
      %v2435 = vld [vmem:[%s5 + $0x1d0] sm:$0xf]
      %v2436 = vld [vmem:[%s5 + $0x1d4] sm:$0xf]
      %v2437 = vld [vmem:[%s5 + $0x1d8] sm:$0xf]
      %v2438 = vld [vmem:[%s5 + $0x1dc] sm:$0xf]
      %v2439 = vld [vmem:[%s5 + $0x1e0] sm:$0xf]
      %v2440 = vld [vmem:[%s5 + $0x1e4] sm:$0xf]
      %v2441 = vld [vmem:[%s5 + $0x1e8] sm:$0xf]
      %v2442 = vld [vmem:[%s5 + $0x1ec] sm:$0xf]
      %v2443 = vld [vmem:[%s5 + $0x1f0] sm:$0xf]
      %v2444 = vld [vmem:[%s5 + $0x1f4] sm:$0xf]
      %v2445 = vld [vmem:[%s5 + $0x1f8] sm:$0xf]
      %v2446 = vld [vmem:[%s5 + $0x1fc] sm:$0xf]
      %v2447 = vld [vmem:[%s5 + $0x200] sm:$0xf]
      %v2448 = vld [vmem:[%s5 + $0x204] sm:$0xf]
      %v2449 = vld [vmem:[%s5 + $0x208] sm:$0xf]
      %v2450 = vld [vmem:[%s5 + $0x20c] sm:$0xf]
      %v2451 = vld [vmem:[%s5 + $0x210] sm:$0xf]
      %v2452 = vld [vmem:[%s5 + $0x214] sm:$0xf]
      %v2453 = vld [vmem:[%s5 + $0x218] sm:$0xf]
      %v2454 = vld [vmem:[%s5 + $0x21c] sm:$0xf]
      %v2455 = vld [vmem:[%s5 + $0x220] sm:$0xf]
      %v2456 = vld [vmem:[%s5 + $0x224] sm:$0xf]
      %v2457 = vld [vmem:[%s5 + $0x228] sm:$0xf]
      %v2458 = vld [vmem:[%s5 + $0x22c] sm:$0xf]
      %v2459 = vld [vmem:[%s5 + $0x230] sm:$0xf]
      %v2460 = vld [vmem:[%s5 + $0x234] sm:$0xf]
      %v2461 = vld [vmem:[%s5 + $0x238] sm:$0xf]
      %v2462 = vld [vmem:[%s5 + $0x23c] sm:$0xf]
      %v2463 = vld [vmem:[%s6] sm:$0x1]
      %v2465 = vlaneseq
      %v2466 = vshrl.u32 %v2465, 7
      %v2467 = vsub.s32 0, %v2466
      %v2468 = vrot.slane %v2463, %v2467
      %v2614 = vunpack.c.l.b16 %v2319
      %v2615 = vunpack.c.l.b16 %v2320
      %v2616 = vunpack.c.l.b16 %v2321
      %v2617 = vunpack.c.l.b16 %v2322
      %v2618 = vunpack.c.l.b16 %v2323
      %v2619 = vunpack.c.l.b16 %v2324
      %v2620 = vunpack.c.l.b16 %v2325
      %v2621 = vunpack.c.l.b16 %v2326
      %v2622 = vunpack.c.l.b16 %v2327
      %v2623 = vunpack.c.l.b16 %v2328
      %v2624 = vunpack.c.l.b16 %v2329
      %v2625 = vunpack.c.l.b16 %v2330
      %v2626 = vunpack.c.l.b16 %v2331
      %v2627 = vunpack.c.l.b16 %v2332
      %v2628 = vunpack.c.l.b16 %v2333
      %v2629 = vunpack.c.l.b16 %v2334
      %v2630 = vunpack.c.l.b16 %v2335
      %v2631 = vunpack.c.l.b16 %v2336
      %v2632 = vunpack.c.l.b16 %v2337
      %v2633 = vunpack.c.l.b16 %v2338
      %v2634 = vunpack.c.l.b16 %v2339
      %v2635 = vunpack.c.l.b16 %v2340
      %v2636 = vunpack.c.l.b16 %v2341
      %v2637 = vunpack.c.l.b16 %v2342
      %v2638 = vunpack.c.l.b16 %v2343
      %v2639 = vunpack.c.l.b16 %v2344
      %v2640 = vunpack.c.l.b16 %v2345
      %v2641 = vunpack.c.l.b16 %v2346
      %v2642 = vunpack.c.l.b16 %v2347
      %v2643 = vunpack.c.l.b16 %v2348
      %v2644 = vunpack.c.l.b16 %v2349
      %v2645 = vunpack.c.l.b16 %v2350
      %v2646 = vunpack.c.l.b16 %v2351
      %v2647 = vunpack.c.l.b16 %v2352
      %v2648 = vunpack.c.l.b16 %v2353
      %v2649 = vunpack.c.l.b16 %v2354
      %v2650 = vunpack.c.l.b16 %v2355
      %v2651 = vunpack.c.l.b16 %v2356
      %v2652 = vunpack.c.l.b16 %v2357
      %v2653 = vunpack.c.l.b16 %v2358
      %v2654 = vunpack.c.l.b16 %v2359
      %v2655 = vunpack.c.l.b16 %v2360
      %v2656 = vunpack.c.l.b16 %v2361
      %v2657 = vunpack.c.l.b16 %v2362
      %v2658 = vunpack.c.l.b16 %v2363
      %v2659 = vunpack.c.l.b16 %v2364
      %v2660 = vunpack.c.l.b16 %v2365
      %v2661 = vunpack.c.l.b16 %v2366
      %v2662 = vunpack.c.l.b16 %v2367
      %v2663 = vunpack.c.l.b16 %v2368
      %v2664 = vunpack.c.l.b16 %v2369
      %v2665 = vunpack.c.l.b16 %v2370
      %v2666 = vunpack.c.l.b16 %v2371
      %v2667 = vunpack.c.l.b16 %v2372
      %v2668 = vunpack.c.l.b16 %v2373
      %v2669 = vunpack.c.l.b16 %v2374
      %v2670 = vunpack.c.l.b16 %v2375
      %v2671 = vunpack.c.l.b16 %v2376
      %v2672 = vunpack.c.l.b16 %v2377
      %v2673 = vunpack.c.l.b16 %v2378
      %v2674 = vunpack.c.l.b16 %v2379
      %v2675 = vunpack.c.l.b16 %v2380
      %v2676 = vunpack.c.l.b16 %v2381
      %v2677 = vunpack.c.l.b16 %v2382
      %v2678 = vunpack.c.l.b16 %v2383
      %v2679 = vunpack.c.l.b16 %v2384
      %v2680 = vunpack.c.l.b16 %v2385
      %v2681 = vunpack.c.l.b16 %v2386
      %v2682 = vunpack.c.l.b16 %v2387
      %v2683 = vunpack.c.l.b16 %v2388
      %v2684 = vunpack.c.l.b16 %v2389
      %v2685 = vunpack.c.l.b16 %v2390
      %v2686 = vunpack.c.l.b16 %v2391
      %v2687 = vunpack.c.l.b16 %v2392
      %v2688 = vunpack.c.l.b16 %v2393
      %v2689 = vunpack.c.l.b16 %v2394
      %v2690 = vunpack.c.l.b16 %v2395
      %v2691 = vunpack.c.l.b16 %v2396
      %v2692 = vunpack.c.l.b16 %v2397
      %v2693 = vunpack.c.l.b16 %v2398
      %v2694 = vunpack.c.l.b16 %v2399
      %v2695 = vunpack.c.l.b16 %v2400
      %v2696 = vunpack.c.l.b16 %v2401
      %v2697 = vunpack.c.l.b16 %v2402
      %v2698 = vunpack.c.l.b16 %v2403
      %v2699 = vunpack.c.l.b16 %v2404
      %v2700 = vunpack.c.l.b16 %v2405
      %v2701 = vunpack.c.l.b16 %v2406
      %v2702 = vunpack.c.l.b16 %v2407
      %v2703 = vunpack.c.l.b16 %v2408
      %v2704 = vunpack.c.l.b16 %v2409
      %v2705 = vunpack.c.l.b16 %v2410
      %v2706 = vunpack.c.l.b16 %v2411
      %v2707 = vunpack.c.l.b16 %v2412
      %v2708 = vunpack.c.l.b16 %v2413
      %v2709 = vunpack.c.l.b16 %v2414
      %v2710 = vunpack.c.l.b16 %v2415
      %v2711 = vunpack.c.l.b16 %v2416
      %v2712 = vunpack.c.l.b16 %v2417
      %v2713 = vunpack.c.l.b16 %v2418
      %v2714 = vunpack.c.l.b16 %v2419
      %v2715 = vunpack.c.l.b16 %v2420
      %v2716 = vunpack.c.l.b16 %v2421
      %v2717 = vunpack.c.l.b16 %v2422
      %v2718 = vunpack.c.l.b16 %v2423
      %v2719 = vunpack.c.l.b16 %v2424
      %v2720 = vunpack.c.l.b16 %v2425
      %v2721 = vunpack.c.l.b16 %v2426
      %v2722 = vunpack.c.l.b16 %v2427
      %v2723 = vunpack.c.l.b16 %v2428
      %v2724 = vunpack.c.l.b16 %v2429
      %v2725 = vunpack.c.l.b16 %v2430
      %v2726 = vunpack.c.l.b16 %v2431
      %v2727 = vunpack.c.l.b16 %v2432
      %v2728 = vunpack.c.l.b16 %v2433
      %v2729 = vunpack.c.l.b16 %v2434
      %v2730 = vunpack.c.l.b16 %v2435
      %v2731 = vunpack.c.l.b16 %v2436
      %v2732 = vunpack.c.l.b16 %v2437
      %v2733 = vunpack.c.l.b16 %v2438
      %v2734 = vunpack.c.l.b16 %v2439
      %v2735 = vunpack.c.l.b16 %v2440
      %v2736 = vunpack.c.l.b16 %v2441
      %v2737 = vunpack.c.l.b16 %v2442
      %v2738 = vunpack.c.l.b16 %v2443
      %v2739 = vunpack.c.l.b16 %v2444
      %v2740 = vunpack.c.l.b16 %v2445
      %v2741 = vunpack.c.l.b16 %v2446
      %v2742 = vunpack.c.l.b16 %v2447
      %v2743 = vunpack.c.l.b16 %v2448
      %v2744 = vunpack.c.l.b16 %v2449
      %v2745 = vunpack.c.l.b16 %v2450
      %v2746 = vunpack.c.l.b16 %v2451
      %v2747 = vunpack.c.l.b16 %v2452
      %v2748 = vunpack.c.l.b16 %v2453
      %v2749 = vunpack.c.l.b16 %v2454
      %v2750 = vunpack.c.l.b16 %v2455
      %v2751 = vunpack.c.l.b16 %v2456
      %v2752 = vunpack.c.l.b16 %v2457
      %v2753 = vunpack.c.l.b16 %v2458
      %v2754 = vunpack.c.l.b16 %v2459
      %v2755 = vunpack.c.l.b16 %v2460
      %v2756 = vunpack.c.l.b16 %v2461
      %v2757 = vunpack.c.l.b16 %v2462
      %v2758 = vpack.c.b16 %v2615, %v2614
      %v2759 = vpack.c.b16 %v2617, %v2616
      %v2760 = vpack.c.b16 %v2619, %v2618
      %v2761 = vpack.c.b16 %v2621, %v2620
      %v2762 = vpack.c.b16 %v2623, %v2622
      %v2763 = vpack.c.b16 %v2625, %v2624
      %v2764 = vpack.c.b16 %v2627, %v2626
      %v2765 = vpack.c.b16 %v2629, %v2628
      %v2766 = vpack.c.b16 %v2631, %v2630
      %v2767 = vpack.c.b16 %v2633, %v2632
      %v2768 = vpack.c.b16 %v2635, %v2634
      %v2769 = vpack.c.b16 %v2637, %v2636
      %v2770 = vpack.c.b16 %v2639, %v2638
      %v2771 = vpack.c.b16 %v2641, %v2640
      %v2772 = vpack.c.b16 %v2643, %v2642
      %v2773 = vpack.c.b16 %v2645, %v2644
      %v2774 = vpack.c.b16 %v2647, %v2646
      %v2775 = vpack.c.b16 %v2649, %v2648
      %v2776 = vpack.c.b16 %v2651, %v2650
      %v2777 = vpack.c.b16 %v2653, %v2652
      %v2778 = vpack.c.b16 %v2655, %v2654
      %v2779 = vpack.c.b16 %v2657, %v2656
      %v2780 = vpack.c.b16 %v2659, %v2658
      %v2781 = vpack.c.b16 %v2661, %v2660
      %v2782 = vpack.c.b16 %v2663, %v2662
      %v2783 = vpack.c.b16 %v2665, %v2664
      %v2784 = vpack.c.b16 %v2667, %v2666
      %v2785 = vpack.c.b16 %v2669, %v2668
      %v2786 = vpack.c.b16 %v2671, %v2670
      %v2787 = vpack.c.b16 %v2673, %v2672
      %v2788 = vpack.c.b16 %v2675, %v2674
      %v2789 = vpack.c.b16 %v2677, %v2676
      %v2790 = vpack.c.b16 %v2679, %v2678
      %v2791 = vpack.c.b16 %v2681, %v2680
      %v2792 = vpack.c.b16 %v2683, %v2682
      %v2793 = vpack.c.b16 %v2685, %v2684
      %v2794 = vpack.c.b16 %v2687, %v2686
      %v2795 = vpack.c.b16 %v2689, %v2688
      %v2796 = vpack.c.b16 %v2691, %v2690
      %v2797 = vpack.c.b16 %v2693, %v2692
      %v2798 = vpack.c.b16 %v2695, %v2694
      %v2799 = vpack.c.b16 %v2697, %v2696
      %v2800 = vpack.c.b16 %v2699, %v2698
      %v2801 = vpack.c.b16 %v2701, %v2700
      %v2802 = vpack.c.b16 %v2703, %v2702
      %v2803 = vpack.c.b16 %v2705, %v2704
      %v2804 = vpack.c.b16 %v2707, %v2706
      %v2805 = vpack.c.b16 %v2709, %v2708
      %v2806 = vpack.c.b16 %v2711, %v2710
      %v2807 = vpack.c.b16 %v2713, %v2712
      %v2808 = vpack.c.b16 %v2715, %v2714
      %v2809 = vpack.c.b16 %v2717, %v2716
      %v2810 = vpack.c.b16 %v2719, %v2718
      %v2811 = vpack.c.b16 %v2721, %v2720
      %v2812 = vpack.c.b16 %v2723, %v2722
      %v2813 = vpack.c.b16 %v2725, %v2724
      %v2814 = vpack.c.b16 %v2727, %v2726
      %v2815 = vpack.c.b16 %v2729, %v2728
      %v2816 = vpack.c.b16 %v2731, %v2730
      %v2817 = vpack.c.b16 %v2733, %v2732
      %v2818 = vpack.c.b16 %v2735, %v2734
      %v2819 = vpack.c.b16 %v2737, %v2736
      %v2820 = vpack.c.b16 %v2739, %v2738
      %v2821 = vpack.c.b16 %v2741, %v2740
      %v2822 = vpack.c.b16 %v2743, %v2742
      %v2823 = vpack.c.b16 %v2745, %v2744
      %v2824 = vpack.c.b16 %v2747, %v2746
      %v2825 = vpack.c.b16 %v2749, %v2748
      %v2826 = vpack.c.b16 %v2751, %v2750
      %v2827 = vpack.c.b16 %v2753, %v2752
      %v2828 = vpack.c.b16 %v2755, %v2754
      %v2829 = vpack.c.b16 %v2757, %v2756
      %2902 = vmatprep.subr.bf16.mxu0 0
      %2903 = vmatpush1.bf16.msra.mxu0 %v2758
      %2904 = vmatprep.subr.bf16.mxu0 0
      %2905 = vmatpush1.bf16.msra.mxu0 %v2759
      %2906 = vmatprep.subr.bf16.mxu0 0
      %2907 = vmatpush1.bf16.msra.mxu0 %v2760
      %2908 = vmatprep.subr.bf16.mxu0 0
      %2909 = vmatpush1.bf16.msra.mxu0 %v2761
      %2910 = vmatprep.subr.bf16.mxu0 0
      %2911 = vmatpush1.bf16.msra.mxu0 %v2762
      %2912 = vmatprep.subr.bf16.mxu0 0
      %2913 = vmatpush1.bf16.msra.mxu0 %v2763
      %2914 = vmatprep.subr.bf16.mxu0 0
      %2915 = vmatpush1.bf16.msra.mxu0 %v2764
      %2916 = vmatprep.subr.bf16.mxu0 0
      %2917 = vmatpush1.bf16.msra.mxu0 %v2765
      %2918 = vmatprep.subr.bf16.mxu0 0
      %2919 = vmatpush1.bf16.msra.mxu0 %v2766
      %2920 = vmatprep.subr.bf16.mxu0 0
      %2921 = vmatpush1.bf16.msra.mxu0 %v2767
      %2922 = vmatprep.subr.bf16.mxu0 0
      %2923 = vmatpush1.bf16.msra.mxu0 %v2768
      %2924 = vmatprep.subr.bf16.mxu0 0
      %2925 = vmatpush1.bf16.msra.mxu0 %v2769
      %2926 = vmatprep.subr.bf16.mxu0 0
      %2927 = vmatpush1.bf16.msra.mxu0 %v2770
      %2928 = vmatprep.subr.bf16.mxu0 0
      %2929 = vmatpush1.bf16.msra.mxu0 %v2771
      %2930 = vmatprep.subr.bf16.mxu0 0
      %2931 = vmatpush1.bf16.msra.mxu0 %v2772
      %2932 = vmatprep.subr.bf16.mxu0 0
      %2933 = vmatpush1.bf16.msra.mxu0 %v2773
      %2934 = vmatprep.mubr.bf16.mxu0 %v2284
      %2935 = vmatmul.mubr.bf16.gmra.mrb[0].mxu0 %v2283
      %v2936 = vpop.f32.mrb[0].mxu0
      %v2937 = vadd.f32 %v2468, %v2936
      %v2938 = vpop.f32.mrb[0].mxu0
      %v2939 = vpop.f32.mrb[0].mxu0
      %v2940 = vadd.f32 %v2468, %v2939
      %v2941 = vpop.f32.mrb[0].mxu0
      %2942 = vmatprep.mubr.bf16.mxu0 %v2293
      %2943 = vmatmul.mubr.bf16.gmra.mrb[0].mxu0 %v2292
      %v2944 = vpop.f32.mrb[0].mxu0
      %v2945 = vadd.f32 %v2468, %v2944
      %v2946 = vpop.f32.mrb[0].mxu0
      %v2947 = vpop.f32.mrb[0].mxu0
      %v2948 = vadd.f32 %v2468, %v2947
      %v2949 = vpop.f32.mrb[0].mxu0
      %2950 = vmatprep.mubr.bf16.mxu0 %v2302
      %2951 = vmatmul.mubr.bf16.gmra.mrb[0].mxu0 %v2301
      %v2952 = vpop.f32.mrb[0].mxu0
      %v2953 = vadd.f32 %v2468, %v2952
      %v2954 = vpop.f32.mrb[0].mxu0
      %v2955 = vpop.f32.mrb[0].mxu0
      %v2956 = vadd.f32 %v2468, %v2955
      %v2957 = vpop.f32.mrb[0].mxu0
      %2958 = vmatprep.mubr.bf16.mxu0 %v2311
      %2959 = vmatmul.mubr.bf16.gmra.mrb[0].mxu0 %v2310
      %v2960 = vpop.f32.mrb[0].mxu0
      %v2961 = vadd.f32 %v2468, %v2960
      %v2962 = vpop.f32.mrb[0].mxu0
      %v2963 = vpop.f32.mrb[0].mxu0
      %v2964 = vadd.f32 %v2468, %v2963
      %v2965 = vpop.f32.mrb[0].mxu0
      %2966 = vdwg.mxu0
      %2967 = vmatprep.subr.bf16.mxu0 0
      %2968 = vmatpush1.bf16.msra.mxu0 %v2774
      %2969 = vmatprep.subr.bf16.mxu0 0
      %2970 = vmatpush1.bf16.msra.mxu0 %v2775
      %2971 = vmatprep.subr.bf16.mxu0 0
      %2972 = vmatpush1.bf16.msra.mxu0 %v2776
      %2973 = vmatprep.subr.bf16.mxu0 0
      %2974 = vmatpush1.bf16.msra.mxu0 %v2777
      %2975 = vmatprep.subr.bf16.mxu0 0
      %2976 = vmatpush1.bf16.msra.mxu0 %v2778
      %2977 = vmatprep.subr.bf16.mxu0 0
      %2978 = vmatpush1.bf16.msra.mxu0 %v2779
      %2979 = vmatprep.subr.bf16.mxu0 0
      %2980 = vmatpush1.bf16.msra.mxu0 %v2780
      %2981 = vmatprep.subr.bf16.mxu0 0
      %2982 = vmatpush1.bf16.msra.mxu0 %v2781
      %2983 = vmatprep.subr.bf16.mxu0 0
      %2984 = vmatpush1.bf16.msra.mxu0 %v2782
      %2985 = vmatprep.subr.bf16.mxu0 0
      %2986 = vmatpush1.bf16.msra.mxu0 %v2783
      %2987 = vmatprep.subr.bf16.mxu0 0
      %2988 = vmatpush1.bf16.msra.mxu0 %v2784
      %2989 = vmatprep.subr.bf16.mxu0 0
      %2990 = vmatpush1.bf16.msra.mxu0 %v2785
      %2991 = vmatprep.subr.bf16.mxu0 0
      %2992 = vmatpush1.bf16.msra.mxu0 %v2786
      %2993 = vmatprep.subr.bf16.mxu0 0
      %2994 = vmatpush1.bf16.msra.mxu0 %v2787
      %2995 = vmatprep.subr.bf16.mxu0 0
      %2996 = vmatpush1.bf16.msra.mxu0 %v2788
      %2997 = vmatprep.subr.bf16.mxu0 0
      %2998 = vmatpush1.bf16.msra.mxu0 %v2789
      %2999 = vmatprep.mubr.bf16.mxu0 %v2286
      %3000 = vmatmul.mubr.bf16.gmra.mrb[0].mxu0 %v2285
      %v3001 = vpop.f32.mrb[0].mxu0
      %v3002 = vadd.f32 %v2937, %v3001
      %v3003 = vpop.f32.mrb[0].mxu0
      %v3004 = vpop.f32.mrb[0].mxu0
      %v3005 = vadd.f32 %v2940, %v3004
      %v3006 = vpop.f32.mrb[0].mxu0
      %3007 = vmatprep.mubr.bf16.mxu0 %v2295
      %3008 = vmatmul.mubr.bf16.gmra.mrb[0].mxu0 %v2294
      %v3009 = vpop.f32.mrb[0].mxu0
      %v3010 = vadd.f32 %v2945, %v3009
      %v3011 = vpop.f32.mrb[0].mxu0
      %v3012 = vpop.f32.mrb[0].mxu0
      %v3013 = vadd.f32 %v2948, %v3012
      %v3014 = vpop.f32.mrb[0].mxu0
      %3015 = vmatprep.mubr.bf16.mxu0 %v2304
      %3016 = vmatmul.mubr.bf16.gmra.mrb[0].mxu0 %v2303
      %v3017 = vpop.f32.mrb[0].mxu0
      %v3018 = vadd.f32 %v2953, %v3017
      %v3019 = vpop.f32.mrb[0].mxu0
      %v3020 = vpop.f32.mrb[0].mxu0
      %v3021 = vadd.f32 %v2956, %v3020
      %v3022 = vpop.f32.mrb[0].mxu0
      %3023 = vmatprep.mubr.bf16.mxu0 %v2313
      %3024 = vmatmul.mubr.bf16.gmra.mrb[0].mxu0 %v2312
      %v3025 = vpop.f32.mrb[0].mxu0
      %v3026 = vadd.f32 %v2961, %v3025
      %v3027 = vpop.f32.mrb[0].mxu0
      %v3028 = vpop.f32.mrb[0].mxu0
      %v3029 = vadd.f32 %v2964, %v3028
      %v3030 = vpop.f32.mrb[0].mxu0
      %3031 = vdwg.mxu0
      %3032 = vmatprep.subr.bf16.mxu0 0
      %3033 = vmatpush1.bf16.msra.mxu0 %v2790
      %3034 = vmatprep.subr.bf16.mxu0 0
      %3035 = vmatpush1.bf16.msra.mxu0 %v2791
      %3036 = vmatprep.subr.bf16.mxu0 0
      %3037 = vmatpush1.bf16.msra.mxu0 %v2792
      %3038 = vmatprep.subr.bf16.mxu0 0
      %3039 = vmatpush1.bf16.msra.mxu0 %v2793
      %3040 = vmatprep.subr.bf16.mxu0 0
      %3041 = vmatpush1.bf16.msra.mxu0 %v2794
      %3042 = vmatprep.subr.bf16.mxu0 0
      %3043 = vmatpush1.bf16.msra.mxu0 %v2795
      %3044 = vmatprep.subr.bf16.mxu0 0
      %3045 = vmatpush1.bf16.msra.mxu0 %v2796
      %3046 = vmatprep.subr.bf16.mxu0 0
      %3047 = vmatpush1.bf16.msra.mxu0 %v2797
      %3048 = vmatprep.subr.bf16.mxu0 0
      %3049 = vmatpush1.bf16.msra.mxu0 %v2798
      %3050 = vmatprep.subr.bf16.mxu0 0
      %3051 = vmatpush1.bf16.msra.mxu0 %v2799
      %3052 = vmatprep.subr.bf16.mxu0 0
      %3053 = vmatpush1.bf16.msra.mxu0 %v2800
      %3054 = vmatprep.subr.bf16.mxu0 0
      %3055 = vmatpush1.bf16.msra.mxu0 %v2801
      %3056 = vmatprep.subr.bf16.mxu0 0
      %3057 = vmatpush1.bf16.msra.mxu0 %v2802
      %3058 = vmatprep.subr.bf16.mxu0 0
      %3059 = vmatpush1.bf16.msra.mxu0 %v2803
      %3060 = vmatprep.subr.bf16.mxu0 0
      %3061 = vmatpush1.bf16.msra.mxu0 %v2804
      %3062 = vmatprep.subr.bf16.mxu0 0
      %3063 = vmatpush1.bf16.msra.mxu0 %v2805
      %3064 = vmatprep.mubr.bf16.mxu0 %v2288
      %3065 = vmatmul.mubr.bf16.gmra.mrb[0].mxu0 %v2287
      %v3066 = vpop.f32.mrb[0].mxu0
      %v3067 = vadd.f32 %v3002, %v3066
      %v3068 = vpop.f32.mrb[0].mxu0
      %v3069 = vpop.f32.mrb[0].mxu0
      %v3070 = vadd.f32 %v3005, %v3069
      %v3071 = vpop.f32.mrb[0].mxu0
      %3072 = vmatprep.mubr.bf16.mxu0 %v2297
      %3073 = vmatmul.mubr.bf16.gmra.mrb[0].mxu0 %v2296
      %v3074 = vpop.f32.mrb[0].mxu0
      %v3075 = vadd.f32 %v3010, %v3074
      %v3076 = vpop.f32.mrb[0].mxu0
      %v3077 = vpop.f32.mrb[0].mxu0
      %v3078 = vadd.f32 %v3013, %v3077
      %v3079 = vpop.f32.mrb[0].mxu0
      %3080 = vmatprep.mubr.bf16.mxu0 %v2306
      %3081 = vmatmul.mubr.bf16.gmra.mrb[0].mxu0 %v2305
      %v3082 = vpop.f32.mrb[0].mxu0
      %v3083 = vadd.f32 %v3018, %v3082
      %v3084 = vpop.f32.mrb[0].mxu0
      %v3085 = vpop.f32.mrb[0].mxu0
      %v3086 = vadd.f32 %v3021, %v3085
      %v3087 = vpop.f32.mrb[0].mxu0
      %3088 = vmatprep.mubr.bf16.mxu0 %v2315
      %3089 = vmatmul.mubr.bf16.gmra.mrb[0].mxu0 %v2314
      %v3090 = vpop.f32.mrb[0].mxu0
      %v3091 = vadd.f32 %v3026, %v3090
      %v3092 = vpop.f32.mrb[0].mxu0
      %v3093 = vpop.f32.mrb[0].mxu0
      %v3094 = vadd.f32 %v3029, %v3093
      %v3095 = vpop.f32.mrb[0].mxu0
      %3096 = vdwg.mxu0
      %3097 = vmatprep.subr.bf16.mxu0 0
      %3098 = vmatpush1.bf16.msra.mxu0 %v2806
      %3099 = vmatprep.subr.bf16.mxu0 0
      %3100 = vmatpush1.bf16.msra.mxu0 %v2807
      %3101 = vmatprep.subr.bf16.mxu0 0
      %3102 = vmatpush1.bf16.msra.mxu0 %v2808
      %3103 = vmatprep.subr.bf16.mxu0 0
      %3104 = vmatpush1.bf16.msra.mxu0 %v2809
      %3105 = vmatprep.subr.bf16.mxu0 0
      %3106 = vmatpush1.bf16.msra.mxu0 %v2810
      %3107 = vmatprep.subr.bf16.mxu0 0
      %3108 = vmatpush1.bf16.msra.mxu0 %v2811
      %3109 = vmatprep.subr.bf16.mxu0 0
      %3110 = vmatpush1.bf16.msra.mxu0 %v2812
      %3111 = vmatprep.subr.bf16.mxu0 0
      %3112 = vmatpush1.bf16.msra.mxu0 %v2813
      %3113 = vmatprep.subr.bf16.mxu0 0
      %3114 = vmatpush1.bf16.msra.mxu0 %v2814
      %3115 = vmatprep.subr.bf16.mxu0 0
      %3116 = vmatpush1.bf16.msra.mxu0 %v2815
      %3117 = vmatprep.subr.bf16.mxu0 0
      %3118 = vmatpush1.bf16.msra.mxu0 %v2816
      %3119 = vmatprep.subr.bf16.mxu0 0
      %3120 = vmatpush1.bf16.msra.mxu0 %v2817
      %3121 = vmatprep.subr.bf16.mxu0 0
      %3122 = vmatpush1.bf16.msra.mxu0 %v2818
      %3123 = vmatprep.subr.bf16.mxu0 0
      %3124 = vmatpush1.bf16.msra.mxu0 %v2819
      %3125 = vmatprep.subr.bf16.mxu0 0
      %3126 = vmatpush1.bf16.msra.mxu0 %v2820
      %3127 = vmatprep.subr.bf16.mxu0 0
      %3128 = vmatpush1.bf16.msra.mxu0 %v2821
      %3129 = vmatprep.mubr.bf16.mxu0 %v2290
      %3130 = vmatmul.mubr.bf16.gmra.mrb[0].mxu0 %v2289
      %v3131 = vpop.f32.mrb[0].mxu0
      %v3132 = vadd.f32 %v3067, %v3131
      %v3133 = vpop.f32.mrb[0].mxu0
      %v3134 = vpop.f32.mrb[0].mxu0
      %v3135 = vadd.f32 %v3070, %v3134
      %v3136 = vpop.f32.mrb[0].mxu0
      %3137 = vmatprep.mubr.bf16.mxu0 %v2299
      %3138 = vmatmul.mubr.bf16.gmra.mrb[0].mxu0 %v2298
      %v3139 = vpop.f32.mrb[0].mxu0
      %v3140 = vadd.f32 %v3075, %v3139
      %v3141 = vpop.f32.mrb[0].mxu0
      %v3142 = vpop.f32.mrb[0].mxu0
      %v3143 = vadd.f32 %v3078, %v3142
      %v3144 = vpop.f32.mrb[0].mxu0
      %3145 = vmatprep.mubr.bf16.mxu0 %v2308
      %3146 = vmatmul.mubr.bf16.gmra.mrb[0].mxu0 %v2307
      %v3147 = vpop.f32.mrb[0].mxu0
      %v3148 = vadd.f32 %v3083, %v3147
      %v3149 = vpop.f32.mrb[0].mxu0
      %v3150 = vpop.f32.mrb[0].mxu0
      %v3151 = vadd.f32 %v3086, %v3150
      %v3152 = vpop.f32.mrb[0].mxu0
      %3153 = vmatprep.mubr.bf16.mxu0 %v2317
      %3154 = vmatmul.mubr.bf16.gmra.mrb[0].mxu0 %v2316
      %v3155 = vpop.f32.mrb[0].mxu0
      %v3156 = vadd.f32 %v3091, %v3155
      %v3157 = vpop.f32.mrb[0].mxu0
      %v3158 = vpop.f32.mrb[0].mxu0
      %v3159 = vadd.f32 %v3094, %v3158
      %v3160 = vpop.f32.mrb[0].mxu0
      %3161 = vdwg.mxu0
      %3162 = vmatprep.subr.bf16.mxu0 0
      %3163 = vmatpush1.bf16.msra.mxu0 %v2822
      %3164 = vmatprep.subr.bf16.mxu0 0
      %3165 = vmatpush1.bf16.msra.mxu0 %v2823
      %3166 = vmatprep.subr.bf16.mxu0 0
      %3167 = vmatpush1.bf16.msra.mxu0 %v2824
      %3168 = vmatprep.subr.bf16.mxu0 0
      %3169 = vmatpush1.bf16.msra.mxu0 %v2825
      %3170 = vmatprep.subr.bf16.mxu0 0
      %3171 = vmatpush1.bf16.msra.mxu0 %v2826
      %3172 = vmatprep.subr.bf16.mxu0 0
      %3173 = vmatpush1.bf16.msra.mxu0 %v2827
      %3174 = vmatprep.subr.bf16.mxu0 0
      %3175 = vmatpush1.bf16.msra.mxu0 %v2828
      %3176 = vmatprep.subr.bf16.mxu0 0
      %3177 = vmatpush1.bf16.msra.mxu0 %v2829
      %3178 = vmatprep.subr.bf16.mxu0 0
      %3179 = vmatpush1.bf16.msra.mxu0 0
      %3180 = vmatprep.subr.bf16.mxu0 0
      %3181 = vmatpush1.bf16.msra.mxu0 0
      %3182 = vmatprep.subr.bf16.mxu0 0
      %3183 = vmatpush1.bf16.msra.mxu0 0
      %3184 = vmatprep.subr.bf16.mxu0 0
      %3185 = vmatpush1.bf16.msra.mxu0 0
      %3186 = vmatprep.subr.bf16.mxu0 0
      %3187 = vmatpush1.bf16.msra.mxu0 0
      %3188 = vmatprep.subr.bf16.mxu0 0
      %3189 = vmatpush1.bf16.msra.mxu0 0
      %3190 = vmatprep.subr.bf16.mxu0 0
      %3191 = vmatpush1.bf16.msra.mxu0 0
      %3192 = vmatprep.subr.bf16.mxu0 0
      %3193 = vmatpush1.bf16.msra.mxu0 0
      %3194 = vmatprep.mubr.bf16.mxu0 0
      %3195 = vmatmul.mubr.bf16.gmra.mrb[0].mxu0 %v2291
      %v3196 = vpop.f32.mrb[0].mxu0
      %v3197 = vadd.f32 %v3132, %v3196
      %v3198 = vpop.f32.mrb[0].mxu0
      %v3199 = vpop.f32.mrb[0].mxu0
      %v3200 = vadd.f32 %v3135, %v3199
      %v3201 = vpop.f32.mrb[0].mxu0
      %3202 = vmatprep.mubr.bf16.mxu0 0
      %3203 = vmatmul.mubr.bf16.gmra.mrb[0].mxu0 %v2300
      %v3204 = vpop.f32.mrb[0].mxu0
      %v3205 = vadd.f32 %v3140, %v3204
      %v3206 = vpop.f32.mrb[0].mxu0
      %v3207 = vpop.f32.mrb[0].mxu0
      %v3208 = vadd.f32 %v3143, %v3207
      %v3209 = vpop.f32.mrb[0].mxu0
      %3210 = vmatprep.mubr.bf16.mxu0 0
      %3211 = vmatmul.mubr.bf16.gmra.mrb[0].mxu0 %v2309
      %v3212 = vpop.f32.mrb[0].mxu0
      %v3213 = vadd.f32 %v3148, %v3212
      %v3214 = vpop.f32.mrb[0].mxu0
      %v3215 = vpop.f32.mrb[0].mxu0
      %v3216 = vadd.f32 %v3151, %v3215
      %v3217 = vpop.f32.mrb[0].mxu0
      %3218 = vmatprep.mubr.bf16.mxu0 0
      %3219 = vmatmul.mubr.bf16.gmra.mrb[0].mxu0 %v2318
      %v3220 = vpop.f32.mrb[0].mxu0
      %v3221 = vadd.f32 %v3156, %v3220
      %v3222 = vpop.f32.mrb[0].mxu0
      %v3223 = vpop.f32.mrb[0].mxu0
      %v3224 = vadd.f32 %v3159, %v3223
      %v3225 = vpop.f32.mrb[0].mxu0
      %3226 = vdwg.mxu0
      %v3227 = vmax.f32 %v3197, 0.0
      %v3228 = vmax.f32 %v3200, 0.0
      %v3229 = vmax.f32 %v3205, 0.0
      %v3230 = vmax.f32 %v3208, 0.0
      %v3231 = vmax.f32 %v3213, 0.0
      %v3232 = vmax.f32 %v3216, 0.0
      %v3233 = vmax.f32 %v3221, 0.0
      %v3234 = vmax.f32 %v3224, 0.0
      %v3235 = vld [vmem:[%s2129 + $0x1] sm:$0xff]
      %v3236 = vld [vmem:[%s2129 + $0x11] sm:$0xff]
      %v3237 = vld [vmem:[%s2129 + $0x21] sm:$0xff]
      %v3238 = vld [vmem:[%s2129 + $0x31] sm:$0xff]
      %v3239 = vld [vmem:[%s2129 + $0x41] sm:$0xff]
      %v3240 = vld [vmem:[%s2129 + $0x51] sm:$0xff]
      %v3241 = vld [vmem:[%s2129 + $0x61] sm:$0xff]
      %v3242 = vld [vmem:[%s2129 + $0x71] sm:$0xff]
      %3243 = vst [vmem:[%s1015 + $0x1] sm:$0xff] %v3227
      %3244 = vst [vmem:[%s1015 + $0x11] sm:$0xff] %v3228
      %3245 = vst [vmem:[%s1015 + $0x21] sm:$0xff] %v3229
      %3246 = vst [vmem:[%s1015 + $0x31] sm:$0xff] %v3230
      %3247 = vst [vmem:[%s1015 + $0x41] sm:$0xff] %v3231
      %3248 = vst [vmem:[%s1015 + $0x51] sm:$0xff] %v3232
      %3249 = vst [vmem:[%s1015 + $0x61] sm:$0xff] %v3233
      %3250 = vst [vmem:[%s1015 + $0x71] sm:$0xff] %v3234
      %v3251 = vld [vmem:[#allocation3] sm:$0xff]
      %v3252 = vld [vmem:[#allocation3 + $0x10] sm:$0xff]
      %v3253 = vld [vmem:[#allocation3 + $0x20] sm:$0xff]
      %v3254 = vld [vmem:[#allocation3 + $0x30] sm:$0xff]
      %v3255 = vld [vmem:[#allocation3 + $0x40] sm:$0xff]
      %v3256 = vld [vmem:[#allocation3 + $0x50] sm:$0xff]
      %v3257 = vld [vmem:[#allocation3 + $0x60] sm:$0xff]
      %v3258 = vld [vmem:[#allocation3 + $0x70] sm:$0xff]
      %v3259 = vpack.c.bf16 %v3252, %v3251
      %v3260 = vpack.c.bf16 %v3254, %v3253
      %v3261 = vpack.c.bf16 %v3256, %v3255
      %v3262 = vpack.c.bf16 %v3258, %v3257
      %3263 = vst [vmem:[#allocation2] sm:$0xff] %v3259
      %3264 = vst [vmem:[#allocation2 + $0x48] sm:$0xff] %v3260
      %3265 = vst [vmem:[#allocation2 + $0x90] sm:$0xff] %v3261
      %3266 = vst [vmem:[#allocation2 + $0xd8] sm:$0xff] %v3262
      %v3267 = vld [vmem:[#allocation3 + $0x1] sm:$0xff]
      %v3268 = vld [vmem:[#allocation3 + $0x11] sm:$0xff]
      %v3269 = vld [vmem:[#allocation3 + $0x21] sm:$0xff]
      %v3270 = vld [vmem:[#allocation3 + $0x31] sm:$0xff]
      %v3271 = vld [vmem:[#allocation3 + $0x41] sm:$0xff]
      %v3272 = vld [vmem:[#allocation3 + $0x51] sm:$0xff]
      %v3273 = vld [vmem:[#allocation3 + $0x61] sm:$0xff]
      %v3274 = vld [vmem:[#allocation3 + $0x71] sm:$0xff]
      %v3275 = vpack.c.bf16 %v3268, %v3267
      %v3276 = vpack.c.bf16 %v3270, %v3269
      %v3277 = vpack.c.bf16 %v3272, %v3271
      %v3278 = vpack.c.bf16 %v3274, %v3273
      %3279 = vst [vmem:[#allocation2 + $0x8] sm:$0xff] %v3275
      %3280 = vst [vmem:[#allocation2 + $0x50] sm:$0xff] %v3276
      %3281 = vst [vmem:[#allocation2 + $0x98] sm:$0xff] %v3277
      %3282 = vst [vmem:[#allocation2 + $0xe0] sm:$0xff] %v3278
      %v3283 = vld [vmem:[#allocation3 + $0x2] sm:$0xff]
      %v3284 = vld [vmem:[#allocation3 + $0x12] sm:$0xff]
      %v3285 = vld [vmem:[#allocation3 + $0x22] sm:$0xff]
      %v3286 = vld [vmem:[#allocation3 + $0x32] sm:$0xff]
      %v3287 = vld [vmem:[#allocation3 + $0x42] sm:$0xff]
      %v3288 = vld [vmem:[#allocation3 + $0x52] sm:$0xff]
      %v3289 = vld [vmem:[#allocation3 + $0x62] sm:$0xff]
      %v3290 = vld [vmem:[#allocation3 + $0x72] sm:$0xff]
      %v3291 = vpack.c.bf16 %v3284, %v3283
      %v3292 = vpack.c.bf16 %v3286, %v3285
      %v3293 = vpack.c.bf16 %v3288, %v3287
      %v3294 = vpack.c.bf16 %v3290, %v3289
      %3295 = vst [vmem:[#allocation2 + $0x10] sm:$0xff] %v3291
      %3296 = vst [vmem:[#allocation2 + $0x58] sm:$0xff] %v3292
      %3297 = vst [vmem:[#allocation2 + $0xa0] sm:$0xff] %v3293
      %3298 = vst [vmem:[#allocation2 + $0xe8] sm:$0xff] %v3294
      %v3299 = vld [vmem:[%s1015] sm:$0xff]
      %v3300 = vld [vmem:[%s1015 + $0x10] sm:$0xff]
      %v3301 = vld [vmem:[%s1015 + $0x20] sm:$0xff]
      %v3302 = vld [vmem:[%s1015 + $0x30] sm:$0xff]
      %v3303 = vld [vmem:[%s1015 + $0x40] sm:$0xff]
      %v3304 = vld [vmem:[%s1015 + $0x50] sm:$0xff]
      %v3305 = vld [vmem:[%s1015 + $0x60] sm:$0xff]
      %v3306 = vld [vmem:[%s1015 + $0x70] sm:$0xff]
      %v3307 = vpack.c.bf16 %v3300, %v3299
      %v3308 = vpack.c.bf16 %v3302, %v3301
      %v3309 = vpack.c.bf16 %v3304, %v3303
      %v3310 = vpack.c.bf16 %v3306, %v3305
      %3311 = vst [vmem:[#allocation2 + $0x18] sm:$0xff] %v3307
      %3312 = vst [vmem:[#allocation2 + $0x60] sm:$0xff] %v3308
      %3313 = vst [vmem:[#allocation2 + $0xa8] sm:$0xff] %v3309
      %3314 = vst [vmem:[#allocation2 + $0xf0] sm:$0xff] %v3310
      %v3315 = vld [vmem:[%s1015 + $0x1] sm:$0xff]
      %v3316 = vld [vmem:[%s1015 + $0x11] sm:$0xff]
      %v3317 = vld [vmem:[%s1015 + $0x21] sm:$0xff]
      %v3318 = vld [vmem:[%s1015 + $0x31] sm:$0xff]
      %v3319 = vld [vmem:[%s1015 + $0x41] sm:$0xff]
      %v3320 = vld [vmem:[%s1015 + $0x51] sm:$0xff]
      %v3321 = vld [vmem:[%s1015 + $0x61] sm:$0xff]
      %v3322 = vld [vmem:[%s1015 + $0x71] sm:$0xff]
      %v3323 = vpack.c.bf16 %v3316, %v3315
      %v3324 = vpack.c.bf16 %v3318, %v3317
      %v3325 = vpack.c.bf16 %v3320, %v3319
      %v3326 = vpack.c.bf16 %v3322, %v3321
      %3327 = vst [vmem:[#allocation2 + $0x20] sm:$0xff] %v3323
      %3328 = vst [vmem:[#allocation2 + $0x68] sm:$0xff] %v3324
      %3329 = vst [vmem:[#allocation2 + $0xb0] sm:$0xff] %v3325
      %3330 = vst [vmem:[#allocation2 + $0xf8] sm:$0xff] %v3326
      %v3331 = vld [vmem:[%s1015 + $0x2] sm:$0xff]
      %v3332 = vld [vmem:[%s1015 + $0x12] sm:$0xff]
      %v3333 = vld [vmem:[%s1015 + $0x22] sm:$0xff]
      %v3334 = vld [vmem:[%s1015 + $0x32] sm:$0xff]
      %v3335 = vld [vmem:[%s1015 + $0x42] sm:$0xff]
      %v3336 = vld [vmem:[%s1015 + $0x52] sm:$0xff]
      %v3337 = vld [vmem:[%s1015 + $0x62] sm:$0xff]
      %v3338 = vld [vmem:[%s1015 + $0x72] sm:$0xff]
      %v3339 = vpack.c.bf16 %v3332, %v3331
      %v3340 = vpack.c.bf16 %v3334, %v3333
      %v3341 = vpack.c.bf16 %v3336, %v3335
      %v3342 = vpack.c.bf16 %v3338, %v3337
      %3343 = vst [vmem:[#allocation2 + $0x28] sm:$0xff] %v3339
      %3344 = vst [vmem:[#allocation2 + $0x70] sm:$0xff] %v3340
      %3345 = vst [vmem:[#allocation2 + $0xb8] sm:$0xff] %v3341
      %3346 = vst [vmem:[#allocation2 + $0x100] sm:$0xff] %v3342
      %v3347 = vld [vmem:[%s1120] sm:$0xff]
      %v3348 = vld [vmem:[%s1120 + $0x10] sm:$0xff]
      %v3349 = vld [vmem:[%s1120 + $0x20] sm:$0xff]
      %v3350 = vld [vmem:[%s1120 + $0x30] sm:$0xff]
      %v3351 = vld [vmem:[%s1120 + $0x40] sm:$0xff]
      %v3352 = vld [vmem:[%s1120 + $0x50] sm:$0xff]
      %v3353 = vld [vmem:[%s1120 + $0x60] sm:$0xff]
      %v3354 = vld [vmem:[%s1120 + $0x70] sm:$0xff]
      %v3355 = vpack.c.bf16 %v3348, %v3347
      %v3356 = vpack.c.bf16 %v3350, %v3349
      %v3357 = vpack.c.bf16 %v3352, %v3351
      %v3358 = vpack.c.bf16 %v3354, %v3353
      %3359 = vst [vmem:[#allocation2 + $0x30] sm:$0xff] %v3355
      %3360 = vst [vmem:[#allocation2 + $0x78] sm:$0xff] %v3356
      %3361 = vst [vmem:[#allocation2 + $0xc0] sm:$0xff] %v3357
      %3362 = vst [vmem:[#allocation2 + $0x108] sm:$0xff] %v3358
      %v3363 = vld [vmem:[%s1120 + $0x1] sm:$0xff]
      %v3364 = vld [vmem:[%s1120 + $0x11] sm:$0xff]
      %v3365 = vld [vmem:[%s1120 + $0x21] sm:$0xff]
      %v3366 = vld [vmem:[%s1120 + $0x31] sm:$0xff]
      %v3367 = vld [vmem:[%s1120 + $0x41] sm:$0xff]
      %v3368 = vld [vmem:[%s1120 + $0x51] sm:$0xff]
      %v3369 = vld [vmem:[%s1120 + $0x61] sm:$0xff]
      %v3370 = vld [vmem:[%s1120 + $0x71] sm:$0xff]
      %v3371 = vpack.c.bf16 %v3364, %v3363
      %v3372 = vpack.c.bf16 %v3366, %v3365
      %v3373 = vpack.c.bf16 %v3368, %v3367
      %v3374 = vpack.c.bf16 %v3370, %v3369
      %3375 = vst [vmem:[#allocation2 + $0x38] sm:$0xff] %v3371
      %3376 = vst [vmem:[#allocation2 + $0x80] sm:$0xff] %v3372
      %3377 = vst [vmem:[#allocation2 + $0xc8] sm:$0xff] %v3373
      %3378 = vst [vmem:[#allocation2 + $0x110] sm:$0xff] %v3374
      %v3379 = vld [vmem:[%s1120 + $0x2] sm:$0xff]
      %v3380 = vld [vmem:[%s1120 + $0x12] sm:$0xff]
      %v3381 = vld [vmem:[%s1120 + $0x22] sm:$0xff]
      %v3382 = vld [vmem:[%s1120 + $0x32] sm:$0xff]
      %v3383 = vld [vmem:[%s1120 + $0x42] sm:$0xff]
      %v3384 = vld [vmem:[%s1120 + $0x52] sm:$0xff]
      %v3385 = vld [vmem:[%s1120 + $0x62] sm:$0xff]
      %v3386 = vld [vmem:[%s1120 + $0x72] sm:$0xff]
      %v3387 = vpack.c.bf16 %v3380, %v3379
      %v3388 = vpack.c.bf16 %v3382, %v3381
      %v3389 = vpack.c.bf16 %v3384, %v3383
      %v3390 = vpack.c.bf16 %v3386, %v3385
      %3391 = vst [vmem:[#allocation2 + $0x40] sm:$0xff] %v3387
      %3392 = vst [vmem:[#allocation2 + $0x88] sm:$0xff] %v3388
      %3393 = vst [vmem:[#allocation2 + $0xd0] sm:$0xff] %v3389
      %3394 = vst [vmem:[#allocation2 + $0x118] sm:$0xff] %v3390
      %v3395 = vld [vmem:[#allocation2] sm:$0xff]
      %v3396 = vld [vmem:[#allocation2 + $0x8] sm:$0xff]
      %v3397 = vld [vmem:[#allocation2 + $0x10] sm:$0xff]
      %v3398 = vld [vmem:[#allocation2 + $0x18] sm:$0xff]
      %v3399 = vld [vmem:[#allocation2 + $0x20] sm:$0xff]
      %v3400 = vld [vmem:[#allocation2 + $0x28] sm:$0xff]
      %v3401 = vld [vmem:[#allocation2 + $0x30] sm:$0xff]
      %v3402 = vld [vmem:[#allocation2 + $0x38] sm:$0xff]
      %v3403 = vld [vmem:[#allocation2 + $0x40] sm:$0xff]
      %v3404 = vld [vmem:[#allocation2 + $0x48] sm:$0xff]
      %v3405 = vld [vmem:[#allocation2 + $0x50] sm:$0xff]
      %v3406 = vld [vmem:[#allocation2 + $0x58] sm:$0xff]
      %v3407 = vld [vmem:[#allocation2 + $0x60] sm:$0xff]
      %v3408 = vld [vmem:[#allocation2 + $0x68] sm:$0xff]
      %v3409 = vld [vmem:[#allocation2 + $0x70] sm:$0xff]
      %v3410 = vld [vmem:[#allocation2 + $0x78] sm:$0xff]
      %v3411 = vld [vmem:[#allocation2 + $0x80] sm:$0xff]
      %v3412 = vld [vmem:[#allocation2 + $0x88] sm:$0xff]
      %v3413 = vld [vmem:[#allocation2 + $0x90] sm:$0xff]
      %v3414 = vld [vmem:[#allocation2 + $0x98] sm:$0xff]
      %v3415 = vld [vmem:[#allocation2 + $0xa0] sm:$0xff]
      %v3416 = vld [vmem:[#allocation2 + $0xa8] sm:$0xff]
      %v3417 = vld [vmem:[#allocation2 + $0xb0] sm:$0xff]
      %v3418 = vld [vmem:[#allocation2 + $0xb8] sm:$0xff]
      %v3419 = vld [vmem:[#allocation2 + $0xc0] sm:$0xff]
      %v3420 = vld [vmem:[#allocation2 + $0xc8] sm:$0xff]
      %v3421 = vld [vmem:[#allocation2 + $0xd0] sm:$0xff]
      %v3422 = vld [vmem:[#allocation2 + $0xd8] sm:$0xff]
      %v3423 = vld [vmem:[#allocation2 + $0xe0] sm:$0xff]
      %v3424 = vld [vmem:[#allocation2 + $0xe8] sm:$0xff]
      %v3425 = vld [vmem:[#allocation2 + $0xf0] sm:$0xff]
      %v3426 = vld [vmem:[#allocation2 + $0xf8] sm:$0xff]
      %v3427 = vld [vmem:[#allocation2 + $0x100] sm:$0xff]
      %v3428 = vld [vmem:[#allocation2 + $0x108] sm:$0xff]
      %v3429 = vld [vmem:[#allocation2 + $0x110] sm:$0xff]
      %v3430 = vld [vmem:[#allocation2 + $0x118] sm:$0xff]
      %v3431 = vld [vmem:[%s7] sm:$0xf]
      %v3432 = vld [vmem:[%s7 + $0x4] sm:$0xf]
      %v3433 = vld [vmem:[%s7 + $0x8] sm:$0xf]
      %v3434 = vld [vmem:[%s7 + $0xc] sm:$0xf]
      %v3435 = vld [vmem:[%s7 + $0x10] sm:$0xf]
      %v3436 = vld [vmem:[%s7 + $0x14] sm:$0xf]
      %v3437 = vld [vmem:[%s7 + $0x18] sm:$0xf]
      %v3438 = vld [vmem:[%s7 + $0x1c] sm:$0xf]
      %v3439 = vld [vmem:[%s7 + $0x20] sm:$0xf]
      %v3440 = vld [vmem:[%s7 + $0x24] sm:$0xf]
      %v3441 = vld [vmem:[%s7 + $0x28] sm:$0xf]
      %v3442 = vld [vmem:[%s7 + $0x2c] sm:$0xf]
      %v3443 = vld [vmem:[%s7 + $0x30] sm:$0xf]
      %v3444 = vld [vmem:[%s7 + $0x34] sm:$0xf]
      %v3445 = vld [vmem:[%s7 + $0x38] sm:$0xf]
      %v3446 = vld [vmem:[%s7 + $0x3c] sm:$0xf]
      %v3447 = vld [vmem:[%s7 + $0x40] sm:$0xf]
      %v3448 = vld [vmem:[%s7 + $0x44] sm:$0xf]
      %v3449 = vld [vmem:[%s7 + $0x48] sm:$0xf]
      %v3450 = vld [vmem:[%s7 + $0x4c] sm:$0xf]
      %v3451 = vld [vmem:[%s7 + $0x50] sm:$0xf]
      %v3452 = vld [vmem:[%s7 + $0x54] sm:$0xf]
      %v3453 = vld [vmem:[%s7 + $0x58] sm:$0xf]
      %v3454 = vld [vmem:[%s7 + $0x5c] sm:$0xf]
      %v3455 = vld [vmem:[%s7 + $0x60] sm:$0xf]
      %v3456 = vld [vmem:[%s7 + $0x64] sm:$0xf]
      %v3457 = vld [vmem:[%s7 + $0x68] sm:$0xf]
      %v3458 = vld [vmem:[%s7 + $0x6c] sm:$0xf]
      %v3459 = vld [vmem:[%s7 + $0x70] sm:$0xf]
      %v3460 = vld [vmem:[%s7 + $0x74] sm:$0xf]
      %v3461 = vld [vmem:[%s7 + $0x78] sm:$0xf]
      %v3462 = vld [vmem:[%s7 + $0x7c] sm:$0xf]
      %v3463 = vld [vmem:[%s7 + $0x80] sm:$0xf]
      %v3464 = vld [vmem:[%s7 + $0x84] sm:$0xf]
      %v3465 = vld [vmem:[%s7 + $0x88] sm:$0xf]
      %v3466 = vld [vmem:[%s7 + $0x8c] sm:$0xf]
      %v3467 = vld [vmem:[%s7 + $0x90] sm:$0xf]
      %v3468 = vld [vmem:[%s7 + $0x94] sm:$0xf]
      %v3469 = vld [vmem:[%s7 + $0x98] sm:$0xf]
      %v3470 = vld [vmem:[%s7 + $0x9c] sm:$0xf]
      %v3471 = vld [vmem:[%s7 + $0xa0] sm:$0xf]
      %v3472 = vld [vmem:[%s7 + $0xa4] sm:$0xf]
      %v3473 = vld [vmem:[%s7 + $0xa8] sm:$0xf]
      %v3474 = vld [vmem:[%s7 + $0xac] sm:$0xf]
      %v3475 = vld [vmem:[%s7 + $0xb0] sm:$0xf]
      %v3476 = vld [vmem:[%s7 + $0xb4] sm:$0xf]
      %v3477 = vld [vmem:[%s7 + $0xb8] sm:$0xf]
      %v3478 = vld [vmem:[%s7 + $0xbc] sm:$0xf]
      %v3479 = vld [vmem:[%s7 + $0xc0] sm:$0xf]
      %v3480 = vld [vmem:[%s7 + $0xc4] sm:$0xf]
      %v3481 = vld [vmem:[%s7 + $0xc8] sm:$0xf]
      %v3482 = vld [vmem:[%s7 + $0xcc] sm:$0xf]
      %v3483 = vld [vmem:[%s7 + $0xd0] sm:$0xf]
      %v3484 = vld [vmem:[%s7 + $0xd4] sm:$0xf]
      %v3485 = vld [vmem:[%s7 + $0xd8] sm:$0xf]
      %v3486 = vld [vmem:[%s7 + $0xdc] sm:$0xf]
      %v3487 = vld [vmem:[%s7 + $0xe0] sm:$0xf]
      %v3488 = vld [vmem:[%s7 + $0xe4] sm:$0xf]
      %v3489 = vld [vmem:[%s7 + $0xe8] sm:$0xf]
      %v3490 = vld [vmem:[%s7 + $0xec] sm:$0xf]
      %v3491 = vld [vmem:[%s7 + $0xf0] sm:$0xf]
      %v3492 = vld [vmem:[%s7 + $0xf4] sm:$0xf]
      %v3493 = vld [vmem:[%s7 + $0xf8] sm:$0xf]
      %v3494 = vld [vmem:[%s7 + $0xfc] sm:$0xf]
      %v3495 = vld [vmem:[%s7 + $0x100] sm:$0xf]
      %v3496 = vld [vmem:[%s7 + $0x104] sm:$0xf]
      %v3497 = vld [vmem:[%s7 + $0x108] sm:$0xf]
      %v3498 = vld [vmem:[%s7 + $0x10c] sm:$0xf]
      %v3499 = vld [vmem:[%s7 + $0x110] sm:$0xf]
      %v3500 = vld [vmem:[%s7 + $0x114] sm:$0xf]
      %v3501 = vld [vmem:[%s7 + $0x118] sm:$0xf]
      %v3502 = vld [vmem:[%s7 + $0x11c] sm:$0xf]
      %v3503 = vld [vmem:[%s7 + $0x120] sm:$0xf]
      %v3504 = vld [vmem:[%s7 + $0x124] sm:$0xf]
      %v3505 = vld [vmem:[%s7 + $0x128] sm:$0xf]
      %v3506 = vld [vmem:[%s7 + $0x12c] sm:$0xf]
      %v3507 = vld [vmem:[%s7 + $0x130] sm:$0xf]
      %v3508 = vld [vmem:[%s7 + $0x134] sm:$0xf]
      %v3509 = vld [vmem:[%s7 + $0x138] sm:$0xf]
      %v3510 = vld [vmem:[%s7 + $0x13c] sm:$0xf]
      %v3511 = vld [vmem:[%s7 + $0x140] sm:$0xf]
      %v3512 = vld [vmem:[%s7 + $0x144] sm:$0xf]
      %v3513 = vld [vmem:[%s7 + $0x148] sm:$0xf]
      %v3514 = vld [vmem:[%s7 + $0x14c] sm:$0xf]
      %v3515 = vld [vmem:[%s7 + $0x150] sm:$0xf]
      %v3516 = vld [vmem:[%s7 + $0x154] sm:$0xf]
      %v3517 = vld [vmem:[%s7 + $0x158] sm:$0xf]
      %v3518 = vld [vmem:[%s7 + $0x15c] sm:$0xf]
      %v3519 = vld [vmem:[%s7 + $0x160] sm:$0xf]
      %v3520 = vld [vmem:[%s7 + $0x164] sm:$0xf]
      %v3521 = vld [vmem:[%s7 + $0x168] sm:$0xf]
      %v3522 = vld [vmem:[%s7 + $0x16c] sm:$0xf]
      %v3523 = vld [vmem:[%s7 + $0x170] sm:$0xf]
      %v3524 = vld [vmem:[%s7 + $0x174] sm:$0xf]
      %v3525 = vld [vmem:[%s7 + $0x178] sm:$0xf]
      %v3526 = vld [vmem:[%s7 + $0x17c] sm:$0xf]
      %v3527 = vld [vmem:[%s7 + $0x180] sm:$0xf]
      %v3528 = vld [vmem:[%s7 + $0x184] sm:$0xf]
      %v3529 = vld [vmem:[%s7 + $0x188] sm:$0xf]
      %v3530 = vld [vmem:[%s7 + $0x18c] sm:$0xf]
      %v3531 = vld [vmem:[%s7 + $0x190] sm:$0xf]
      %v3532 = vld [vmem:[%s7 + $0x194] sm:$0xf]
      %v3533 = vld [vmem:[%s7 + $0x198] sm:$0xf]
      %v3534 = vld [vmem:[%s7 + $0x19c] sm:$0xf]
      %v3535 = vld [vmem:[%s7 + $0x1a0] sm:$0xf]
      %v3536 = vld [vmem:[%s7 + $0x1a4] sm:$0xf]
      %v3537 = vld [vmem:[%s7 + $0x1a8] sm:$0xf]
      %v3538 = vld [vmem:[%s7 + $0x1ac] sm:$0xf]
      %v3539 = vld [vmem:[%s7 + $0x1b0] sm:$0xf]
      %v3540 = vld [vmem:[%s7 + $0x1b4] sm:$0xf]
      %v3541 = vld [vmem:[%s7 + $0x1b8] sm:$0xf]
      %v3542 = vld [vmem:[%s7 + $0x1bc] sm:$0xf]
      %v3543 = vld [vmem:[%s7 + $0x1c0] sm:$0xf]
      %v3544 = vld [vmem:[%s7 + $0x1c4] sm:$0xf]
      %v3545 = vld [vmem:[%s7 + $0x1c8] sm:$0xf]
      %v3546 = vld [vmem:[%s7 + $0x1cc] sm:$0xf]
      %v3547 = vld [vmem:[%s7 + $0x1d0] sm:$0xf]
      %v3548 = vld [vmem:[%s7 + $0x1d4] sm:$0xf]
      %v3549 = vld [vmem:[%s7 + $0x1d8] sm:$0xf]
      %v3550 = vld [vmem:[%s7 + $0x1dc] sm:$0xf]
      %v3551 = vld [vmem:[%s7 + $0x1e0] sm:$0xf]
      %v3552 = vld [vmem:[%s7 + $0x1e4] sm:$0xf]
      %v3553 = vld [vmem:[%s7 + $0x1e8] sm:$0xf]
      %v3554 = vld [vmem:[%s7 + $0x1ec] sm:$0xf]
      %v3555 = vld [vmem:[%s7 + $0x1f0] sm:$0xf]
      %v3556 = vld [vmem:[%s7 + $0x1f4] sm:$0xf]
      %v3557 = vld [vmem:[%s7 + $0x1f8] sm:$0xf]
      %v3558 = vld [vmem:[%s7 + $0x1fc] sm:$0xf]
      %v3559 = vld [vmem:[%s7 + $0x200] sm:$0xf]
      %v3560 = vld [vmem:[%s7 + $0x204] sm:$0xf]
      %v3561 = vld [vmem:[%s7 + $0x208] sm:$0xf]
      %v3562 = vld [vmem:[%s7 + $0x20c] sm:$0xf]
      %v3563 = vld [vmem:[%s7 + $0x210] sm:$0xf]
      %v3564 = vld [vmem:[%s7 + $0x214] sm:$0xf]
      %v3565 = vld [vmem:[%s7 + $0x218] sm:$0xf]
      %v3566 = vld [vmem:[%s7 + $0x21c] sm:$0xf]
      %v3567 = vld [vmem:[%s7 + $0x220] sm:$0xf]
      %v3568 = vld [vmem:[%s7 + $0x224] sm:$0xf]
      %v3569 = vld [vmem:[%s7 + $0x228] sm:$0xf]
      %v3570 = vld [vmem:[%s7 + $0x22c] sm:$0xf]
      %v3571 = vld [vmem:[%s7 + $0x230] sm:$0xf]
      %v3572 = vld [vmem:[%s7 + $0x234] sm:$0xf]
      %v3573 = vld [vmem:[%s7 + $0x238] sm:$0xf]
      %v3574 = vld [vmem:[%s7 + $0x23c] sm:$0xf]
      %v3575 = vld [vmem:[%s8] sm:$0x1]
      %v3577 = vlaneseq
      %v3578 = vshrl.u32 %v3577, 7
      %v3579 = vsub.s32 0, %v3578
      %v3580 = vrot.slane %v3575, %v3579
      %v3726 = vunpack.c.l.b16 %v3431
      %v3727 = vunpack.c.l.b16 %v3432
      %v3728 = vunpack.c.l.b16 %v3433
      %v3729 = vunpack.c.l.b16 %v3434
      %v3730 = vunpack.c.l.b16 %v3435
      %v3731 = vunpack.c.l.b16 %v3436
      %v3732 = vunpack.c.l.b16 %v3437
      %v3733 = vunpack.c.l.b16 %v3438
      %v3734 = vunpack.c.l.b16 %v3439
      %v3735 = vunpack.c.l.b16 %v3440
      %v3736 = vunpack.c.l.b16 %v3441
      %v3737 = vunpack.c.l.b16 %v3442
      %v3738 = vunpack.c.l.b16 %v3443
      %v3739 = vunpack.c.l.b16 %v3444
      %v3740 = vunpack.c.l.b16 %v3445
      %v3741 = vunpack.c.l.b16 %v3446
      %v3742 = vunpack.c.l.b16 %v3447
      %v3743 = vunpack.c.l.b16 %v3448
      %v3744 = vunpack.c.l.b16 %v3449
      %v3745 = vunpack.c.l.b16 %v3450
      %v3746 = vunpack.c.l.b16 %v3451
      %v3747 = vunpack.c.l.b16 %v3452
      %v3748 = vunpack.c.l.b16 %v3453
      %v3749 = vunpack.c.l.b16 %v3454
      %v3750 = vunpack.c.l.b16 %v3455
      %v3751 = vunpack.c.l.b16 %v3456
      %v3752 = vunpack.c.l.b16 %v3457
      %v3753 = vunpack.c.l.b16 %v3458
      %v3754 = vunpack.c.l.b16 %v3459
      %v3755 = vunpack.c.l.b16 %v3460
      %v3756 = vunpack.c.l.b16 %v3461
      %v3757 = vunpack.c.l.b16 %v3462
      %v3758 = vunpack.c.l.b16 %v3463
      %v3759 = vunpack.c.l.b16 %v3464
      %v3760 = vunpack.c.l.b16 %v3465
      %v3761 = vunpack.c.l.b16 %v3466
      %v3762 = vunpack.c.l.b16 %v3467
      %v3763 = vunpack.c.l.b16 %v3468
      %v3764 = vunpack.c.l.b16 %v3469
      %v3765 = vunpack.c.l.b16 %v3470
      %v3766 = vunpack.c.l.b16 %v3471
      %v3767 = vunpack.c.l.b16 %v3472
      %v3768 = vunpack.c.l.b16 %v3473
      %v3769 = vunpack.c.l.b16 %v3474
      %v3770 = vunpack.c.l.b16 %v3475
      %v3771 = vunpack.c.l.b16 %v3476
      %v3772 = vunpack.c.l.b16 %v3477
      %v3773 = vunpack.c.l.b16 %v3478
      %v3774 = vunpack.c.l.b16 %v3479
      %v3775 = vunpack.c.l.b16 %v3480
      %v3776 = vunpack.c.l.b16 %v3481
      %v3777 = vunpack.c.l.b16 %v3482
      %v3778 = vunpack.c.l.b16 %v3483
      %v3779 = vunpack.c.l.b16 %v3484
      %v3780 = vunpack.c.l.b16 %v3485
      %v3781 = vunpack.c.l.b16 %v3486
      %v3782 = vunpack.c.l.b16 %v3487
      %v3783 = vunpack.c.l.b16 %v3488
      %v3784 = vunpack.c.l.b16 %v3489
      %v3785 = vunpack.c.l.b16 %v3490
      %v3786 = vunpack.c.l.b16 %v3491
      %v3787 = vunpack.c.l.b16 %v3492
      %v3788 = vunpack.c.l.b16 %v3493
      %v3789 = vunpack.c.l.b16 %v3494
      %v3790 = vunpack.c.l.b16 %v3495
      %v3791 = vunpack.c.l.b16 %v3496
      %v3792 = vunpack.c.l.b16 %v3497
      %v3793 = vunpack.c.l.b16 %v3498
      %v3794 = vunpack.c.l.b16 %v3499
      %v3795 = vunpack.c.l.b16 %v3500
      %v3796 = vunpack.c.l.b16 %v3501
      %v3797 = vunpack.c.l.b16 %v3502
      %v3798 = vunpack.c.l.b16 %v3503
      %v3799 = vunpack.c.l.b16 %v3504
      %v3800 = vunpack.c.l.b16 %v3505
      %v3801 = vunpack.c.l.b16 %v3506
      %v3802 = vunpack.c.l.b16 %v3507
      %v3803 = vunpack.c.l.b16 %v3508
      %v3804 = vunpack.c.l.b16 %v3509
      %v3805 = vunpack.c.l.b16 %v3510
      %v3806 = vunpack.c.l.b16 %v3511
      %v3807 = vunpack.c.l.b16 %v3512
      %v3808 = vunpack.c.l.b16 %v3513
      %v3809 = vunpack.c.l.b16 %v3514
      %v3810 = vunpack.c.l.b16 %v3515
      %v3811 = vunpack.c.l.b16 %v3516
      %v3812 = vunpack.c.l.b16 %v3517
      %v3813 = vunpack.c.l.b16 %v3518
      %v3814 = vunpack.c.l.b16 %v3519
      %v3815 = vunpack.c.l.b16 %v3520
      %v3816 = vunpack.c.l.b16 %v3521
      %v3817 = vunpack.c.l.b16 %v3522
      %v3818 = vunpack.c.l.b16 %v3523
      %v3819 = vunpack.c.l.b16 %v3524
      %v3820 = vunpack.c.l.b16 %v3525
      %v3821 = vunpack.c.l.b16 %v3526
      %v3822 = vunpack.c.l.b16 %v3527
      %v3823 = vunpack.c.l.b16 %v3528
      %v3824 = vunpack.c.l.b16 %v3529
      %v3825 = vunpack.c.l.b16 %v3530
      %v3826 = vunpack.c.l.b16 %v3531
      %v3827 = vunpack.c.l.b16 %v3532
      %v3828 = vunpack.c.l.b16 %v3533
      %v3829 = vunpack.c.l.b16 %v3534
      %v3830 = vunpack.c.l.b16 %v3535
      %v3831 = vunpack.c.l.b16 %v3536
      %v3832 = vunpack.c.l.b16 %v3537
      %v3833 = vunpack.c.l.b16 %v3538
      %v3834 = vunpack.c.l.b16 %v3539
      %v3835 = vunpack.c.l.b16 %v3540
      %v3836 = vunpack.c.l.b16 %v3541
      %v3837 = vunpack.c.l.b16 %v3542
      %v3838 = vunpack.c.l.b16 %v3543
      %v3839 = vunpack.c.l.b16 %v3544
      %v3840 = vunpack.c.l.b16 %v3545
      %v3841 = vunpack.c.l.b16 %v3546
      %v3842 = vunpack.c.l.b16 %v3547
      %v3843 = vunpack.c.l.b16 %v3548
      %v3844 = vunpack.c.l.b16 %v3549
      %v3845 = vunpack.c.l.b16 %v3550
      %v3846 = vunpack.c.l.b16 %v3551
      %v3847 = vunpack.c.l.b16 %v3552
      %v3848 = vunpack.c.l.b16 %v3553
      %v3849 = vunpack.c.l.b16 %v3554
      %v3850 = vunpack.c.l.b16 %v3555
      %v3851 = vunpack.c.l.b16 %v3556
      %v3852 = vunpack.c.l.b16 %v3557
      %v3853 = vunpack.c.l.b16 %v3558
      %v3854 = vunpack.c.l.b16 %v3559
      %v3855 = vunpack.c.l.b16 %v3560
      %v3856 = vunpack.c.l.b16 %v3561
      %v3857 = vunpack.c.l.b16 %v3562
      %v3858 = vunpack.c.l.b16 %v3563
      %v3859 = vunpack.c.l.b16 %v3564
      %v3860 = vunpack.c.l.b16 %v3565
      %v3861 = vunpack.c.l.b16 %v3566
      %v3862 = vunpack.c.l.b16 %v3567
      %v3863 = vunpack.c.l.b16 %v3568
      %v3864 = vunpack.c.l.b16 %v3569
      %v3865 = vunpack.c.l.b16 %v3570
      %v3866 = vunpack.c.l.b16 %v3571
      %v3867 = vunpack.c.l.b16 %v3572
      %v3868 = vunpack.c.l.b16 %v3573
      %v3869 = vunpack.c.l.b16 %v3574
      %v3870 = vpack.c.b16 %v3727, %v3726
      %v3871 = vpack.c.b16 %v3729, %v3728
      %v3872 = vpack.c.b16 %v3731, %v3730
      %v3873 = vpack.c.b16 %v3733, %v3732
      %v3874 = vpack.c.b16 %v3735, %v3734
      %v3875 = vpack.c.b16 %v3737, %v3736
      %v3876 = vpack.c.b16 %v3739, %v3738
      %v3877 = vpack.c.b16 %v3741, %v3740
      %v3878 = vpack.c.b16 %v3743, %v3742
      %v3879 = vpack.c.b16 %v3745, %v3744
      %v3880 = vpack.c.b16 %v3747, %v3746
      %v3881 = vpack.c.b16 %v3749, %v3748
      %v3882 = vpack.c.b16 %v3751, %v3750
      %v3883 = vpack.c.b16 %v3753, %v3752
      %v3884 = vpack.c.b16 %v3755, %v3754
      %v3885 = vpack.c.b16 %v3757, %v3756
      %v3886 = vpack.c.b16 %v3759, %v3758
      %v3887 = vpack.c.b16 %v3761, %v3760
      %v3888 = vpack.c.b16 %v3763, %v3762
      %v3889 = vpack.c.b16 %v3765, %v3764
      %v3890 = vpack.c.b16 %v3767, %v3766
      %v3891 = vpack.c.b16 %v3769, %v3768
      %v3892 = vpack.c.b16 %v3771, %v3770
      %v3893 = vpack.c.b16 %v3773, %v3772
      %v3894 = vpack.c.b16 %v3775, %v3774
      %v3895 = vpack.c.b16 %v3777, %v3776
      %v3896 = vpack.c.b16 %v3779, %v3778
      %v3897 = vpack.c.b16 %v3781, %v3780
      %v3898 = vpack.c.b16 %v3783, %v3782
      %v3899 = vpack.c.b16 %v3785, %v3784
      %v3900 = vpack.c.b16 %v3787, %v3786
      %v3901 = vpack.c.b16 %v3789, %v3788
      %v3902 = vpack.c.b16 %v3791, %v3790
      %v3903 = vpack.c.b16 %v3793, %v3792
      %v3904 = vpack.c.b16 %v3795, %v3794
      %v3905 = vpack.c.b16 %v3797, %v3796
      %v3906 = vpack.c.b16 %v3799, %v3798
      %v3907 = vpack.c.b16 %v3801, %v3800
      %v3908 = vpack.c.b16 %v3803, %v3802
      %v3909 = vpack.c.b16 %v3805, %v3804
      %v3910 = vpack.c.b16 %v3807, %v3806
      %v3911 = vpack.c.b16 %v3809, %v3808
      %v3912 = vpack.c.b16 %v3811, %v3810
      %v3913 = vpack.c.b16 %v3813, %v3812
      %v3914 = vpack.c.b16 %v3815, %v3814
      %v3915 = vpack.c.b16 %v3817, %v3816
      %v3916 = vpack.c.b16 %v3819, %v3818
      %v3917 = vpack.c.b16 %v3821, %v3820
      %v3918 = vpack.c.b16 %v3823, %v3822
      %v3919 = vpack.c.b16 %v3825, %v3824
      %v3920 = vpack.c.b16 %v3827, %v3826
      %v3921 = vpack.c.b16 %v3829, %v3828
      %v3922 = vpack.c.b16 %v3831, %v3830
      %v3923 = vpack.c.b16 %v3833, %v3832
      %v3924 = vpack.c.b16 %v3835, %v3834
      %v3925 = vpack.c.b16 %v3837, %v3836
      %v3926 = vpack.c.b16 %v3839, %v3838
      %v3927 = vpack.c.b16 %v3841, %v3840
      %v3928 = vpack.c.b16 %v3843, %v3842
      %v3929 = vpack.c.b16 %v3845, %v3844
      %v3930 = vpack.c.b16 %v3847, %v3846
      %v3931 = vpack.c.b16 %v3849, %v3848
      %v3932 = vpack.c.b16 %v3851, %v3850
      %v3933 = vpack.c.b16 %v3853, %v3852
      %v3934 = vpack.c.b16 %v3855, %v3854
      %v3935 = vpack.c.b16 %v3857, %v3856
      %v3936 = vpack.c.b16 %v3859, %v3858
      %v3937 = vpack.c.b16 %v3861, %v3860
      %v3938 = vpack.c.b16 %v3863, %v3862
      %v3939 = vpack.c.b16 %v3865, %v3864
      %v3940 = vpack.c.b16 %v3867, %v3866
      %v3941 = vpack.c.b16 %v3869, %v3868
      %4014 = vmatprep.subr.bf16.mxu0 0
      %4015 = vmatpush1.bf16.msra.mxu0 %v3870
      %4016 = vmatprep.subr.bf16.mxu0 0
      %4017 = vmatpush1.bf16.msra.mxu0 %v3871
      %4018 = vmatprep.subr.bf16.mxu0 0
      %4019 = vmatpush1.bf16.msra.mxu0 %v3872
      %4020 = vmatprep.subr.bf16.mxu0 0
      %4021 = vmatpush1.bf16.msra.mxu0 %v3873
      %4022 = vmatprep.subr.bf16.mxu0 0
      %4023 = vmatpush1.bf16.msra.mxu0 %v3874
      %4024 = vmatprep.subr.bf16.mxu0 0
      %4025 = vmatpush1.bf16.msra.mxu0 %v3875
      %4026 = vmatprep.subr.bf16.mxu0 0
      %4027 = vmatpush1.bf16.msra.mxu0 %v3876
      %4028 = vmatprep.subr.bf16.mxu0 0
      %4029 = vmatpush1.bf16.msra.mxu0 %v3877
      %4030 = vmatprep.subr.bf16.mxu0 0
      %4031 = vmatpush1.bf16.msra.mxu0 %v3878
      %4032 = vmatprep.subr.bf16.mxu0 0
      %4033 = vmatpush1.bf16.msra.mxu0 %v3879
      %4034 = vmatprep.subr.bf16.mxu0 0
      %4035 = vmatpush1.bf16.msra.mxu0 %v3880
      %4036 = vmatprep.subr.bf16.mxu0 0
      %4037 = vmatpush1.bf16.msra.mxu0 %v3881
      %4038 = vmatprep.subr.bf16.mxu0 0
      %4039 = vmatpush1.bf16.msra.mxu0 %v3882
      %4040 = vmatprep.subr.bf16.mxu0 0
      %4041 = vmatpush1.bf16.msra.mxu0 %v3883
      %4042 = vmatprep.subr.bf16.mxu0 0
      %4043 = vmatpush1.bf16.msra.mxu0 %v3884
      %4044 = vmatprep.subr.bf16.mxu0 0
      %4045 = vmatpush1.bf16.msra.mxu0 %v3885
      %4046 = vmatprep.mubr.bf16.mxu0 %v3396
      %4047 = vmatmul.mubr.bf16.gmra.mrb[0].mxu0 %v3395
      %v4048 = vpop.f32.mrb[0].mxu0
      %v4049 = vadd.f32 %v3580, %v4048
      %v4050 = vpop.f32.mrb[0].mxu0
      %v4051 = vpop.f32.mrb[0].mxu0
      %v4052 = vadd.f32 %v3580, %v4051
      %v4053 = vpop.f32.mrb[0].mxu0
      %4054 = vmatprep.mubr.bf16.mxu0 %v3405
      %4055 = vmatmul.mubr.bf16.gmra.mrb[0].mxu0 %v3404
      %v4056 = vpop.f32.mrb[0].mxu0
      %v4057 = vadd.f32 %v3580, %v4056
      %v4058 = vpop.f32.mrb[0].mxu0
      %v4059 = vpop.f32.mrb[0].mxu0
      %v4060 = vadd.f32 %v3580, %v4059
      %v4061 = vpop.f32.mrb[0].mxu0
      %4062 = vmatprep.mubr.bf16.mxu0 %v3414
      %4063 = vmatmul.mubr.bf16.gmra.mrb[0].mxu0 %v3413
      %v4064 = vpop.f32.mrb[0].mxu0
      %v4065 = vadd.f32 %v3580, %v4064
      %v4066 = vpop.f32.mrb[0].mxu0
      %v4067 = vpop.f32.mrb[0].mxu0
      %v4068 = vadd.f32 %v3580, %v4067
      %v4069 = vpop.f32.mrb[0].mxu0
      %4070 = vmatprep.mubr.bf16.mxu0 %v3423
      %4071 = vmatmul.mubr.bf16.gmra.mrb[0].mxu0 %v3422
      %v4072 = vpop.f32.mrb[0].mxu0
      %v4073 = vadd.f32 %v3580, %v4072
      %v4074 = vpop.f32.mrb[0].mxu0
      %v4075 = vpop.f32.mrb[0].mxu0
      %v4076 = vadd.f32 %v3580, %v4075
      %v4077 = vpop.f32.mrb[0].mxu0
      %4078 = vdwg.mxu0
      %4079 = vmatprep.subr.bf16.mxu0 0
      %4080 = vmatpush1.bf16.msra.mxu0 %v3886
      %4081 = vmatprep.subr.bf16.mxu0 0
      %4082 = vmatpush1.bf16.msra.mxu0 %v3887
      %4083 = vmatprep.subr.bf16.mxu0 0
      %4084 = vmatpush1.bf16.msra.mxu0 %v3888
      %4085 = vmatprep.subr.bf16.mxu0 0
      %4086 = vmatpush1.bf16.msra.mxu0 %v3889
      %4087 = vmatprep.subr.bf16.mxu0 0
      %4088 = vmatpush1.bf16.msra.mxu0 %v3890
      %4089 = vmatprep.subr.bf16.mxu0 0
      %4090 = vmatpush1.bf16.msra.mxu0 %v3891
      %4091 = vmatprep.subr.bf16.mxu0 0
      %4092 = vmatpush1.bf16.msra.mxu0 %v3892
      %4093 = vmatprep.subr.bf16.mxu0 0
      %4094 = vmatpush1.bf16.msra.mxu0 %v3893
      %4095 = vmatprep.subr.bf16.mxu0 0
      %4096 = vmatpush1.bf16.msra.mxu0 %v3894
      %4097 = vmatprep.subr.bf16.mxu0 0
      %4098 = vmatpush1.bf16.msra.mxu0 %v3895
      %4099 = vmatprep.subr.bf16.mxu0 0
      %4100 = vmatpush1.bf16.msra.mxu0 %v3896
      %4101 = vmatprep.subr.bf16.mxu0 0
      %4102 = vmatpush1.bf16.msra.mxu0 %v3897
      %4103 = vmatprep.subr.bf16.mxu0 0
      %4104 = vmatpush1.bf16.msra.mxu0 %v3898
      %4105 = vmatprep.subr.bf16.mxu0 0
      %4106 = vmatpush1.bf16.msra.mxu0 %v3899
      %4107 = vmatprep.subr.bf16.mxu0 0
      %4108 = vmatpush1.bf16.msra.mxu0 %v3900
      %4109 = vmatprep.subr.bf16.mxu0 0
      %4110 = vmatpush1.bf16.msra.mxu0 %v3901
      %4111 = vmatprep.mubr.bf16.mxu0 %v3398
      %4112 = vmatmul.mubr.bf16.gmra.mrb[0].mxu0 %v3397
      %v4113 = vpop.f32.mrb[0].mxu0
      %v4114 = vadd.f32 %v4049, %v4113
      %v4115 = vpop.f32.mrb[0].mxu0
      %v4116 = vpop.f32.mrb[0].mxu0
      %v4117 = vadd.f32 %v4052, %v4116
      %v4118 = vpop.f32.mrb[0].mxu0
      %4119 = vmatprep.mubr.bf16.mxu0 %v3407
      %4120 = vmatmul.mubr.bf16.gmra.mrb[0].mxu0 %v3406
      %v4121 = vpop.f32.mrb[0].mxu0
      %v4122 = vadd.f32 %v4057, %v4121
      %v4123 = vpop.f32.mrb[0].mxu0
      %v4124 = vpop.f32.mrb[0].mxu0
      %v4125 = vadd.f32 %v4060, %v4124
      %v4126 = vpop.f32.mrb[0].mxu0
      %4127 = vmatprep.mubr.bf16.mxu0 %v3416
      %4128 = vmatmul.mubr.bf16.gmra.mrb[0].mxu0 %v3415
      %v4129 = vpop.f32.mrb[0].mxu0
      %v4130 = vadd.f32 %v4065, %v4129
      %v4131 = vpop.f32.mrb[0].mxu0
      %v4132 = vpop.f32.mrb[0].mxu0
      %v4133 = vadd.f32 %v4068, %v4132
      %v4134 = vpop.f32.mrb[0].mxu0
      %4135 = vmatprep.mubr.bf16.mxu0 %v3425
      %4136 = vmatmul.mubr.bf16.gmra.mrb[0].mxu0 %v3424
      %v4137 = vpop.f32.mrb[0].mxu0
      %v4138 = vadd.f32 %v4073, %v4137
      %v4139 = vpop.f32.mrb[0].mxu0
      %v4140 = vpop.f32.mrb[0].mxu0
      %v4141 = vadd.f32 %v4076, %v4140
      %v4142 = vpop.f32.mrb[0].mxu0
      %4143 = vdwg.mxu0
      %4144 = vmatprep.subr.bf16.mxu0 0
      %4145 = vmatpush1.bf16.msra.mxu0 %v3902
      %4146 = vmatprep.subr.bf16.mxu0 0
      %4147 = vmatpush1.bf16.msra.mxu0 %v3903
      %4148 = vmatprep.subr.bf16.mxu0 0
      %4149 = vmatpush1.bf16.msra.mxu0 %v3904
      %4150 = vmatprep.subr.bf16.mxu0 0
      %4151 = vmatpush1.bf16.msra.mxu0 %v3905
      %4152 = vmatprep.subr.bf16.mxu0 0
      %4153 = vmatpush1.bf16.msra.mxu0 %v3906
      %4154 = vmatprep.subr.bf16.mxu0 0
      %4155 = vmatpush1.bf16.msra.mxu0 %v3907
      %4156 = vmatprep.subr.bf16.mxu0 0
      %4157 = vmatpush1.bf16.msra.mxu0 %v3908
      %4158 = vmatprep.subr.bf16.mxu0 0
      %4159 = vmatpush1.bf16.msra.mxu0 %v3909
      %4160 = vmatprep.subr.bf16.mxu0 0
      %4161 = vmatpush1.bf16.msra.mxu0 %v3910
      %4162 = vmatprep.subr.bf16.mxu0 0
      %4163 = vmatpush1.bf16.msra.mxu0 %v3911
      %4164 = vmatprep.subr.bf16.mxu0 0
      %4165 = vmatpush1.bf16.msra.mxu0 %v3912
      %4166 = vmatprep.subr.bf16.mxu0 0
      %4167 = vmatpush1.bf16.msra.mxu0 %v3913
      %4168 = vmatprep.subr.bf16.mxu0 0
      %4169 = vmatpush1.bf16.msra.mxu0 %v3914
      %4170 = vmatprep.subr.bf16.mxu0 0
      %4171 = vmatpush1.bf16.msra.mxu0 %v3915
      %4172 = vmatprep.subr.bf16.mxu0 0
      %4173 = vmatpush1.bf16.msra.mxu0 %v3916
      %4174 = vmatprep.subr.bf16.mxu0 0
      %4175 = vmatpush1.bf16.msra.mxu0 %v3917
      %4176 = vmatprep.mubr.bf16.mxu0 %v3400
      %4177 = vmatmul.mubr.bf16.gmra.mrb[0].mxu0 %v3399
      %v4178 = vpop.f32.mrb[0].mxu0
      %v4179 = vadd.f32 %v4114, %v4178
      %v4180 = vpop.f32.mrb[0].mxu0
      %v4181 = vpop.f32.mrb[0].mxu0
      %v4182 = vadd.f32 %v4117, %v4181
      %v4183 = vpop.f32.mrb[0].mxu0
      %4184 = vmatprep.mubr.bf16.mxu0 %v3409
      %4185 = vmatmul.mubr.bf16.gmra.mrb[0].mxu0 %v3408
      %v4186 = vpop.f32.mrb[0].mxu0
      %v4187 = vadd.f32 %v4122, %v4186
      %v4188 = vpop.f32.mrb[0].mxu0
      %v4189 = vpop.f32.mrb[0].mxu0
      %v4190 = vadd.f32 %v4125, %v4189
      %v4191 = vpop.f32.mrb[0].mxu0
      %4192 = vmatprep.mubr.bf16.mxu0 %v3418
      %4193 = vmatmul.mubr.bf16.gmra.mrb[0].mxu0 %v3417
      %v4194 = vpop.f32.mrb[0].mxu0
      %v4195 = vadd.f32 %v4130, %v4194
      %v4196 = vpop.f32.mrb[0].mxu0
      %v4197 = vpop.f32.mrb[0].mxu0
      %v4198 = vadd.f32 %v4133, %v4197
      %v4199 = vpop.f32.mrb[0].mxu0
      %4200 = vmatprep.mubr.bf16.mxu0 %v3427
      %4201 = vmatmul.mubr.bf16.gmra.mrb[0].mxu0 %v3426
      %v4202 = vpop.f32.mrb[0].mxu0
      %v4203 = vadd.f32 %v4138, %v4202
      %v4204 = vpop.f32.mrb[0].mxu0
      %v4205 = vpop.f32.mrb[0].mxu0
      %v4206 = vadd.f32 %v4141, %v4205
      %v4207 = vpop.f32.mrb[0].mxu0
      %4208 = vdwg.mxu0
      %4209 = vmatprep.subr.bf16.mxu0 0
      %4210 = vmatpush1.bf16.msra.mxu0 %v3918
      %4211 = vmatprep.subr.bf16.mxu0 0
      %4212 = vmatpush1.bf16.msra.mxu0 %v3919
      %4213 = vmatprep.subr.bf16.mxu0 0
      %4214 = vmatpush1.bf16.msra.mxu0 %v3920
      %4215 = vmatprep.subr.bf16.mxu0 0
      %4216 = vmatpush1.bf16.msra.mxu0 %v3921
      %4217 = vmatprep.subr.bf16.mxu0 0
      %4218 = vmatpush1.bf16.msra.mxu0 %v3922
      %4219 = vmatprep.subr.bf16.mxu0 0
      %4220 = vmatpush1.bf16.msra.mxu0 %v3923
      %4221 = vmatprep.subr.bf16.mxu0 0
      %4222 = vmatpush1.bf16.msra.mxu0 %v3924
      %4223 = vmatprep.subr.bf16.mxu0 0
      %4224 = vmatpush1.bf16.msra.mxu0 %v3925
      %4225 = vmatprep.subr.bf16.mxu0 0
      %4226 = vmatpush1.bf16.msra.mxu0 %v3926
      %4227 = vmatprep.subr.bf16.mxu0 0
      %4228 = vmatpush1.bf16.msra.mxu0 %v3927
      %4229 = vmatprep.subr.bf16.mxu0 0
      %4230 = vmatpush1.bf16.msra.mxu0 %v3928
      %4231 = vmatprep.subr.bf16.mxu0 0
      %4232 = vmatpush1.bf16.msra.mxu0 %v3929
      %4233 = vmatprep.subr.bf16.mxu0 0
      %4234 = vmatpush1.bf16.msra.mxu0 %v3930
      %4235 = vmatprep.subr.bf16.mxu0 0
      %4236 = vmatpush1.bf16.msra.mxu0 %v3931
      %4237 = vmatprep.subr.bf16.mxu0 0
      %4238 = vmatpush1.bf16.msra.mxu0 %v3932
      %4239 = vmatprep.subr.bf16.mxu0 0
      %4240 = vmatpush1.bf16.msra.mxu0 %v3933
      %4241 = vmatprep.mubr.bf16.mxu0 %v3402
      %4242 = vmatmul.mubr.bf16.gmra.mrb[0].mxu0 %v3401
      %v4243 = vpop.f32.mrb[0].mxu0
      %v4244 = vadd.f32 %v4179, %v4243
      %v4245 = vpop.f32.mrb[0].mxu0
      %v4246 = vpop.f32.mrb[0].mxu0
      %v4247 = vadd.f32 %v4182, %v4246
      %v4248 = vpop.f32.mrb[0].mxu0
      %4249 = vmatprep.mubr.bf16.mxu0 %v3411
      %4250 = vmatmul.mubr.bf16.gmra.mrb[0].mxu0 %v3410
      %v4251 = vpop.f32.mrb[0].mxu0
      %v4252 = vadd.f32 %v4187, %v4251
      %v4253 = vpop.f32.mrb[0].mxu0
      %v4254 = vpop.f32.mrb[0].mxu0
      %v4255 = vadd.f32 %v4190, %v4254
      %v4256 = vpop.f32.mrb[0].mxu0
      %4257 = vmatprep.mubr.bf16.mxu0 %v3420
      %4258 = vmatmul.mubr.bf16.gmra.mrb[0].mxu0 %v3419
      %v4259 = vpop.f32.mrb[0].mxu0
      %v4260 = vadd.f32 %v4195, %v4259
      %v4261 = vpop.f32.mrb[0].mxu0
      %v4262 = vpop.f32.mrb[0].mxu0
      %v4263 = vadd.f32 %v4198, %v4262
      %v4264 = vpop.f32.mrb[0].mxu0
      %4265 = vmatprep.mubr.bf16.mxu0 %v3429
      %4266 = vmatmul.mubr.bf16.gmra.mrb[0].mxu0 %v3428
      %v4267 = vpop.f32.mrb[0].mxu0
      %v4268 = vadd.f32 %v4203, %v4267
      %v4269 = vpop.f32.mrb[0].mxu0
      %v4270 = vpop.f32.mrb[0].mxu0
      %v4271 = vadd.f32 %v4206, %v4270
      %v4272 = vpop.f32.mrb[0].mxu0
      %4273 = vdwg.mxu0
      %4274 = vmatprep.subr.bf16.mxu0 0
      %4275 = vmatpush1.bf16.msra.mxu0 %v3934
      %4276 = vmatprep.subr.bf16.mxu0 0
      %4277 = vmatpush1.bf16.msra.mxu0 %v3935
      %4278 = vmatprep.subr.bf16.mxu0 0
      %4279 = vmatpush1.bf16.msra.mxu0 %v3936
      %4280 = vmatprep.subr.bf16.mxu0 0
      %4281 = vmatpush1.bf16.msra.mxu0 %v3937
      %4282 = vmatprep.subr.bf16.mxu0 0
      %4283 = vmatpush1.bf16.msra.mxu0 %v3938
      %4284 = vmatprep.subr.bf16.mxu0 0
      %4285 = vmatpush1.bf16.msra.mxu0 %v3939
      %4286 = vmatprep.subr.bf16.mxu0 0
      %4287 = vmatpush1.bf16.msra.mxu0 %v3940
      %4288 = vmatprep.subr.bf16.mxu0 0
      %4289 = vmatpush1.bf16.msra.mxu0 %v3941
      %4290 = vmatprep.subr.bf16.mxu0 0
      %4291 = vmatpush1.bf16.msra.mxu0 0
      %4292 = vmatprep.subr.bf16.mxu0 0
      %4293 = vmatpush1.bf16.msra.mxu0 0
      %4294 = vmatprep.subr.bf16.mxu0 0
      %4295 = vmatpush1.bf16.msra.mxu0 0
      %4296 = vmatprep.subr.bf16.mxu0 0
      %4297 = vmatpush1.bf16.msra.mxu0 0
      %4298 = vmatprep.subr.bf16.mxu0 0
      %4299 = vmatpush1.bf16.msra.mxu0 0
      %4300 = vmatprep.subr.bf16.mxu0 0
      %4301 = vmatpush1.bf16.msra.mxu0 0
      %4302 = vmatprep.subr.bf16.mxu0 0
      %4303 = vmatpush1.bf16.msra.mxu0 0
      %4304 = vmatprep.subr.bf16.mxu0 0
      %4305 = vmatpush1.bf16.msra.mxu0 0
      %4306 = vmatprep.mubr.bf16.mxu0 0
      %4307 = vmatmul.mubr.bf16.gmra.mrb[0].mxu0 %v3403
      %v4308 = vpop.f32.mrb[0].mxu0
      %v4309 = vadd.f32 %v4244, %v4308
      %v4310 = vpop.f32.mrb[0].mxu0
      %v4311 = vpop.f32.mrb[0].mxu0
      %v4312 = vadd.f32 %v4247, %v4311
      %v4313 = vpop.f32.mrb[0].mxu0
      %4314 = vmatprep.mubr.bf16.mxu0 0
      %4315 = vmatmul.mubr.bf16.gmra.mrb[0].mxu0 %v3412
      %v4316 = vpop.f32.mrb[0].mxu0
      %v4317 = vadd.f32 %v4252, %v4316
      %v4318 = vpop.f32.mrb[0].mxu0
      %v4319 = vpop.f32.mrb[0].mxu0
      %v4320 = vadd.f32 %v4255, %v4319
      %v4321 = vpop.f32.mrb[0].mxu0
      %4322 = vmatprep.mubr.bf16.mxu0 0
      %4323 = vmatmul.mubr.bf16.gmra.mrb[0].mxu0 %v3421
      %v4324 = vpop.f32.mrb[0].mxu0
      %v4325 = vadd.f32 %v4260, %v4324
      %v4326 = vpop.f32.mrb[0].mxu0
      %v4327 = vpop.f32.mrb[0].mxu0
      %v4328 = vadd.f32 %v4263, %v4327
      %v4329 = vpop.f32.mrb[0].mxu0
      %4330 = vmatprep.mubr.bf16.mxu0 0
      %4331 = vmatmul.mubr.bf16.gmra.mrb[0].mxu0 %v3430
      %v4332 = vpop.f32.mrb[0].mxu0
      %v4333 = vadd.f32 %v4268, %v4332
      %v4334 = vpop.f32.mrb[0].mxu0
      %v4335 = vpop.f32.mrb[0].mxu0
      %v4336 = vadd.f32 %v4271, %v4335
      %v4337 = vpop.f32.mrb[0].mxu0
      %4338 = vdwg.mxu0
      %v4339 = vadd.f32 %v4309, %v3235
      %v4340 = vadd.f32 %v4312, %v3236
      %v4341 = vadd.f32 %v4317, %v3237
      %v4342 = vadd.f32 %v4320, %v3238
      %v4343 = vadd.f32 %v4325, %v3239
      %v4344 = vadd.f32 %v4328, %v3240
      %v4345 = vadd.f32 %v4333, %v3241
      %v4346 = vadd.f32 %v4336, %v3242
      %v4347 = vmax.f32 %v4339, 0.0
      %v4348 = vmax.f32 %v4340, 0.0
      %v4349 = vmax.f32 %v4341, 0.0
      %v4350 = vmax.f32 %v4342, 0.0
      %v4351 = vmax.f32 %v4343, 0.0
      %v4352 = vmax.f32 %v4344, 0.0
      %v4353 = vmax.f32 %v4345, 0.0
      %v4354 = vmax.f32 %v4346, 0.0
      %4355 = vst [vmem:[%s332] sm:$0xff] %v4347
      %4356 = vst [vmem:[%s332 + $0x8] sm:$0xff] %v4348
      %4357 = vst [vmem:[%s332 + $0x10] sm:$0xff] %v4349
      %4358 = vst [vmem:[%s332 + $0x18] sm:$0xff] %v4350
      %4359 = vst [vmem:[%s332 + $0x20] sm:$0xff] %v4351
      %4360 = vst [vmem:[%s332 + $0x28] sm:$0xff] %v4352
      %4361 = vst [vmem:[%s332 + $0x30] sm:$0xff] %v4353
      %4362 = vst [vmem:[%s332 + $0x38] sm:$0xff] %v4354
      %p4363 = scmp.lt.s32.totalorder %s20, 1
      %s4364 = scalar_select %p4363, %s20, 1
      %s4365 = smul.addr %s4364, 8
      %s4366 = smul.addr %s4365, 8
      %s4367 = scalar_lea.vmem %s9, %s4366
      // Predicated region
      $region57: #{_lambda_.1} parent=55 // pred_check
        %p4368 = pneg %p232
      $region58: #{_lambda_.1} parent=55 // pred_check_branch
        %4370 = sbr.rel (%p4368) target = $region60
      $region59: #{_lambda_.1} parent=55 // pred_region
        _
      $region60: #{_lambda_.1} parent=55 // pred_fallthru
        _
    $region56: #{_lambda_.1} parent=5 // pred_fallthru
      _
    %p4371 = scmp.le.s32.totalorder 2, %s15
    // Predicated region
    $region61: #{_lambda_.1} parent=5 // pred_check
      %p4372 = pneg %p4371
    $region62: #{_lambda_.1} parent=5 // pred_check_branch
      %4374 = sbr.rel (%p4372) target = $region64
    $region63: #{_lambda_.1} parent=5 // pred_region
      %s4375 = ssub.s32 %s15, 2
      // Predicated region
      $region65: #{_lambda_.1} parent=63 // pred_check
        %p4376 = pneg %p238
      $region66: #{_lambda_.1} parent=63 // pred_check_branch
        %4378 = sbr.rel (%p4376) target = $region68
      $region67: #{_lambda_.1} parent=63 // pred_region
        %p4379 = scmp.lt.s32.totalorder %s21, 1
        %s4380 = scalar_select %p4379, %s21, 1
        %s4381 = smul.addr %s4380, 8
        %s4382 = smul.addr %s4381, 8
        %s4383 = scalar_lea.vmem %s9, %s4382
      $region68: #{_lambda_.1} parent=63 // pred_fallthru
        _
    $region64: #{_lambda_.1} parent=5 // pred_fallthru
      _
  $region6: #{_lambda_.1} parent=0 // loop_footer
    %s19 = sadd.s32 1, %s15
  $region7: #{_lambda_.1} parent=0 // loop_footer_branch
    %14 = sbr.rel target = $region3
  $region8: #{_lambda_.1} parent=0 // loop_exit
    _

</llo_original>
